<compile_context>
chip_gen: v6e
topology: v6e:2x2x1
jax: 0.10.0
libtpu: 0.0.40
codegen_flags: <defaults>
</compile_context>

<pallas_src>
import math
import functools

import jax
import jax.numpy as jnp
from jax.experimental import pallas as pl
from jax.experimental.pallas import tpu as pltpu


# --------------------------------------------------------------------------
# Fused transformer-encoder-layer kernel (post-norm, relu FFN, dropout=0).
# Also computes proj = y @ attn_w.T + attn_b (decoder attention projection).
# Input rows are laid out as row = s * B + b  (row-major reshape of (S,B,D)).
# --------------------------------------------------------------------------
def _encoder_layer_kernel(x_ref, bid_col_ref, bid_row_ref, hmask_ref,
                          in_w_ref, in_b_ref, out_w_ref, out_b_ref,
                          lin1_w_ref, lin1_b_ref, lin2_w_ref, lin2_b_ref,
                          n1g_ref, n1b_ref, n2g_ref, n2b_ref,
                          attn_w_ref, attn_b_ref,
                          y_ref, proj_ref, *, nhead):
    eps = 1e-5
    x = x_ref[...]                                   # (R, D), row = s*B + b
    R, D = x.shape
    hd = D // nhead
    scale = 1.0 / math.sqrt(hd)

    qkv = (jnp.dot(x, in_w_ref[...], preferred_element_type=jnp.float32)
           + in_b_ref[...])                          # (R, 3D)
    q = qkv[:, :D] * scale
    k = qkv[:, D:2 * D]
    v = qkv[:, 2 * D:]

    # rows attend only within the same batch element
    same_batch = bid_col_ref[...] == bid_row_ref[...]            # (R, R)
    hmask = hmask_ref[...]                                       # (nhead, D)

    attn_out = jnp.zeros((R, D), jnp.float32)
    for h in range(nhead):                           # nhead is small, unrolled
        hm = hmask[h:h + 1, :]                                   # (1, D)
        s = jax.lax.dot_general(q * hm, k, (((1,), (1,)), ((), ())),
                                preferred_element_type=jnp.float32)  # (R, R)
        s = jnp.where(same_batch, s, -1e30)
        m = jnp.max(s, axis=-1, keepdims=True)
        e = jnp.exp(s - m)
        p = e * pl.reciprocal(jnp.sum(e, axis=-1, keepdims=True), approx=True)
        attn_out = attn_out + jnp.dot(p, v * hm,
                                      preferred_element_type=jnp.float32)

    attn_out = (jnp.dot(attn_out, out_w_ref[...],
                        preferred_element_type=jnp.float32) + out_b_ref[...])

    def layer_norm(t, g_ref, b_ref):
        mean = jnp.mean(t, axis=-1, keepdims=True)
        var = jnp.mean((t - mean) ** 2, axis=-1, keepdims=True)
        return (t - mean) * jax.lax.rsqrt(var + eps) * g_ref[...] + b_ref[...]

    x1 = layer_norm(x + attn_out, n1g_ref, n1b_ref)
    ff = jnp.maximum(jnp.dot(x1, lin1_w_ref[...],
                             preferred_element_type=jnp.float32)
                     + lin1_b_ref[...], 0.0)
    ff = (jnp.dot(ff, lin2_w_ref[...], preferred_element_type=jnp.float32)
          + lin2_b_ref[...])
    y = layer_norm(x1 + ff, n2g_ref, n2b_ref)

    y_ref[...] = y
    # hoisted decoder-attention projection (loop invariant over time steps)
    proj_ref[...] = (jnp.dot(y, attn_w_ref[...],
                             preferred_element_type=jnp.float32)
                     + attn_b_ref[...])


def encoder_layer(x_flat, p, attn_wT, attn_b, nhead, batch):
    """x_flat: (S*B, D) with row = s*B + b  ->  (encoder_out, attn_projection)."""
    R, D = x_flat.shape
    hd = D // nhead
    bid = (jnp.arange(R, dtype=jnp.int32) % batch)
    bid_col = bid.reshape(R, 1)
    bid_row = bid.reshape(1, R)
    hmask = (jnp.arange(D) // hd ==
             jnp.arange(nhead)[:, None]).astype(jnp.float32)     # (nhead, D)

    kern = functools.partial(_encoder_layer_kernel, nhead=nhead)
    return pl.pallas_call(
        kern,
        out_shape=(jax.ShapeDtypeStruct((R, D), jnp.float32),
                   jax.ShapeDtypeStruct((R, D), jnp.float32)),
    )(x_flat, bid_col, bid_row, hmask,
      p["in_wT"], p["in_b"], p["out_wT"], p["out_b"],
      p["lin1_wT"], p["lin1_b"], p["lin2_wT"], p["lin2_b"],
      p["n1_g"], p["n1_b"], p["n2_g"], p["n2_b"],
      attn_wT, attn_b)


# --------------------------------------------------------------------------
# Fused decoder kernel: both LSTM passes + dot attention + output projection +
# log_softmax, one grid step per target position, h/c carried in VMEM scratch.
# --------------------------------------------------------------------------
def _decoder_kernel(dec_in_ref, h0_ref, c0_ref,
                    proj1_ref, g1_ref, proj2_ref, g2_ref,
                    wih1_ref, whh1_ref, b1_ref,
                    wih2h_ref, wih2c_ref, whh2_ref, b2_ref,
                    wouth_ref, woutc_ref, bout_ref,
                    out_ref,
                    h1_sc, c1_sc, h2_sc, c2_sc, ctx1_sc, ctx2_sc):
    t = pl.program_id(0)
    B, D = h1_sc.shape
    H = D

    @pl.when(t == 0)
    def _():
        h1_sc[...] = h0_ref[...]
        c1_sc[...] = c0_ref[...]
        h2_sc[...] = h0_ref[...]
        c2_sc[...] = c0_ref[...]

    def lstm_update(gates, c_prev):                  # PyTorch gate order i,f,g,o
        i = jax.nn.sigmoid(gates[:, 0 * H:1 * H])
        f = jax.nn.sigmoid(gates[:, 1 * H:2 * H])
        g = jnp.tanh(gates[:, 2 * H:3 * H])
        o = jax.nn.sigmoid(gates[:, 3 * H:4 * H])
        c_new = f * c_prev + i * g
        h_new = o * jnp.tanh(c_new)
        return h_new, c_new

    def attend(h, proj_ref, g_ref, ctx_sc):
        # scores[s, b] = h[b] . proj[s, b]; softmax over s per b; the context
        # (including the reference's .view(B,1,S) reshape quirk) is the
        # contraction with the precomputed gather tensor g_ref[b, c] (S, D).
        acc = [jnp.zeros((1, D), jnp.float32) for _ in range(B)]
        for b in range(B):                           # B is tiny, unrolled
            s_row = jax.lax.dot_general(
                h[b:b + 1, :], proj_ref[b], (((1,), (1,)), ((), ())),
                preferred_element_type=jnp.float32)             # (1, S)
            m = jnp.max(s_row, axis=-1, keepdims=True)
            e = jnp.exp(s_row - m)
            w_row = e * pl.reciprocal(jnp.sum(e, axis=-1, keepdims=True),
                                      approx=True)              # (1, S)
            for c in range(B):
                acc[c] = acc[c] + jnp.dot(w_row, g_ref[b, c],
                                          preferred_element_type=jnp.float32)
        for c in range(B):
            ctx_sc[pl.ds(c, 1), :] = acc[c]
        return ctx_sc[...]

    # ---- decoder pass 1 (LSTM1 + attention over enc1) ----
    x_t = dec_in_ref[0]                                          # (B, D)
    gates1 = (jnp.dot(x_t, wih1_ref[...], preferred_element_type=jnp.float32)
              + jnp.dot(h1_sc[...], whh1_ref[...],
                        preferred_element_type=jnp.float32)
              + b1_ref[...])
    h1, c1 = lstm_update(gates1, c1_sc[...])
    h1_sc[...] = h1
    c1_sc[...] = c1
    ctx1 = attend(h1, proj1_ref, g1_ref, ctx1_sc)

    # ---- decoder pass 2 (LSTM2 on [h1, ctx1] via split weights) ----
    gates2 = (jnp.dot(h1, wih2h_ref[...], preferred_element_type=jnp.float32)
              + jnp.dot(ctx1, wih2c_ref[...],
                        preferred_element_type=jnp.float32)
              + jnp.dot(h2_sc[...], whh2_ref[...],
                        preferred_element_type=jnp.float32)
              + b2_ref[...])
    h2, c2 = lstm_update(gates2, c2_sc[...])
    h2_sc[...] = h2
    c2_sc[...] = c2
    ctx2 = attend(h2, proj2_ref, g2_ref, ctx2_sc)

    # ---- output projection on [h2, ctx2] (split weights) + log_softmax ----
    logits = (jnp.dot(h2, wouth_ref[...], preferred_element_type=jnp.float32)
              + jnp.dot(ctx2, woutc_ref[...],
                        preferred_element_type=jnp.float32)
              + bout_ref[...])                                   # (B, V)
    m = jnp.max(logits, axis=-1, keepdims=True)
    z = logits - m
    out_ref[0] = z - jnp.log(jnp.sum(jnp.exp(z), axis=-1, keepdims=True))


def fused_decoder(dec_in, h0, c0, proj1, g1, proj2, g2, kp):
    T, B, D = dec_in.shape
    S = proj1.shape[1]
    V = kp["bout"].shape[1]

    def full_spec(shape):
        n = len(shape)
        return pl.BlockSpec(shape, lambda t, n=n: (0,) * n)

    in_specs = [
        pl.BlockSpec((1, B, D), lambda t: (t, 0, 0)),            # dec_in[t]
        full_spec((B, D)), full_spec((B, D)),                    # h0, c0
        full_spec((B, S, D)), full_spec((B, B, S, D)),           # proj1, g1
        full_spec((B, S, D)), full_spec((B, B, S, D)),           # proj2, g2
        full_spec(kp["wih1T"].shape), full_spec(kp["whh1T"].shape),
        full_spec(kp["b1"].shape),
        full_spec(kp["wih2hT"].shape), full_spec(kp["wih2cT"].shape),
        full_spec(kp["whh2T"].shape), full_spec(kp["b2"].shape),
        full_spec(kp["wouthT"].shape), full_spec(kp["woutcT"].shape),
        full_spec(kp["bout"].shape),
    ]

    return pl.pallas_call(
        _decoder_kernel,
        out_shape=jax.ShapeDtypeStruct((T, B, V), jnp.float32),
        grid_spec=pltpu.PrefetchScalarGridSpec(
            num_scalar_prefetch=0,
            grid=(T,),
            in_specs=in_specs,
            out_specs=pl.BlockSpec((1, B, V), lambda t: (t, 0, 0)),
            scratch_shapes=[pltpu.VMEM((B, D), jnp.float32)
                            for _ in range(6)]),
        compiler_params=pltpu.CompilerParams(
            dimension_semantics=("arbitrary",)),
    )(dec_in, h0, c0, proj1, g1, proj2, g2,
      kp["wih1T"], kp["whh1T"], kp["b1"],
      kp["wih2hT"], kp["wih2cT"], kp["whh2T"], kp["b2"],
      kp["wouthT"], kp["woutcT"], kp["bout"])


# --------------------------------------------------------------------------
# JAX glue
# --------------------------------------------------------------------------
def positional_encoding_table(d_model, max_len=5000):
    position = jnp.arange(max_len, dtype=jnp.float32)[:, None]
    div_term = jnp.exp(jnp.arange(0, d_model, 2, dtype=jnp.float32)
                       * (-math.log(10000.0) / d_model))
    pe = jnp.zeros((max_len, d_model), jnp.float32)
    pe = pe.at[:, 0::2].set(jnp.sin(position * div_term))
    pe = pe.at[:, 1::2].set(jnp.cos(position * div_term))
    return pe


def build_context_tensor(enc):
    """g[b, c, s, :] such that context[c] = sum_{s,b} softmax_w[s,b] * g[b,c,s,:]
    reproduces the reference's  .view(B,1,S)  followed by  bmm(enc.transpose(0,1)).
    Built once per decoder pass in JAX (loop invariant)."""
    # TODO(synk): this gather has no Pallas hot path; it is loop-invariant glue.
    S, B, D = enc.shape
    s_idx = jnp.arange(S)
    b_idx = jnp.arange(B)
    c_idx = jnp.arange(B)
    m = b_idx[:, None, None] + s_idx[None, None, :] * B          # (B, 1, S)
    src = m - c_idx[None, :, None] * S                           # (B, B, S)
    valid = (src >= 0) & (src < S)
    src_c = jnp.clip(src, 0, S - 1)
    gathered = enc[src_c, jnp.broadcast_to(c_idx[None, :, None], src.shape), :]
    return jnp.where(valid[..., None], gathered, 0.0).astype(jnp.float32)


def attention_forward(kp, src, tgt, hidden, cell, *, nhead):
    # TODO(synk): nn.Embedding gather + positional-encoding add are JAX glue.
    src_emb = jnp.take(kp["src_emb"], src, axis=0)               # (S, B, D)
    src_emb = src_emb + kp["pe"][: src.shape[0]][:, None, :]
    dec_in = jnp.take(kp["tgt_emb"], tgt, axis=0)                # (T, B, D)
    dec_in = dec_in + kp["pe"][: tgt.shape[0]][:, None, :]

    S, B, D = src_emb.shape

    enc1_flat, proj1_flat = encoder_layer(src_emb.reshape(S * B, D),
                                          kp["enc1"], kp["attn_wT"],
                                          kp["attn_b"], nhead, B)
    enc2_flat, proj2_flat = encoder_layer(enc1_flat, kp["enc2"],
                                          kp["attn_wT"], kp["attn_b"],
                                          nhead, B)

    enc1 = enc1_flat.reshape(S, B, D)
    enc2 = enc2_flat.reshape(S, B, D)
    proj1 = proj1_flat.reshape(S, B, D).transpose(1, 0, 2)       # (B, S, D)
    proj2 = proj2_flat.reshape(S, B, D).transpose(1, 0, 2)
    g1 = build_context_tensor(enc1)                              # (B, B, S, D)
    g2 = build_context_tensor(enc2)

    return fused_decoder(dec_in, hidden[0], cell[0], proj1, g1, proj2, g2, kp)


# --------------------------------------------------------------------------
# Parameters: PyTorch-layout synthetic init + one-time kernel-layout prep
# --------------------------------------------------------------------------
def init_params(key, src_vocab, tgt_vocab, d_model, nhead, dim_ffd):
    keys = iter(jax.random.split(key, 64))

    def rnd(shape, scale=0.05):
        return scale * jax.random.normal(next(keys), shape, jnp.float32)

    def enc_layer():
        return dict(
            in_proj_w=rnd((3 * d_model, d_model)), in_proj_b=rnd((3 * d_model,)),
            out_proj_w=rnd((d_model, d_model)), out_proj_b=rnd((d_model,)),
            lin1_w=rnd((dim_ffd, d_model)), lin1_b=rnd((dim_ffd,)),
            lin2_w=rnd((d_model, dim_ffd)), lin2_b=rnd((d_model,)),
            norm1_g=jnp.ones((d_model,), jnp.float32),
            norm1_b=jnp.zeros((d_model,), jnp.float32),
            norm2_g=jnp.ones((d_model,), jnp.float32),
            norm2_b=jnp.zeros((d_model,), jnp.float32),
        )

    def lstm(in_size):
        return dict(w_ih=rnd((4 * d_model, in_size)),
                    w_hh=rnd((4 * d_model, d_model)),
                    b_ih=rnd((4 * d_model,)), b_hh=rnd((4 * d_model,)))

    return dict(
        src_emb=rnd((src_vocab, d_model), 0.5),
        tgt_emb=rnd((tgt_vocab, d_model), 0.5),
        pe=positional_encoding_table(d_model),
        enc1=enc_layer(), enc2=enc_layer(),
        lstm1=lstm(d_model), lstm2=lstm(2 * d_model),
        attn_w=rnd((d_model, d_model)), attn_b=rnd((d_model,)),
        out_w=rnd((tgt_vocab, 2 * d_model)), out_b=rnd((tgt_vocab,)),
    )


def prepare_params(p):
    """One-time weight pre-transposition / splitting / bias merging."""
    D = p["attn_w"].shape[0]

    def prep_enc(e):
        return dict(
            in_wT=e["in_proj_w"].T, in_b=e["in_proj_b"].reshape(1, -1),
            out_wT=e["out_proj_w"].T, out_b=e["out_proj_b"].reshape(1, -1),
            lin1_wT=e["lin1_w"].T, lin1_b=e["lin1_b"].reshape(1, -1),
            lin2_wT=e["lin2_w"].T, lin2_b=e["lin2_b"].reshape(1, -1),
            n1_g=e["norm1_g"].reshape(1, -1), n1_b=e["norm1_b"].reshape(1, -1),
            n2_g=e["norm2_g"].reshape(1, -1), n2_b=e["norm2_b"].reshape(1, -1),
        )

    wih2 = p["lstm2"]["w_ih"]          # (4D, 2D)  -> split for [h, ctx]
    outw = p["out_w"]                  # (V, 2D)   -> split for [h, ctx]
    return dict(
        src_emb=p["src_emb"], tgt_emb=p["tgt_emb"], pe=p["pe"],
        enc1=prep_enc(p["enc1"]), enc2=prep_enc(p["enc2"]),
        attn_wT=p["attn_w"].T, attn_b=p["attn_b"].reshape(1, -1),
        wih1T=p["lstm1"]["w_ih"].T, whh1T=p["lstm1"]["w_hh"].T,
        b1=(p["lstm1"]["b_ih"] + p["lstm1"]["b_hh"]).reshape(1, -1),
        wih2hT=wih2[:, :D].T, wih2cT=wih2[:, D:].T,
        whh2T=p["lstm2"]["w_hh"].T,
        b2=(p["lstm2"]["b_ih"] + p["lstm2"]["b_hh"]).reshape(1, -1),
        wouthT=outw[:, :D].T, woutcT=outw[:, D:].T,
        bout=p["out_b"].reshape(1, -1),
    )


# --------------------------------------------------------------------------

if __name__ == "__main__":
    src_vocab, tgt_vocab = 11, 16
    d_model, nhead, dim_ffd = 32, 4, 64
    batch, src_len, tgt_len = 2, 8, 5

    key = jax.random.PRNGKey(0)
    pkey, skey, tkey, hkey, ckey = jax.random.split(key, 5)

    params = init_params(pkey, src_vocab, tgt_vocab, d_model, nhead, dim_ffd)
    kparams = jax.tree_util.tree_map(jnp.asarray, prepare_params(params))

    src = jax.random.randint(skey, (src_len, batch), 0, src_vocab)   # [S, B]
    tgt = jax.random.randint(tkey, (tgt_len, batch), 0, tgt_vocab)   # [T, B]
    hidden = 0.1 * jax.random.normal(hkey, (1, batch, d_model), jnp.float32)
    cell = 0.1 * jax.random.normal(ckey, (1, batch, d_model), jnp.float32)

    fwd = jax.jit(functools.partial(attention_forward, nhead=nhead))
    out = fwd(kparams, src, tgt, hidden, cell)
    out = jax.block_until_ready(out)

    assert out.shape == (tgt_len, batch, tgt_vocab), out.shape
    # log-softmax rows must exponentiate-sum to 1
    assert bool(jnp.allclose(jnp.exp(out).sum(-1), 1.0, atol=1e-4))
    assert bool(jnp.all(jnp.isfinite(out)))
    print("KERNEL_OK")
</pallas_src>

<mosaic_0001>
module attributes {stable_mosaic.version = 11 : i64} {
  func.func @_encoder_layer_kernel(%arg0: memref<16x32xf32, #tpu.memory_space<vmem>>, %arg1: memref<16x1xi32, #tpu.memory_space<vmem>>, %arg2: memref<1x16xi32, #tpu.memory_space<vmem>>, %arg3: memref<4x32xf32, #tpu.memory_space<vmem>>, %arg4: memref<32x96xf32, #tpu.memory_space<vmem>>, %arg5: memref<1x96xf32, #tpu.memory_space<vmem>>, %arg6: memref<32x32xf32, #tpu.memory_space<vmem>>, %arg7: memref<1x32xf32, #tpu.memory_space<vmem>>, %arg8: memref<32x64xf32, #tpu.memory_space<vmem>>, %arg9: memref<1x64xf32, #tpu.memory_space<vmem>>, %arg10: memref<64x32xf32, #tpu.memory_space<vmem>>, %arg11: memref<1x32xf32, #tpu.memory_space<vmem>>, %arg12: memref<1x32xf32, #tpu.memory_space<vmem>>, %arg13: memref<1x32xf32, #tpu.memory_space<vmem>>, %arg14: memref<1x32xf32, #tpu.memory_space<vmem>>, %arg15: memref<1x32xf32, #tpu.memory_space<vmem>>, %arg16: memref<32x32xf32, #tpu.memory_space<vmem>>, %arg17: memref<1x32xf32, #tpu.memory_space<vmem>>, %arg18: memref<16x32xf32, #tpu.memory_space<vmem>>, %arg19: memref<16x32xf32, #tpu.memory_space<vmem>>) attributes {dimension_semantics = [], scalar_prefetch = 0 : i64, scratch_operands = 0 : i64, tpu.core_type = #tpu.core_type<tc>} {
    %c0 = arith.constant 0 : index
    %c0_0 = arith.constant 0 : index
    %0 = vector.load %arg0[%c0, %c0_0] : memref<16x32xf32, #tpu.memory_space<vmem>>, vector<16x32xf32>
    %c0_1 = arith.constant 0 : index
    %c0_2 = arith.constant 0 : index
    %1 = vector.load %arg4[%c0_1, %c0_2] : memref<32x96xf32, #tpu.memory_space<vmem>>, vector<32x96xf32>
    %cst = arith.constant dense<0.000000e+00> : vector<16x96xf32>
    %2 = tpu.matmul %0, %1, %cst {dimension_numbers = #tpu.dot_dimension_numbers<[1], [0], [0], [1], [0, 0, 1, 1], [], []>} : vector<16x32xf32>, vector<32x96xf32>, vector<16x96xf32> -> vector<16x96xf32>
    %c0_3 = arith.constant 0 : index
    %c0_4 = arith.constant 0 : index
    %3 = vector.load %arg5[%c0_3, %c0_4] : memref<1x96xf32, #tpu.memory_space<vmem>>, vector<1x96xf32>
    %4 = vector.broadcast %3 : vector<1x96xf32> to vector<16x96xf32>
    %5 = arith.addf %2, %4 : vector<16x96xf32>
    %6 = vector.extract_strided_slice %5 {offsets = [0, 0], sizes = [16, 32], strides = [1, 1]} : vector<16x96xf32> to vector<16x32xf32>
    %cst_5 = arith.constant 0.353553385 : f32
    %7 = vector.broadcast %cst_5 : f32 to vector<16x32xf32>
    %8 = arith.mulf %6, %7 : vector<16x32xf32>
    %9 = vector.extract_strided_slice %5 {offsets = [0, 32], sizes = [16, 32], strides = [1, 1]} : vector<16x96xf32> to vector<16x32xf32>
    %10 = vector.extract_strided_slice %5 {offsets = [0, 64], sizes = [16, 32], strides = [1, 1]} : vector<16x96xf32> to vector<16x32xf32>
    %c0_6 = arith.constant 0 : index
    %c0_7 = arith.constant 0 : index
    %11 = vector.load %arg1[%c0_6, %c0_7] : memref<16x1xi32, #tpu.memory_space<vmem>>, vector<16x1xi32>
    %c0_8 = arith.constant 0 : index
    %c0_9 = arith.constant 0 : index
    %12 = vector.load %arg2[%c0_8, %c0_9] : memref<1x16xi32, #tpu.memory_space<vmem>>, vector<1x16xi32>
    %13 = vector.broadcast %11 : vector<16x1xi32> to vector<16x16xi32>
    %14 = vector.broadcast %12 : vector<1x16xi32> to vector<16x16xi32>
    %15 = arith.cmpi eq, %13, %14 : vector<16x16xi32>
    %c0_10 = arith.constant 0 : index
    %c0_11 = arith.constant 0 : index
    %16 = vector.load %arg3[%c0_10, %c0_11] : memref<4x32xf32, #tpu.memory_space<vmem>>, vector<4x32xf32>
    %cst_12 = arith.constant 0.000000e+00 : f32
    %17 = vector.broadcast %cst_12 : f32 to vector<16x32xf32>
    %18 = vector.extract_strided_slice %16 {offsets = [0, 0], sizes = [1, 32], strides = [1, 1]} : vector<4x32xf32> to vector<1x32xf32>
    %19 = vector.broadcast %18 : vector<1x32xf32> to vector<16x32xf32>
    %20 = arith.mulf %8, %19 : vector<16x32xf32>
    %cst_13 = arith.constant dense<0.000000e+00> : vector<16x16xf32>
    %21 = tpu.matmul %20, %9, %cst_13 {dimension_numbers = #tpu.dot_dimension_numbers<[1], [1], [0], [0], [0, 0, 1, 0], [], []>} : vector<16x32xf32>, vector<16x32xf32>, vector<16x16xf32> -> vector<16x16xf32>
    %cst_14 = arith.constant -1.000000e+30 : f32
    %22 = vector.broadcast %cst_14 : f32 to vector<16x16xf32>
    %23 = arith.select %15, %21, %22 : vector<16x16xi1>, vector<16x16xf32>
    %cst_15 = arith.constant dense<0xFF800000> : vector<16xf32>
    %24 = vector.multi_reduction <maximumf>, %23, %cst_15 [1] : vector<16x16xf32> to vector<16xf32>
    %25 = vector.shape_cast %24 : vector<16xf32> to vector<16x1xf32>
    %26 = vector.broadcast %25 : vector<16x1xf32> to vector<16x16xf32>
    %27 = arith.subf %23, %26 : vector<16x16xf32>
    %28 = math.exp %27 : vector<16x16xf32>
    %cst_16 = arith.constant dense<0.000000e+00> : vector<16xf32>
    %29 = vector.multi_reduction <add>, %28, %cst_16 [1] : vector<16x16xf32> to vector<16xf32>
    %30 = vector.shape_cast %29 : vector<16xf32> to vector<16x1xf32>
    %31 = tpu.reciprocal %30 {approx = true} : vector<16x1xf32> -> vector<16x1xf32>
    %32 = vector.broadcast %31 : vector<16x1xf32> to vector<16x16xf32>
    %33 = arith.mulf %28, %32 : vector<16x16xf32>
    %34 = vector.broadcast %18 : vector<1x32xf32> to vector<16x32xf32>
    %35 = arith.mulf %10, %34 : vector<16x32xf32>
    %cst_17 = arith.constant dense<0.000000e+00> : vector<16x32xf32>
    %36 = tpu.matmul %33, %35, %cst_17 {dimension_numbers = #tpu.dot_dimension_numbers<[1], [0], [0], [1], [0, 0, 1, 1], [], []>} : vector<16x16xf32>, vector<16x32xf32>, vector<16x32xf32> -> vector<16x32xf32>
    %37 = arith.addf %17, %36 : vector<16x32xf32>
    %38 = vector.extract_strided_slice %16 {offsets = [1, 0], sizes = [1, 32], strides = [1, 1]} : vector<4x32xf32> to vector<1x32xf32>
    %39 = vector.broadcast %38 : vector<1x32xf32> to vector<16x32xf32>
    %40 = arith.mulf %8, %39 : vector<16x32xf32>
    %cst_18 = arith.constant dense<0.000000e+00> : vector<16x16xf32>
    %41 = tpu.matmul %40, %9, %cst_18 {dimension_numbers = #tpu.dot_dimension_numbers<[1], [1], [0], [0], [0, 0, 1, 0], [], []>} : vector<16x32xf32>, vector<16x32xf32>, vector<16x16xf32> -> vector<16x16xf32>
    %cst_19 = arith.constant -1.000000e+30 : f32
    %42 = vector.broadcast %cst_19 : f32 to vector<16x16xf32>
    %43 = arith.select %15, %41, %42 : vector<16x16xi1>, vector<16x16xf32>
    %cst_20 = arith.constant dense<0xFF800000> : vector<16xf32>
    %44 = vector.multi_reduction <maximumf>, %43, %cst_20 [1] : vector<16x16xf32> to vector<16xf32>
    %45 = vector.shape_cast %44 : vector<16xf32> to vector<16x1xf32>
    %46 = vector.broadcast %45 : vector<16x1xf32> to vector<16x16xf32>
    %47 = arith.subf %43, %46 : vector<16x16xf32>
    %48 = math.exp %47 : vector<16x16xf32>
    %cst_21 = arith.constant dense<0.000000e+00> : vector<16xf32>
    %49 = vector.multi_reduction <add>, %48, %cst_21 [1] : vector<16x16xf32> to vector<16xf32>
    %50 = vector.shape_cast %49 : vector<16xf32> to vector<16x1xf32>
    %51 = tpu.reciprocal %50 {approx = true} : vector<16x1xf32> -> vector<16x1xf32>
    %52 = vector.broadcast %51 : vector<16x1xf32> to vector<16x16xf32>
    %53 = arith.mulf %48, %52 : vector<16x16xf32>
    %54 = vector.broadcast %38 : vector<1x32xf32> to vector<16x32xf32>
    %55 = arith.mulf %10, %54 : vector<16x32xf32>
    %cst_22 = arith.constant dense<0.000000e+00> : vector<16x32xf32>
    %56 = tpu.matmul %53, %55, %cst_22 {dimension_numbers = #tpu.dot_dimension_numbers<[1], [0], [0], [1], [0, 0, 1, 1], [], []>} : vector<16x16xf32>, vector<16x32xf32>, vector<16x32xf32> -> vector<16x32xf32>
    %57 = arith.addf %37, %56 : vector<16x32xf32>
    %58 = vector.extract_strided_slice %16 {offsets = [2, 0], sizes = [1, 32], strides = [1, 1]} : vector<4x32xf32> to vector<1x32xf32>
    %59 = vector.broadcast %58 : vector<1x32xf32> to vector<16x32xf32>
    %60 = arith.mulf %8, %59 : vector<16x32xf32>
    %cst_23 = arith.constant dense<0.000000e+00> : vector<16x16xf32>
    %61 = tpu.matmul %60, %9, %cst_23 {dimension_numbers = #tpu.dot_dimension_numbers<[1], [1], [0], [0], [0, 0, 1, 0], [], []>} : vector<16x32xf32>, vector<16x32xf32>, vector<16x16xf32> -> vector<16x16xf32>
    %cst_24 = arith.constant -1.000000e+30 : f32
    %62 = vector.broadcast %cst_24 : f32 to vector<16x16xf32>
    %63 = arith.select %15, %61, %62 : vector<16x16xi1>, vector<16x16xf32>
    %cst_25 = arith.constant dense<0xFF800000> : vector<16xf32>
    %64 = vector.multi_reduction <maximumf>, %63, %cst_25 [1] : vector<16x16xf32> to vector<16xf32>
    %65 = vector.shape_cast %64 : vector<16xf32> to vector<16x1xf32>
    %66 = vector.broadcast %65 : vector<16x1xf32> to vector<16x16xf32>
    %67 = arith.subf %63, %66 : vector<16x16xf32>
    %68 = math.exp %67 : vector<16x16xf32>
    %cst_26 = arith.constant dense<0.000000e+00> : vector<16xf32>
    %69 = vector.multi_reduction <add>, %68, %cst_26 [1] : vector<16x16xf32> to vector<16xf32>
    %70 = vector.shape_cast %69 : vector<16xf32> to vector<16x1xf32>
    %71 = tpu.reciprocal %70 {approx = true} : vector<16x1xf32> -> vector<16x1xf32>
    %72 = vector.broadcast %71 : vector<16x1xf32> to vector<16x16xf32>
    %73 = arith.mulf %68, %72 : vector<16x16xf32>
    %74 = vector.broadcast %58 : vector<1x32xf32> to vector<16x32xf32>
    %75 = arith.mulf %10, %74 : vector<16x32xf32>
    %cst_27 = arith.constant dense<0.000000e+00> : vector<16x32xf32>
    %76 = tpu.matmul %73, %75, %cst_27 {dimension_numbers = #tpu.dot_dimension_numbers<[1], [0], [0], [1], [0, 0, 1, 1], [], []>} : vector<16x16xf32>, vector<16x32xf32>, vector<16x32xf32> -> vector<16x32xf32>
    %77 = arith.addf %57, %76 : vector<16x32xf32>
    %78 = vector.extract_strided_slice %16 {offsets = [3, 0], sizes = [1, 32], strides = [1, 1]} : vector<4x32xf32> to vector<1x32xf32>
    %79 = vector.broadcast %78 : vector<1x32xf32> to vector<16x32xf32>
    %80 = arith.mulf %8, %79 : vector<16x32xf32>
    %cst_28 = arith.constant dense<0.000000e+00> : vector<16x16xf32>
    %81 = tpu.matmul %80, %9, %cst_28 {dimension_numbers = #tpu.dot_dimension_numbers<[1], [1], [0], [0], [0, 0, 1, 0], [], []>} : vector<16x32xf32>, vector<16x32xf32>, vector<16x16xf32> -> vector<16x16xf32>
    %cst_29 = arith.constant -1.000000e+30 : f32
    %82 = vector.broadcast %cst_29 : f32 to vector<16x16xf32>
    %83 = arith.select %15, %81, %82 : vector<16x16xi1>, vector<16x16xf32>
    %cst_30 = arith.constant dense<0xFF800000> : vector<16xf32>
    %84 = vector.multi_reduction <maximumf>, %83, %cst_30 [1] : vector<16x16xf32> to vector<16xf32>
    %85 = vector.shape_cast %84 : vector<16xf32> to vector<16x1xf32>
    %86 = vector.broadcast %85 : vector<16x1xf32> to vector<16x16xf32>
    %87 = arith.subf %83, %86 : vector<16x16xf32>
    %88 = math.exp %87 : vector<16x16xf32>
    %cst_31 = arith.constant dense<0.000000e+00> : vector<16xf32>
    %89 = vector.multi_reduction <add>, %88, %cst_31 [1] : vector<16x16xf32> to vector<16xf32>
    %90 = vector.shape_cast %89 : vector<16xf32> to vector<16x1xf32>
    %91 = tpu.reciprocal %90 {approx = true} : vector<16x1xf32> -> vector<16x1xf32>
    %92 = vector.broadcast %91 : vector<16x1xf32> to vector<16x16xf32>
    %93 = arith.mulf %88, %92 : vector<16x16xf32>
    %94 = vector.broadcast %78 : vector<1x32xf32> to vector<16x32xf32>
    %95 = arith.mulf %10, %94 : vector<16x32xf32>
    %cst_32 = arith.constant dense<0.000000e+00> : vector<16x32xf32>
    %96 = tpu.matmul %93, %95, %cst_32 {dimension_numbers = #tpu.dot_dimension_numbers<[1], [0], [0], [1], [0, 0, 1, 1], [], []>} : vector<16x16xf32>, vector<16x32xf32>, vector<16x32xf32> -> vector<16x32xf32>
    %97 = arith.addf %77, %96 : vector<16x32xf32>
    %c0_33 = arith.constant 0 : index
    %c0_34 = arith.constant 0 : index
    %98 = vector.load %arg6[%c0_33, %c0_34] : memref<32x32xf32, #tpu.memory_space<vmem>>, vector<32x32xf32>
    %cst_35 = arith.constant dense<0.000000e+00> : vector<16x32xf32>
    %99 = tpu.matmul %97, %98, %cst_35 {dimension_numbers = #tpu.dot_dimension_numbers<[1], [0], [0], [1], [0, 0, 1, 1], [], []>} : vector<16x32xf32>, vector<32x32xf32>, vector<16x32xf32> -> vector<16x32xf32>
    %c0_36 = arith.constant 0 : index
    %c0_37 = arith.constant 0 : index
    %100 = vector.load %arg7[%c0_36, %c0_37] : memref<1x32xf32, #tpu.memory_space<vmem>>, vector<1x32xf32>
    %101 = vector.broadcast %100 : vector<1x32xf32> to vector<16x32xf32>
    %102 = arith.addf %99, %101 : vector<16x32xf32>
    %103 = arith.addf %0, %102 : vector<16x32xf32>
    %cst_38 = arith.constant dense<0.000000e+00> : vector<16xf32>
    %104 = vector.multi_reduction <add>, %103, %cst_38 [1] : vector<16x32xf32> to vector<16xf32>
    %105 = vector.shape_cast %104 : vector<16xf32> to vector<16x1xf32>
    %cst_39 = arith.constant 3.200000e+01 : f32
    %106 = vector.broadcast %cst_39 : f32 to vector<16x1xf32>
    %107 = arith.divf %105, %106 : vector<16x1xf32>
    %108 = vector.broadcast %107 : vector<16x1xf32> to vector<16x32xf32>
    %109 = arith.subf %103, %108 : vector<16x32xf32>
    %110 = arith.mulf %109, %109 : vector<16x32xf32>
    %cst_40 = arith.constant dense<0.000000e+00> : vector<16xf32>
    %111 = vector.multi_reduction <add>, %110, %cst_40 [1] : vector<16x32xf32> to vector<16xf32>
    %112 = vector.shape_cast %111 : vector<16xf32> to vector<16x1xf32>
    %cst_41 = arith.constant 3.200000e+01 : f32
    %113 = vector.broadcast %cst_41 : f32 to vector<16x1xf32>
    %114 = arith.divf %112, %113 : vector<16x1xf32>
    %115 = vector.broadcast %107 : vector<16x1xf32> to vector<16x32xf32>
    %116 = arith.subf %103, %115 : vector<16x32xf32>
    %cst_42 = arith.constant 9.99999974E-6 : f32
    %117 = vector.broadcast %cst_42 : f32 to vector<16x1xf32>
    %118 = arith.addf %114, %117 : vector<16x1xf32>
    %119 = math.rsqrt %118 : vector<16x1xf32>
    %120 = vector.broadcast %119 : vector<16x1xf32> to vector<16x32xf32>
    %121 = arith.mulf %116, %120 : vector<16x32xf32>
    %c0_43 = arith.constant 0 : index
    %c0_44 = arith.constant 0 : index
    %122 = vector.load %arg12[%c0_43, %c0_44] : memref<1x32xf32, #tpu.memory_space<vmem>>, vector<1x32xf32>
    %123 = vector.broadcast %122 : vector<1x32xf32> to vector<16x32xf32>
    %124 = arith.mulf %121, %123 : vector<16x32xf32>
    %c0_45 = arith.constant 0 : index
    %c0_46 = arith.constant 0 : index
    %125 = vector.load %arg13[%c0_45, %c0_46] : memref<1x32xf32, #tpu.memory_space<vmem>>, vector<1x32xf32>
    %126 = vector.broadcast %125 : vector<1x32xf32> to vector<16x32xf32>
    %127 = arith.addf %124, %126 : vector<16x32xf32>
    %c0_47 = arith.constant 0 : index
    %c0_48 = arith.constant 0 : index
    %128 = vector.load %arg8[%c0_47, %c0_48] : memref<32x64xf32, #tpu.memory_space<vmem>>, vector<32x64xf32>
    %cst_49 = arith.constant dense<0.000000e+00> : vector<16x64xf32>
    %129 = tpu.matmul %127, %128, %cst_49 {dimension_numbers = #tpu.dot_dimension_numbers<[1], [0], [0], [1], [0, 0, 1, 1], [], []>} : vector<16x32xf32>, vector<32x64xf32>, vector<16x64xf32> -> vector<16x64xf32>
    %c0_50 = arith.constant 0 : index
    %c0_51 = arith.constant 0 : index
    %130 = vector.load %arg9[%c0_50, %c0_51] : memref<1x64xf32, #tpu.memory_space<vmem>>, vector<1x64xf32>
    %131 = vector.broadcast %130 : vector<1x64xf32> to vector<16x64xf32>
    %132 = arith.addf %129, %131 : vector<16x64xf32>
    %cst_52 = arith.constant 0.000000e+00 : f32
    %133 = vector.broadcast %cst_52 : f32 to vector<16x64xf32>
    %134 = arith.maximumf %132, %133 : vector<16x64xf32>
    %c0_53 = arith.constant 0 : index
    %c0_54 = arith.constant 0 : index
    %135 = vector.load %arg10[%c0_53, %c0_54] : memref<64x32xf32, #tpu.memory_space<vmem>>, vector<64x32xf32>
    %cst_55 = arith.constant dense<0.000000e+00> : vector<16x32xf32>
    %136 = tpu.matmul %134, %135, %cst_55 {dimension_numbers = #tpu.dot_dimension_numbers<[1], [0], [0], [1], [0, 0, 1, 1], [], []>} : vector<16x64xf32>, vector<64x32xf32>, vector<16x32xf32> -> vector<16x32xf32>
    %c0_56 = arith.constant 0 : index
    %c0_57 = arith.constant 0 : index
    %137 = vector.load %arg11[%c0_56, %c0_57] : memref<1x32xf32, #tpu.memory_space<vmem>>, vector<1x32xf32>
    %138 = vector.broadcast %137 : vector<1x32xf32> to vector<16x32xf32>
    %139 = arith.addf %136, %138 : vector<16x32xf32>
    %140 = arith.addf %127, %139 : vector<16x32xf32>
    %cst_58 = arith.constant dense<0.000000e+00> : vector<16xf32>
    %141 = vector.multi_reduction <add>, %140, %cst_58 [1] : vector<16x32xf32> to vector<16xf32>
    %142 = vector.shape_cast %141 : vector<16xf32> to vector<16x1xf32>
    %cst_59 = arith.constant 3.200000e+01 : f32
    %143 = vector.broadcast %cst_59 : f32 to vector<16x1xf32>
    %144 = arith.divf %142, %143 : vector<16x1xf32>
    %145 = vector.broadcast %144 : vector<16x1xf32> to vector<16x32xf32>
    %146 = arith.subf %140, %145 : vector<16x32xf32>
    %147 = arith.mulf %146, %146 : vector<16x32xf32>
    %cst_60 = arith.constant dense<0.000000e+00> : vector<16xf32>
    %148 = vector.multi_reduction <add>, %147, %cst_60 [1] : vector<16x32xf32> to vector<16xf32>
    %149 = vector.shape_cast %148 : vector<16xf32> to vector<16x1xf32>
    %cst_61 = arith.constant 3.200000e+01 : f32
    %150 = vector.broadcast %cst_61 : f32 to vector<16x1xf32>
    %151 = arith.divf %149, %150 : vector<16x1xf32>
    %152 = vector.broadcast %144 : vector<16x1xf32> to vector<16x32xf32>
    %153 = arith.subf %140, %152 : vector<16x32xf32>
    %cst_62 = arith.constant 9.99999974E-6 : f32
    %154 = vector.broadcast %cst_62 : f32 to vector<16x1xf32>
    %155 = arith.addf %151, %154 : vector<16x1xf32>
    %156 = math.rsqrt %155 : vector<16x1xf32>
    %157 = vector.broadcast %156 : vector<16x1xf32> to vector<16x32xf32>
    %158 = arith.mulf %153, %157 : vector<16x32xf32>
    %c0_63 = arith.constant 0 : index
    %c0_64 = arith.constant 0 : index
    %159 = vector.load %arg14[%c0_63, %c0_64] : memref<1x32xf32, #tpu.memory_space<vmem>>, vector<1x32xf32>
    %160 = vector.broadcast %159 : vector<1x32xf32> to vector<16x32xf32>
    %161 = arith.mulf %158, %160 : vector<16x32xf32>
    %c0_65 = arith.constant 0 : index
    %c0_66 = arith.constant 0 : index
    %162 = vector.load %arg15[%c0_65, %c0_66] : memref<1x32xf32, #tpu.memory_space<vmem>>, vector<1x32xf32>
    %163 = vector.broadcast %162 : vector<1x32xf32> to vector<16x32xf32>
    %164 = arith.addf %161, %163 : vector<16x32xf32>
    %c0_67 = arith.constant 0 : index
    %c0_68 = arith.constant 0 : index
    %165 = vector.load %arg18[%c0_67, %c0_68] : memref<16x32xf32, #tpu.memory_space<vmem>>, vector<16x32xf32>
    tpu.vector_store %arg18[%c0_67, %c0_68], %164 {strides = array<i32>} : memref<16x32xf32, #tpu.memory_space<vmem>>, vector<16x32xf32>,
    %c0_69 = arith.constant 0 : index
    %c0_70 = arith.constant 0 : index
    %166 = vector.load %arg16[%c0_69, %c0_70] : memref<32x32xf32, #tpu.memory_space<vmem>>, vector<32x32xf32>
    %cst_71 = arith.constant dense<0.000000e+00> : vector<16x32xf32>
    %167 = tpu.matmul %164, %166, %cst_71 {dimension_numbers = #tpu.dot_dimension_numbers<[1], [0], [0], [1], [0, 0, 1, 1], [], []>} : vector<16x32xf32>, vector<32x32xf32>, vector<16x32xf32> -> vector<16x32xf32>
    %c0_72 = arith.constant 0 : index
    %c0_73 = arith.constant 0 : index
    %168 = vector.load %arg17[%c0_72, %c0_73] : memref<1x32xf32, #tpu.memory_space<vmem>>, vector<1x32xf32>
    %169 = vector.broadcast %168 : vector<1x32xf32> to vector<16x32xf32>
    %170 = arith.addf %167, %169 : vector<16x32xf32>
    %c0_74 = arith.constant 0 : index
    %c0_75 = arith.constant 0 : index
    %171 = vector.load %arg19[%c0_74, %c0_75] : memref<16x32xf32, #tpu.memory_space<vmem>>, vector<16x32xf32>
    tpu.vector_store %arg19[%c0_74, %c0_75], %170 {strides = array<i32>} : memref<16x32xf32, #tpu.memory_space<vmem>>, vector<16x32xf32>,
    return
  }
}

module attributes {stable_mosaic.version = 11 : i64} {
  func.func @_decoder_kernel(%arg0: i32, %arg1: memref<1x2x32xf32, #tpu.memory_space<vmem>>, %arg2: memref<2x32xf32, #tpu.memory_space<vmem>>, %arg3: memref<2x32xf32, #tpu.memory_space<vmem>>, %arg4: memref<2x8x32xf32, #tpu.memory_space<vmem>>, %arg5: memref<2x2x8x32xf32, #tpu.memory_space<vmem>>, %arg6: memref<2x8x32xf32, #tpu.memory_space<vmem>>, %arg7: memref<2x2x8x32xf32, #tpu.memory_space<vmem>>, %arg8: memref<32x128xf32, #tpu.memory_space<vmem>>, %arg9: memref<32x128xf32, #tpu.memory_space<vmem>>, %arg10: memref<1x128xf32, #tpu.memory_space<vmem>>, %arg11: memref<32x128xf32, #tpu.memory_space<vmem>>, %arg12: memref<32x128xf32, #tpu.memory_space<vmem>>, %arg13: memref<32x128xf32, #tpu.memory_space<vmem>>, %arg14: memref<1x128xf32, #tpu.memory_space<vmem>>, %arg15: memref<32x16xf32, #tpu.memory_space<vmem>>, %arg16: memref<32x16xf32, #tpu.memory_space<vmem>>, %arg17: memref<1x16xf32, #tpu.memory_space<vmem>>, %arg18: memref<1x2x16xf32, #tpu.memory_space<vmem>>, %arg19: memref<2x32xf32, #tpu.memory_space<vmem>>, %arg20: memref<2x32xf32, #tpu.memory_space<vmem>>, %arg21: memref<2x32xf32, #tpu.memory_space<vmem>>, %arg22: memref<2x32xf32, #tpu.memory_space<vmem>>, %arg23: memref<2x32xf32, #tpu.memory_space<vmem>>, %arg24: memref<2x32xf32, #tpu.memory_space<vmem>>) attributes {dimension_semantics = [#tpu.dimension_semantics<arbitrary>], iteration_bounds = array<i64: 5>, scalar_prefetch = 0 : i64, scratch_operands = 6 : i64, tpu.core_type = #tpu.core_type<tc>, window_params = [{transform_indices = @transform_0, window_bounds = array<i64: 1, 2, 32>}, {pipeline_mode = #tpu.pipeline_mode<synchronous>, transform_indices = @transform_1, window_bounds = array<i64: 2, 32>}, {pipeline_mode = #tpu.pipeline_mode<synchronous>, transform_indices = @transform_2, window_bounds = array<i64: 2, 32>}, {pipeline_mode = #tpu.pipeline_mode<synchronous>, transform_indices = @transform_3, window_bounds = array<i64: 2, 8, 32>}, {pipeline_mode = #tpu.pipeline_mode<synchronous>, transform_indices = @transform_4, window_bounds = array<i64: 2, 2, 8, 32>}, {pipeline_mode = #tpu.pipeline_mode<synchronous>, transform_indices = @transform_5, window_bounds = array<i64: 2, 8, 32>}, {pipeline_mode = #tpu.pipeline_mode<synchronous>, transform_indices = @transform_6, window_bounds = array<i64: 2, 2, 8, 32>}, {pipeline_mode = #tpu.pipeline_mode<synchronous>, transform_indices = @transform_7, window_bounds = array<i64: 32, 128>}, {pipeline_mode = #tpu.pipeline_mode<synchronous>, transform_indices = @transform_8, window_bounds = array<i64: 32, 128>}, {pipeline_mode = #tpu.pipeline_mode<synchronous>, transform_indices = @transform_9, window_bounds = array<i64: 1, 128>}, {pipeline_mode = #tpu.pipeline_mode<synchronous>, transform_indices = @transform_10, window_bounds = array<i64: 32, 128>}, {pipeline_mode = #tpu.pipeline_mode<synchronous>, transform_indices = @transform_11, window_bounds = array<i64: 32, 128>}, {pipeline_mode = #tpu.pipeline_mode<synchronous>, transform_indices = @transform_12, window_bounds = array<i64: 32, 128>}, {pipeline_mode = #tpu.pipeline_mode<synchronous>, transform_indices = @transform_13, window_bounds = array<i64: 1, 128>}, {pipeline_mode = #tpu.pipeline_mode<synchronous>, transform_indices = @transform_14, window_bounds = array<i64: 32, 16>}, {pipeline_mode = #tpu.pipeline_mode<synchronous>, transform_indices = @transform_15, window_bounds = array<i64: 32, 16>}, {pipeline_mode = #tpu.pipeline_mode<synchronous>, transform_indices = @transform_16, window_bounds = array<i64: 1, 16>}, {transform_indices = @transform_17, window_bounds = array<i64: 1, 2, 16>}]} {
    %c0_i32 = arith.constant 0 : i32
    %0 = arith.cmpi eq, %arg0, %c0_i32 : i32
    %1 = arith.extui %0 : i1 to i32
    %c0_i32_0 = arith.constant 0 : i32
    %2 = arith.cmpi ne, %1, %c0_i32_0 : i32
    scf.if %2 {
      %c0_135 = arith.constant 0 : index
      %c0_136 = arith.constant 0 : index
      %201 = vector.load %arg2[%c0_135, %c0_136] : memref<2x32xf32, #tpu.memory_space<vmem>>, vector<2x32xf32>
      %c0_137 = arith.constant 0 : index
      %c0_138 = arith.constant 0 : index
      %202 = vector.load %arg19[%c0_137, %c0_138] : memref<2x32xf32, #tpu.memory_space<vmem>>, vector<2x32xf32>
      tpu.vector_store %arg19[%c0_137, %c0_138], %201 {strides = array<i32>} : memref<2x32xf32, #tpu.memory_space<vmem>>, vector<2x32xf32>,
      %c0_139 = arith.constant 0 : index
      %c0_140 = arith.constant 0 : index
      %203 = vector.load %arg3[%c0_139, %c0_140] : memref<2x32xf32, #tpu.memory_space<vmem>>, vector<2x32xf32>
      %c0_141 = arith.constant 0 : index
      %c0_142 = arith.constant 0 : index
      %204 = vector.load %arg20[%c0_141, %c0_142] : memref<2x32xf32, #tpu.memory_space<vmem>>, vector<2x32xf32>
      tpu.vector_store %arg20[%c0_141, %c0_142], %203 {strides = array<i32>} : memref<2x32xf32, #tpu.memory_space<vmem>>, vector<2x32xf32>,
      %c0_143 = arith.constant 0 : index
      %c0_144 = arith.constant 0 : index
      %205 = vector.load %arg2[%c0_143, %c0_144] : memref<2x32xf32, #tpu.memory_space<vmem>>, vector<2x32xf32>
      %c0_145 = arith.constant 0 : index
      %c0_146 = arith.constant 0 : index
      %206 = vector.load %arg21[%c0_145, %c0_146] : memref<2x32xf32, #tpu.memory_space<vmem>>, vector<2x32xf32>
      tpu.vector_store %arg21[%c0_145, %c0_146], %205 {strides = array<i32>} : memref<2x32xf32, #tpu.memory_space<vmem>>, vector<2x32xf32>,
      %c0_147 = arith.constant 0 : index
      %c0_148 = arith.constant 0 : index
      %207 = vector.load %arg3[%c0_147, %c0_148] : memref<2x32xf32, #tpu.memory_space<vmem>>, vector<2x32xf32>
      %c0_149 = arith.constant 0 : index
      %c0_150 = arith.constant 0 : index
      %208 = vector.load %arg22[%c0_149, %c0_150] : memref<2x32xf32, #tpu.memory_space<vmem>>, vector<2x32xf32>
      tpu.vector_store %arg22[%c0_149, %c0_150], %207 {strides = array<i32>} : memref<2x32xf32, #tpu.memory_space<vmem>>, vector<2x32xf32>,
    } else {
    }
    %c0 = arith.constant 0 : index
    %c0_1 = arith.constant 0 : index
    %c0_2 = arith.constant 0 : index
    %3 = vector.load %arg1[%c0, %c0_1, %c0_2] : memref<1x2x32xf32, #tpu.memory_space<vmem>>, vector<1x2x32xf32>
    %4 = vector.shape_cast %3 : vector<1x2x32xf32> to vector<2x32xf32>
    %c0_3 = arith.constant 0 : index
    %c0_4 = arith.constant 0 : index
    %5 = vector.load %arg8[%c0_3, %c0_4] : memref<32x128xf32, #tpu.memory_space<vmem>>, vector<32x128xf32>
    %cst = arith.constant dense<0.000000e+00> : vector<2x128xf32>
    %6 = tpu.matmul %4, %5, %cst {dimension_numbers = #tpu.dot_dimension_numbers<[1], [0], [0], [1], [0, 0, 1, 1], [], []>} : vector<2x32xf32>, vector<32x128xf32>, vector<2x128xf32> -> vector<2x128xf32>
    %c0_5 = arith.constant 0 : index
    %c0_6 = arith.constant 0 : index
    %7 = vector.load %arg19[%c0_5, %c0_6] : memref<2x32xf32, #tpu.memory_space<vmem>>, vector<2x32xf32>
    %c0_7 = arith.constant 0 : index
    %c0_8 = arith.constant 0 : index
    %8 = vector.load %arg9[%c0_7, %c0_8] : memref<32x128xf32, #tpu.memory_space<vmem>>, vector<32x128xf32>
    %cst_9 = arith.constant dense<0.000000e+00> : vector<2x128xf32>
    %9 = tpu.matmul %7, %8, %cst_9 {dimension_numbers = #tpu.dot_dimension_numbers<[1], [0], [0], [1], [0, 0, 1, 1], [], []>} : vector<2x32xf32>, vector<32x128xf32>, vector<2x128xf32> -> vector<2x128xf32>
    %10 = arith.addf %6, %9 : vector<2x128xf32>
    %c0_10 = arith.constant 0 : index
    %c0_11 = arith.constant 0 : index
    %11 = vector.load %arg10[%c0_10, %c0_11] : memref<1x128xf32, #tpu.memory_space<vmem>>, vector<1x128xf32>
    %12 = vector.broadcast %11 : vector<1x128xf32> to vector<2x128xf32>
    %13 = arith.addf %10, %12 : vector<2x128xf32>
    %c0_12 = arith.constant 0 : index
    %c0_13 = arith.constant 0 : index
    %14 = vector.load %arg20[%c0_12, %c0_13] : memref<2x32xf32, #tpu.memory_space<vmem>>, vector<2x32xf32>
    %15 = vector.extract_strided_slice %13 {offsets = [0, 0], sizes = [2, 32], strides = [1, 1]} : vector<2x128xf32> to vector<2x32xf32>
    %16 = arith.negf %15 : vector<2x32xf32>
    %17 = math.exp %16 : vector<2x32xf32>
    %cst_14 = arith.constant 1.000000e+00 : f32
    %18 = vector.broadcast %cst_14 : f32 to vector<2x32xf32>
    %19 = arith.addf %18, %17 : vector<2x32xf32>
    %20 = arith.divf %18, %19 : vector<2x32xf32>
    %21 = vector.extract_strided_slice %13 {offsets = [0, 32], sizes = [2, 32], strides = [1, 1]} : vector<2x128xf32> to vector<2x32xf32>
    %22 = arith.negf %21 : vector<2x32xf32>
    %23 = math.exp %22 : vector<2x32xf32>
    %cst_15 = arith.constant 1.000000e+00 : f32
    %24 = vector.broadcast %cst_15 : f32 to vector<2x32xf32>
    %25 = arith.addf %24, %23 : vector<2x32xf32>
    %26 = arith.divf %24, %25 : vector<2x32xf32>
    %27 = vector.extract_strided_slice %13 {offsets = [0, 64], sizes = [2, 32], strides = [1, 1]} : vector<2x128xf32> to vector<2x32xf32>
    %28 = math.tanh %27 : vector<2x32xf32>
    %29 = vector.extract_strided_slice %13 {offsets = [0, 96], sizes = [2, 32], strides = [1, 1]} : vector<2x128xf32> to vector<2x32xf32>
    %30 = arith.negf %29 : vector<2x32xf32>
    %31 = math.exp %30 : vector<2x32xf32>
    %cst_16 = arith.constant 1.000000e+00 : f32
    %32 = vector.broadcast %cst_16 : f32 to vector<2x32xf32>
    %33 = arith.addf %32, %31 : vector<2x32xf32>
    %34 = arith.divf %32, %33 : vector<2x32xf32>
    %35 = arith.mulf %26, %14 : vector<2x32xf32>
    %36 = arith.mulf %20, %28 : vector<2x32xf32>
    %37 = arith.addf %35, %36 : vector<2x32xf32>
    %38 = math.tanh %37 : vector<2x32xf32>
    %39 = arith.mulf %34, %38 : vector<2x32xf32>
    %c0_17 = arith.constant 0 : index
    %c0_18 = arith.constant 0 : index
    %40 = vector.load %arg19[%c0_17, %c0_18] : memref<2x32xf32, #tpu.memory_space<vmem>>, vector<2x32xf32>
    tpu.vector_store %arg19[%c0_17, %c0_18], %39 {strides = array<i32>} : memref<2x32xf32, #tpu.memory_space<vmem>>, vector<2x32xf32>,
    %c0_19 = arith.constant 0 : index
    %c0_20 = arith.constant 0 : index
    %41 = vector.load %arg20[%c0_19, %c0_20] : memref<2x32xf32, #tpu.memory_space<vmem>>, vector<2x32xf32>
    tpu.vector_store %arg20[%c0_19, %c0_20], %37 {strides = array<i32>} : memref<2x32xf32, #tpu.memory_space<vmem>>, vector<2x32xf32>,
    %cst_21 = arith.constant 0.000000e+00 : f32
    %42 = vector.broadcast %cst_21 : f32 to vector<1x32xf32>
    %cst_22 = arith.constant 0.000000e+00 : f32
    %43 = vector.broadcast %cst_22 : f32 to vector<1x32xf32>
    %44 = vector.extract_strided_slice %39 {offsets = [0, 0], sizes = [1, 32], strides = [1, 1]} : vector<2x32xf32> to vector<1x32xf32>
    %c0_23 = arith.constant 0 : index
    %c0_24 = arith.constant 0 : index
    %c0_25 = arith.constant 0 : index
    %45 = vector.load %arg4[%c0_23, %c0_24, %c0_25] : memref<2x8x32xf32, #tpu.memory_space<vmem>>, vector<1x8x32xf32>
    %46 = vector.shape_cast %45 : vector<1x8x32xf32> to vector<8x32xf32>
    %cst_26 = arith.constant dense<0.000000e+00> : vector<1x8xf32>
    %47 = tpu.matmul %44, %46, %cst_26 {dimension_numbers = #tpu.dot_dimension_numbers<[1], [1], [0], [0], [0, 0, 1, 0], [], []>} : vector<1x32xf32>, vector<8x32xf32>, vector<1x8xf32> -> vector<1x8xf32>
    %cst_27 = arith.constant dense<0xFF800000> : vector<1xf32>
    %48 = vector.multi_reduction <maximumf>, %47, %cst_27 [1] : vector<1x8xf32> to vector<1xf32>
    %49 = vector.shape_cast %48 : vector<1xf32> to vector<1x1xf32>
    %50 = vector.broadcast %49 : vector<1x1xf32> to vector<1x8xf32>
    %51 = arith.subf %47, %50 : vector<1x8xf32>
    %52 = math.exp %51 : vector<1x8xf32>
    %cst_28 = arith.constant dense<0.000000e+00> : vector<1xf32>
    %53 = vector.multi_reduction <add>, %52, %cst_28 [1] : vector<1x8xf32> to vector<1xf32>
    %54 = vector.shape_cast %53 : vector<1xf32> to vector<1x1xf32>
    %55 = tpu.reciprocal %54 {approx = true} : vector<1x1xf32> -> vector<1x1xf32>
    %56 = vector.broadcast %55 : vector<1x1xf32> to vector<1x8xf32>
    %57 = arith.mulf %52, %56 : vector<1x8xf32>
    %c0_29 = arith.constant 0 : index
    %c0_30 = arith.constant 0 : index
    %c0_31 = arith.constant 0 : index
    %c0_32 = arith.constant 0 : index
    %58 = vector.load %arg5[%c0_29, %c0_30, %c0_31, %c0_32] : memref<2x2x8x32xf32, #tpu.memory_space<vmem>>, vector<1x1x8x32xf32>
    %59 = vector.shape_cast %58 : vector<1x1x8x32xf32> to vector<8x32xf32>
    %cst_33 = arith.constant dense<0.000000e+00> : vector<1x32xf32>
    %60 = tpu.matmul %57, %59, %cst_33 {dimension_numbers = #tpu.dot_dimension_numbers<[1], [0], [0], [1], [0, 0, 1, 1], [], []>} : vector<1x8xf32>, vector<8x32xf32>, vector<1x32xf32> -> vector<1x32xf32>
    %61 = arith.addf %42, %60 : vector<1x32xf32>
    %c0_34 = arith.constant 0 : index
    %c1 = arith.constant 1 : index
    %c0_35 = arith.constant 0 : index
    %c0_36 = arith.constant 0 : index
    %62 = vector.load %arg5[%c0_34, %c1, %c0_35, %c0_36] : memref<2x2x8x32xf32, #tpu.memory_space<vmem>>, vector<1x1x8x32xf32>
    %63 = vector.shape_cast %62 : vector<1x1x8x32xf32> to vector<8x32xf32>
    %cst_37 = arith.constant dense<0.000000e+00> : vector<1x32xf32>
    %64 = tpu.matmul %57, %63, %cst_37 {dimension_numbers = #tpu.dot_dimension_numbers<[1], [0], [0], [1], [0, 0, 1, 1], [], []>} : vector<1x8xf32>, vector<8x32xf32>, vector<1x32xf32> -> vector<1x32xf32>
    %65 = arith.addf %43, %64 : vector<1x32xf32>
    %66 = vector.extract_strided_slice %39 {offsets = [1, 0], sizes = [1, 32], strides = [1, 1]} : vector<2x32xf32> to vector<1x32xf32>
    %c1_38 = arith.constant 1 : index
    %c0_39 = arith.constant 0 : index
    %c0_40 = arith.constant 0 : index
    %67 = vector.load %arg4[%c1_38, %c0_39, %c0_40] : memref<2x8x32xf32, #tpu.memory_space<vmem>>, vector<1x8x32xf32>
    %68 = vector.shape_cast %67 : vector<1x8x32xf32> to vector<8x32xf32>
    %cst_41 = arith.constant dense<0.000000e+00> : vector<1x8xf32>
    %69 = tpu.matmul %66, %68, %cst_41 {dimension_numbers = #tpu.dot_dimension_numbers<[1], [1], [0], [0], [0, 0, 1, 0], [], []>} : vector<1x32xf32>, vector<8x32xf32>, vector<1x8xf32> -> vector<1x8xf32>
    %cst_42 = arith.constant dense<0xFF800000> : vector<1xf32>
    %70 = vector.multi_reduction <maximumf>, %69, %cst_42 [1] : vector<1x8xf32> to vector<1xf32>
    %71 = vector.shape_cast %70 : vector<1xf32> to vector<1x1xf32>
    %72 = vector.broadcast %71 : vector<1x1xf32> to vector<1x8xf32>
    %73 = arith.subf %69, %72 : vector<1x8xf32>
    %74 = math.exp %73 : vector<1x8xf32>
    %cst_43 = arith.constant dense<0.000000e+00> : vector<1xf32>
    %75 = vector.multi_reduction <add>, %74, %cst_43 [1] : vector<1x8xf32> to vector<1xf32>
    %76 = vector.shape_cast %75 : vector<1xf32> to vector<1x1xf32>
    %77 = tpu.reciprocal %76 {approx = true} : vector<1x1xf32> -> vector<1x1xf32>
    %78 = vector.broadcast %77 : vector<1x1xf32> to vector<1x8xf32>
    %79 = arith.mulf %74, %78 : vector<1x8xf32>
    %c1_44 = arith.constant 1 : index
    %c0_45 = arith.constant 0 : index
    %c0_46 = arith.constant 0 : index
    %c0_47 = arith.constant 0 : index
    %80 = vector.load %arg5[%c1_44, %c0_45, %c0_46, %c0_47] : memref<2x2x8x32xf32, #tpu.memory_space<vmem>>, vector<1x1x8x32xf32>
    %81 = vector.shape_cast %80 : vector<1x1x8x32xf32> to vector<8x32xf32>
    %cst_48 = arith.constant dense<0.000000e+00> : vector<1x32xf32>
    %82 = tpu.matmul %79, %81, %cst_48 {dimension_numbers = #tpu.dot_dimension_numbers<[1], [0], [0], [1], [0, 0, 1, 1], [], []>} : vector<1x8xf32>, vector<8x32xf32>, vector<1x32xf32> -> vector<1x32xf32>
    %83 = arith.addf %61, %82 : vector<1x32xf32>
    %c1_49 = arith.constant 1 : index
    %c1_50 = arith.constant 1 : index
    %c0_51 = arith.constant 0 : index
    %c0_52 = arith.constant 0 : index
    %84 = vector.load %arg5[%c1_49, %c1_50, %c0_51, %c0_52] : memref<2x2x8x32xf32, #tpu.memory_space<vmem>>, vector<1x1x8x32xf32>
    %85 = vector.shape_cast %84 : vector<1x1x8x32xf32> to vector<8x32xf32>
    %cst_53 = arith.constant dense<0.000000e+00> : vector<1x32xf32>
    %86 = tpu.matmul %79, %85, %cst_53 {dimension_numbers = #tpu.dot_dimension_numbers<[1], [0], [0], [1], [0, 0, 1, 1], [], []>} : vector<1x8xf32>, vector<8x32xf32>, vector<1x32xf32> -> vector<1x32xf32>
    %87 = arith.addf %65, %86 : vector<1x32xf32>
    %c0_54 = arith.constant 0 : index
    %c0_55 = arith.constant 0 : index
    %88 = vector.load %arg23[%c0_54, %c0_55] : memref<2x32xf32, #tpu.memory_space<vmem>>, vector<1x32xf32>
    tpu.vector_store %arg23[%c0_54, %c0_55], %83 {strides = array<i32>} : memref<2x32xf32, #tpu.memory_space<vmem>>, vector<1x32xf32>,
    %c1_56 = arith.constant 1 : index
    %c0_57 = arith.constant 0 : index
    %89 = vector.load %arg23[%c1_56, %c0_57] : memref<2x32xf32, #tpu.memory_space<vmem>>, vector<1x32xf32>
    tpu.vector_store %arg23[%c1_56, %c0_57], %87 {strides = array<i32>} : memref<2x32xf32, #tpu.memory_space<vmem>>, vector<1x32xf32>,
    %c0_58 = arith.constant 0 : index
    %c0_59 = arith.constant 0 : index
    %90 = vector.load %arg23[%c0_58, %c0_59] : memref<2x32xf32, #tpu.memory_space<vmem>>, vector<2x32xf32>
    %c0_60 = arith.constant 0 : index
    %c0_61 = arith.constant 0 : index
    %91 = vector.load %arg11[%c0_60, %c0_61] : memref<32x128xf32, #tpu.memory_space<vmem>>, vector<32x128xf32>
    %cst_62 = arith.constant dense<0.000000e+00> : vector<2x128xf32>
    %92 = tpu.matmul %39, %91, %cst_62 {dimension_numbers = #tpu.dot_dimension_numbers<[1], [0], [0], [1], [0, 0, 1, 1], [], []>} : vector<2x32xf32>, vector<32x128xf32>, vector<2x128xf32> -> vector<2x128xf32>
    %c0_63 = arith.constant 0 : index
    %c0_64 = arith.constant 0 : index
    %93 = vector.load %arg12[%c0_63, %c0_64] : memref<32x128xf32, #tpu.memory_space<vmem>>, vector<32x128xf32>
    %cst_65 = arith.constant dense<0.000000e+00> : vector<2x128xf32>
    %94 = tpu.matmul %90, %93, %cst_65 {dimension_numbers = #tpu.dot_dimension_numbers<[1], [0], [0], [1], [0, 0, 1, 1], [], []>} : vector<2x32xf32>, vector<32x128xf32>, vector<2x128xf32> -> vector<2x128xf32>
    %95 = arith.addf %92, %94 : vector<2x128xf32>
    %c0_66 = arith.constant 0 : index
    %c0_67 = arith.constant 0 : index
    %96 = vector.load %arg21[%c0_66, %c0_67] : memref<2x32xf32, #tpu.memory_space<vmem>>, vector<2x32xf32>
    %c0_68 = arith.constant 0 : index
    %c0_69 = arith.constant 0 : index
    %97 = vector.load %arg13[%c0_68, %c0_69] : memref<32x128xf32, #tpu.memory_space<vmem>>, vector<32x128xf32>
    %cst_70 = arith.constant dense<0.000000e+00> : vector<2x128xf32>
    %98 = tpu.matmul %96, %97, %cst_70 {dimension_numbers = #tpu.dot_dimension_numbers<[1], [0], [0], [1], [0, 0, 1, 1], [], []>} : vector<2x32xf32>, vector<32x128xf32>, vector<2x128xf32> -> vector<2x128xf32>
    %99 = arith.addf %95, %98 : vector<2x128xf32>
    %c0_71 = arith.constant 0 : index
    %c0_72 = arith.constant 0 : index
    %100 = vector.load %arg14[%c0_71, %c0_72] : memref<1x128xf32, #tpu.memory_space<vmem>>, vector<1x128xf32>
    %101 = vector.broadcast %100 : vector<1x128xf32> to vector<2x128xf32>
    %102 = arith.addf %99, %101 : vector<2x128xf32>
    %c0_73 = arith.constant 0 : index
    %c0_74 = arith.constant 0 : index
    %103 = vector.load %arg22[%c0_73, %c0_74] : memref<2x32xf32, #tpu.memory_space<vmem>>, vector<2x32xf32>
    %104 = vector.extract_strided_slice %102 {offsets = [0, 0], sizes = [2, 32], strides = [1, 1]} : vector<2x128xf32> to vector<2x32xf32>
    %105 = arith.negf %104 : vector<2x32xf32>
    %106 = math.exp %105 : vector<2x32xf32>
    %cst_75 = arith.constant 1.000000e+00 : f32
    %107 = vector.broadcast %cst_75 : f32 to vector<2x32xf32>
    %108 = arith.addf %107, %106 : vector<2x32xf32>
    %109 = arith.divf %107, %108 : vector<2x32xf32>
    %110 = vector.extract_strided_slice %102 {offsets = [0, 32], sizes = [2, 32], strides = [1, 1]} : vector<2x128xf32> to vector<2x32xf32>
    %111 = arith.negf %110 : vector<2x32xf32>
    %112 = math.exp %111 : vector<2x32xf32>
    %cst_76 = arith.constant 1.000000e+00 : f32
    %113 = vector.broadcast %cst_76 : f32 to vector<2x32xf32>
    %114 = arith.addf %113, %112 : vector<2x32xf32>
    %115 = arith.divf %113, %114 : vector<2x32xf32>
    %116 = vector.extract_strided_slice %102 {offsets = [0, 64], sizes = [2, 32], strides = [1, 1]} : vector<2x128xf32> to vector<2x32xf32>
    %117 = math.tanh %116 : vector<2x32xf32>
    %118 = vector.extract_strided_slice %102 {offsets = [0, 96], sizes = [2, 32], strides = [1, 1]} : vector<2x128xf32> to vector<2x32xf32>
    %119 = arith.negf %118 : vector<2x32xf32>
    %120 = math.exp %119 : vector<2x32xf32>
    %cst_77 = arith.constant 1.000000e+00 : f32
    %121 = vector.broadcast %cst_77 : f32 to vector<2x32xf32>
    %122 = arith.addf %121, %120 : vector<2x32xf32>
    %123 = arith.divf %121, %122 : vector<2x32xf32>
    %124 = arith.mulf %115, %103 : vector<2x32xf32>
    %125 = arith.mulf %109, %117 : vector<2x32xf32>
    %126 = arith.addf %124, %125 : vector<2x32xf32>
    %127 = math.tanh %126 : vector<2x32xf32>
    %128 = arith.mulf %123, %127 : vector<2x32xf32>
    %c0_78 = arith.constant 0 : index
    %c0_79 = arith.constant 0 : index
    %129 = vector.load %arg21[%c0_78, %c0_79] : memref<2x32xf32, #tpu.memory_space<vmem>>, vector<2x32xf32>
    tpu.vector_store %arg21[%c0_78, %c0_79], %128 {strides = array<i32>} : memref<2x32xf32, #tpu.memory_space<vmem>>, vector<2x32xf32>,
    %c0_80 = arith.constant 0 : index
    %c0_81 = arith.constant 0 : index
    %130 = vector.load %arg22[%c0_80, %c0_81] : memref<2x32xf32, #tpu.memory_space<vmem>>, vector<2x32xf32>
    tpu.vector_store %arg22[%c0_80, %c0_81], %126 {strides = array<i32>} : memref<2x32xf32, #tpu.memory_space<vmem>>, vector<2x32xf32>,
    %cst_82 = arith.constant 0.000000e+00 : f32
    %131 = vector.broadcast %cst_82 : f32 to vector<1x32xf32>
    %cst_83 = arith.constant 0.000000e+00 : f32
    %132 = vector.broadcast %cst_83 : f32 to vector<1x32xf32>
    %133 = vector.extract_strided_slice %128 {offsets = [0, 0], sizes = [1, 32], strides = [1, 1]} : vector<2x32xf32> to vector<1x32xf32>
    %c0_84 = arith.constant 0 : index
    %c0_85 = arith.constant 0 : index
    %c0_86 = arith.constant 0 : index
    %134 = vector.load %arg6[%c0_84, %c0_85, %c0_86] : memref<2x8x32xf32, #tpu.memory_space<vmem>>, vector<1x8x32xf32>
    %135 = vector.shape_cast %134 : vector<1x8x32xf32> to vector<8x32xf32>
    %cst_87 = arith.constant dense<0.000000e+00> : vector<1x8xf32>
    %136 = tpu.matmul %133, %135, %cst_87 {dimension_numbers = #tpu.dot_dimension_numbers<[1], [1], [0], [0], [0, 0, 1, 0], [], []>} : vector<1x32xf32>, vector<8x32xf32>, vector<1x8xf32> -> vector<1x8xf32>
    %cst_88 = arith.constant dense<0xFF800000> : vector<1xf32>
    %137 = vector.multi_reduction <maximumf>, %136, %cst_88 [1] : vector<1x8xf32> to vector<1xf32>
    %138 = vector.shape_cast %137 : vector<1xf32> to vector<1x1xf32>
    %139 = vector.broadcast %138 : vector<1x1xf32> to vector<1x8xf32>
    %140 = arith.subf %136, %139 : vector<1x8xf32>
    %141 = math.exp %140 : vector<1x8xf32>
    %cst_89 = arith.constant dense<0.000000e+00> : vector<1xf32>
    %142 = vector.multi_reduction <add>, %141, %cst_89 [1] : vector<1x8xf32> to vector<1xf32>
    %143 = vector.shape_cast %142 : vector<1xf32> to vector<1x1xf32>
    %144 = tpu.reciprocal %143 {approx = true} : vector<1x1xf32> -> vector<1x1xf32>
    %145 = vector.broadcast %144 : vector<1x1xf32> to vector<1x8xf32>
    %146 = arith.mulf %141, %145 : vector<1x8xf32>
    %c0_90 = arith.constant 0 : index
    %c0_91 = arith.constant 0 : index
    %c0_92 = arith.constant 0 : index
    %c0_93 = arith.constant 0 : index
    %147 = vector.load %arg7[%c0_90, %c0_91, %c0_92, %c0_93] : memref<2x2x8x32xf32, #tpu.memory_space<vmem>>, vector<1x1x8x32xf32>
    %148 = vector.shape_cast %147 : vector<1x1x8x32xf32> to vector<8x32xf32>
    %cst_94 = arith.constant dense<0.000000e+00> : vector<1x32xf32>
    %149 = tpu.matmul %146, %148, %cst_94 {dimension_numbers = #tpu.dot_dimension_numbers<[1], [0], [0], [1], [0, 0, 1, 1], [], []>} : vector<1x8xf32>, vector<8x32xf32>, vector<1x32xf32> -> vector<1x32xf32>
    %150 = arith.addf %131, %149 : vector<1x32xf32>
    %c0_95 = arith.constant 0 : index
    %c1_96 = arith.constant 1 : index
    %c0_97 = arith.constant 0 : index
    %c0_98 = arith.constant 0 : index
    %151 = vector.load %arg7[%c0_95, %c1_96, %c0_97, %c0_98] : memref<2x2x8x32xf32, #tpu.memory_space<vmem>>, vector<1x1x8x32xf32>
    %152 = vector.shape_cast %151 : vector<1x1x8x32xf32> to vector<8x32xf32>
    %cst_99 = arith.constant dense<0.000000e+00> : vector<1x32xf32>
    %153 = tpu.matmul %146, %152, %cst_99 {dimension_numbers = #tpu.dot_dimension_numbers<[1], [0], [0], [1], [0, 0, 1, 1], [], []>} : vector<1x8xf32>, vector<8x32xf32>, vector<1x32xf32> -> vector<1x32xf32>
    %154 = arith.addf %132, %153 : vector<1x32xf32>
    %155 = vector.extract_strided_slice %128 {offsets = [1, 0], sizes = [1, 32], strides = [1, 1]} : vector<2x32xf32> to vector<1x32xf32>
    %c1_100 = arith.constant 1 : index
    %c0_101 = arith.constant 0 : index
    %c0_102 = arith.constant 0 : index
    %156 = vector.load %arg6[%c1_100, %c0_101, %c0_102] : memref<2x8x32xf32, #tpu.memory_space<vmem>>, vector<1x8x32xf32>
    %157 = vector.shape_cast %156 : vector<1x8x32xf32> to vector<8x32xf32>
    %cst_103 = arith.constant dense<0.000000e+00> : vector<1x8xf32>
    %158 = tpu.matmul %155, %157, %cst_103 {dimension_numbers = #tpu.dot_dimension_numbers<[1], [1], [0], [0], [0, 0, 1, 0], [], []>} : vector<1x32xf32>, vector<8x32xf32>, vector<1x8xf32> -> vector<1x8xf32>
    %cst_104 = arith.constant dense<0xFF800000> : vector<1xf32>
    %159 = vector.multi_reduction <maximumf>, %158, %cst_104 [1] : vector<1x8xf32> to vector<1xf32>
    %160 = vector.shape_cast %159 : vector<1xf32> to vector<1x1xf32>
    %161 = vector.broadcast %160 : vector<1x1xf32> to vector<1x8xf32>
    %162 = arith.subf %158, %161 : vector<1x8xf32>
    %163 = math.exp %162 : vector<1x8xf32>
    %cst_105 = arith.constant dense<0.000000e+00> : vector<1xf32>
    %164 = vector.multi_reduction <add>, %163, %cst_105 [1] : vector<1x8xf32> to vector<1xf32>
    %165 = vector.shape_cast %164 : vector<1xf32> to vector<1x1xf32>
    %166 = tpu.reciprocal %165 {approx = true} : vector<1x1xf32> -> vector<1x1xf32>
    %167 = vector.broadcast %166 : vector<1x1xf32> to vector<1x8xf32>
    %168 = arith.mulf %163, %167 : vector<1x8xf32>
    %c1_106 = arith.constant 1 : index
    %c0_107 = arith.constant 0 : index
    %c0_108 = arith.constant 0 : index
    %c0_109 = arith.constant 0 : index
    %169 = vector.load %arg7[%c1_106, %c0_107, %c0_108, %c0_109] : memref<2x2x8x32xf32, #tpu.memory_space<vmem>>, vector<1x1x8x32xf32>
    %170 = vector.shape_cast %169 : vector<1x1x8x32xf32> to vector<8x32xf32>
    %cst_110 = arith.constant dense<0.000000e+00> : vector<1x32xf32>
    %171 = tpu.matmul %168, %170, %cst_110 {dimension_numbers = #tpu.dot_dimension_numbers<[1], [0], [0], [1], [0, 0, 1, 1], [], []>} : vector<1x8xf32>, vector<8x32xf32>, vector<1x32xf32> -> vector<1x32xf32>
    %172 = arith.addf %150, %171 : vector<1x32xf32>
    %c1_111 = arith.constant 1 : index
    %c1_112 = arith.constant 1 : index
    %c0_113 = arith.constant 0 : index
    %c0_114 = arith.constant 0 : index
    %173 = vector.load %arg7[%c1_111, %c1_112, %c0_113, %c0_114] : memref<2x2x8x32xf32, #tpu.memory_space<vmem>>, vector<1x1x8x32xf32>
    %174 = vector.shape_cast %173 : vector<1x1x8x32xf32> to vector<8x32xf32>
    %cst_115 = arith.constant dense<0.000000e+00> : vector<1x32xf32>
    %175 = tpu.matmul %168, %174, %cst_115 {dimension_numbers = #tpu.dot_dimension_numbers<[1], [0], [0], [1], [0, 0, 1, 1], [], []>} : vector<1x8xf32>, vector<8x32xf32>, vector<1x32xf32> -> vector<1x32xf32>
    %176 = arith.addf %154, %175 : vector<1x32xf32>
    %c0_116 = arith.constant 0 : index
    %c0_117 = arith.constant 0 : index
    %177 = vector.load %arg24[%c0_116, %c0_117] : memref<2x32xf32, #tpu.memory_space<vmem>>, vector<1x32xf32>
    tpu.vector_store %arg24[%c0_116, %c0_117], %172 {strides = array<i32>} : memref<2x32xf32, #tpu.memory_space<vmem>>, vector<1x32xf32>,
    %c1_118 = arith.constant 1 : index
    %c0_119 = arith.constant 0 : index
    %178 = vector.load %arg24[%c1_118, %c0_119] : memref<2x32xf32, #tpu.memory_space<vmem>>, vector<1x32xf32>
    tpu.vector_store %arg24[%c1_118, %c0_119], %176 {strides = array<i32>} : memref<2x32xf32, #tpu.memory_space<vmem>>, vector<1x32xf32>,
    %c0_120 = arith.constant 0 : index
    %c0_121 = arith.constant 0 : index
    %179 = vector.load %arg24[%c0_120, %c0_121] : memref<2x32xf32, #tpu.memory_space<vmem>>, vector<2x32xf32>
    %c0_122 = arith.constant 0 : index
    %c0_123 = arith.constant 0 : index
    %180 = vector.load %arg15[%c0_122, %c0_123] : memref<32x16xf32, #tpu.memory_space<vmem>>, vector<32x16xf32>
    %cst_124 = arith.constant dense<0.000000e+00> : vector<2x16xf32>
    %181 = tpu.matmul %128, %180, %cst_124 {dimension_numbers = #tpu.dot_dimension_numbers<[1], [0], [0], [1], [0, 0, 1, 1], [], []>} : vector<2x32xf32>, vector<32x16xf32>, vector<2x16xf32> -> vector<2x16xf32>
    %c0_125 = arith.constant 0 : index
    %c0_126 = arith.constant 0 : index
    %182 = vector.load %arg16[%c0_125, %c0_126] : memref<32x16xf32, #tpu.memory_space<vmem>>, vector<32x16xf32>
    %cst_127 = arith.constant dense<0.000000e+00> : vector<2x16xf32>
    %183 = tpu.matmul %179, %182, %cst_127 {dimension_numbers = #tpu.dot_dimension_numbers<[1], [0], [0], [1], [0, 0, 1, 1], [], []>} : vector<2x32xf32>, vector<32x16xf32>, vector<2x16xf32> -> vector<2x16xf32>
    %184 = arith.addf %181, %183 : vector<2x16xf32>
    %c0_128 = arith.constant 0 : index
    %c0_129 = arith.constant 0 : index
    %185 = vector.load %arg17[%c0_128, %c0_129] : memref<1x16xf32, #tpu.memory_space<vmem>>, vector<1x16xf32>
    %186 = vector.broadcast %185 : vector<1x16xf32> to vector<2x16xf32>
    %187 = arith.addf %184, %186 : vector<2x16xf32>
    %cst_130 = arith.constant dense<0xFF800000> : vector<2xf32>
    %188 = vector.multi_reduction <maximumf>, %187, %cst_130 [1] : vector<2x16xf32> to vector<2xf32>
    %189 = vector.shape_cast %188 : vector<2xf32> to vector<2x1xf32>
    %190 = vector.broadcast %189 : vector<2x1xf32> to vector<2x16xf32>
    %191 = arith.subf %187, %190 : vector<2x16xf32>
    %192 = math.exp %191 : vector<2x16xf32>
    %cst_131 = arith.constant dense<0.000000e+00> : vector<2xf32>
    %193 = vector.multi_reduction <add>, %192, %cst_131 [1] : vector<2x16xf32> to vector<2xf32>
    %194 = vector.shape_cast %193 : vector<2xf32> to vector<2x1xf32>
    %195 = math.log %194 : vector<2x1xf32>
    %196 = vector.broadcast %195 : vector<2x1xf32> to vector<2x16xf32>
    %197 = arith.subf %191, %196 : vector<2x16xf32>
    %c0_132 = arith.constant 0 : index
    %c0_133 = arith.constant 0 : index
    %c0_134 = arith.constant 0 : index
    %198 = vector.load %arg18[%c0_132, %c0_133, %c0_134] : memref<1x2x16xf32, #tpu.memory_space<vmem>>, vector<1x2x16xf32>
    %199 = vector.shape_cast %198 : vector<1x2x16xf32> to vector<2x16xf32>
    %200 = vector.shape_cast %197 : vector<2x16xf32> to vector<1x2x16xf32>
    tpu.vector_store %arg18[%c0_132, %c0_133, %c0_134], %200 {strides = array<i32>} : memref<1x2x16xf32, #tpu.memory_space<vmem>>, vector<1x2x16xf32>,
    return
  }
  func.func @transform_0(%arg0: i32) -> (i32, i32, i32) {
    %c0_i32 = arith.constant 0 : i32
    %c0_i32_0 = arith.constant 0 : i32
    %c0_i32_1 = arith.constant 0 : i32
    return %arg0, %c0_i32, %c0_i32_0 : i32, i32, i32
  }
  func.func @transform_1(%arg0: i32) -> (i32, i32) {
    %c0_i32 = arith.constant 0 : i32
    %c0_i32_0 = arith.constant 0 : i32
    %c0_i32_1 = arith.constant 0 : i32
    return %c0_i32, %c0_i32_0 : i32, i32
  }
  func.func @transform_2(%arg0: i32) -> (i32, i32) {
    %c0_i32 = arith.constant 0 : i32
    %c0_i32_0 = arith.constant 0 : i32
    %c0_i32_1 = arith.constant 0 : i32
    return %c0_i32, %c0_i32_0 : i32, i32
  }
  func.func @transform_3(%arg0: i32) -> (i32, i32, i32) {
    %c0_i32 = arith.constant 0 : i32
    %c0_i32_0 = arith.constant 0 : i32
    %c0_i32_1 = arith.constant 0 : i32
    %c0_i32_2 = arith.constant 0 : i32
    return %c0_i32, %c0_i32_0, %c0_i32_1 : i32, i32, i32
  }
  func.func @transform_4(%arg0: i32) -> (i32, i32, i32, i32) {
    %c0_i32 = arith.constant 0 : i32
    %c0_i32_0 = arith.constant 0 : i32
    %c0_i32_1 = arith.constant 0 : i32
    %c0_i32_2 = arith.constant 0 : i32
    %c0_i32_3 = arith.constant 0 : i32
    return %c0_i32, %c0_i32_0, %c0_i32_1, %c0_i32_2 : i32, i32, i32, i32
  }
  func.func @transform_5(%arg0: i32) -> (i32, i32, i32) {
    %c0_i32 = arith.constant 0 : i32
    %c0_i32_0 = arith.constant 0 : i32
    %c0_i32_1 = arith.constant 0 : i32
    %c0_i32_2 = arith.constant 0 : i32
    return %c0_i32, %c0_i32_0, %c0_i32_1 : i32, i32, i32
  }
  func.func @transform_6(%arg0: i32) -> (i32, i32, i32, i32) {
    %c0_i32 = arith.constant 0 : i32
    %c0_i32_0 = arith.constant 0 : i32
    %c0_i32_1 = arith.constant 0 : i32
    %c0_i32_2 = arith.constant 0 : i32
    %c0_i32_3 = arith.constant 0 : i32
    return %c0_i32, %c0_i32_0, %c0_i32_1, %c0_i32_2 : i32, i32, i32, i32
  }
  func.func @transform_7(%arg0: i32) -> (i32, i32) {
    %c0_i32 = arith.constant 0 : i32
    %c0_i32_0 = arith.constant 0 : i32
    %c0_i32_1 = arith.constant 0 : i32
    return %c0_i32, %c0_i32_0 : i32, i32
  }
  func.func @transform_8(%arg0: i32) -> (i32, i32) {
    %c0_i32 = arith.constant 0 : i32
    %c0_i32_0 = arith.constant 0 : i32
    %c0_i32_1 = arith.constant 0 : i32
    return %c0_i32, %c0_i32_0 : i32, i32
  }
  func.func @transform_9(%arg0: i32) -> (i32, i32) {
    %c0_i32 = arith.constant 0 : i32
    %c0_i32_0 = arith.constant 0 : i32
    %c0_i32_1 = arith.constant 0 : i32
    return %c0_i32, %c0_i32_0 : i32, i32
  }
  func.func @transform_10(%arg0: i32) -> (i32, i32) {
    %c0_i32 = arith.constant 0 : i32
    %c0_i32_0 = arith.constant 0 : i32
    %c0_i32_1 = arith.constant 0 : i32
    return %c0_i32, %c0_i32_0 : i32, i32
  }
  func.func @transform_11(%arg0: i32) -> (i32, i32) {
    %c0_i32 = arith.constant 0 : i32
    %c0_i32_0 = arith.constant 0 : i32
    %c0_i32_1 = arith.constant 0 : i32
    return %c0_i32, %c0_i32_0 : i32, i32
  }
  func.func @transform_12(%arg0: i32) -> (i32, i32) {
    %c0_i32 = arith.constant 0 : i32
    %c0_i32_0 = arith.constant 0 : i32
    %c0_i32_1 = arith.constant 0 : i32
    return %c0_i32, %c0_i32_0 : i32, i32
  }
  func.func @transform_13(%arg0: i32) -> (i32, i32) {
    %c0_i32 = arith.constant 0 : i32
    %c0_i32_0 = arith.constant 0 : i32
    %c0_i32_1 = arith.constant 0 : i32
    return %c0_i32, %c0_i32_0 : i32, i32
  }
  func.func @transform_14(%arg0: i32) -> (i32, i32) {
    %c0_i32 = arith.constant 0 : i32
    %c0_i32_0 = arith.constant 0 : i32
    %c0_i32_1 = arith.constant 0 : i32
    return %c0_i32, %c0_i32_0 : i32, i32
  }
  func.func @transform_15(%arg0: i32) -> (i32, i32) {
    %c0_i32 = arith.constant 0 : i32
    %c0_i32_0 = arith.constant 0 : i32
    %c0_i32_1 = arith.constant 0 : i32
    return %c0_i32, %c0_i32_0 : i32, i32
  }
  func.func @transform_16(%arg0: i32) -> (i32, i32) {
    %c0_i32 = arith.constant 0 : i32
    %c0_i32_0 = arith.constant 0 : i32
    %c0_i32_1 = arith.constant 0 : i32
    return %c0_i32, %c0_i32_0 : i32, i32
  }
  func.func @transform_17(%arg0: i32) -> (i32, i32, i32) {
    %c0_i32 = arith.constant 0 : i32
    %c0_i32_0 = arith.constant 0 : i32
    %c0_i32_1 = arith.constant 0 : i32
    return %arg0, %c0_i32, %c0_i32_0 : i32, i32, i32
  }
}

</mosaic_0001>

<llo_original>
// kernel: attention_forward.3
$region0: #{attention_forward.3}
  #allocation0 [shape = 'u32[]', space=smem, size = 0x4, offset = 0x4, fixed_abs, tag = 'smem constant byte address 0x4 - core index']
  #allocation1 [shape = 'u32[144,128]{1,0:T(1,128)}', space=vmem, size = 0x12000, scoped, tag = 'internal scratch']
  %s0 = inlined_call_operand.vmem [shape: f32[16,32], index: 0, kind: input, shape index: {}]
  %s1 = inlined_call_operand.vmem [shape: s32[16,1], index: 1, kind: input, shape index: {}]
  %s2 = inlined_call_operand.vmem [shape: s32[1,16], index: 2, kind: input, shape index: {}]
  %s3 = inlined_call_operand.vmem [shape: f32[4,32], index: 3, kind: input, shape index: {}]
  %s4 = inlined_call_operand.vmem [shape: f32[32,96], index: 4, kind: input, shape index: {}]
  %s5 = inlined_call_operand.vmem [shape: f32[1,96], index: 5, kind: input, shape index: {}]
  %s6 = inlined_call_operand.vmem [shape: f32[32,32], index: 6, kind: input, shape index: {}]
  %s7 = inlined_call_operand.vmem [shape: f32[1,32], index: 7, kind: input, shape index: {}]
  %s8 = inlined_call_operand.vmem [shape: f32[32,64], index: 8, kind: input, shape index: {}]
  %s9 = inlined_call_operand.vmem [shape: f32[1,64], index: 9, kind: input, shape index: {}]
  %s10 = inlined_call_operand.vmem [shape: f32[64,32], index: 10, kind: input, shape index: {}]
  %s11 = inlined_call_operand.vmem [shape: f32[1,32], index: 11, kind: input, shape index: {}]
  %s12 = inlined_call_operand.vmem [shape: f32[1,32], index: 12, kind: input, shape index: {}]
  %s13 = inlined_call_operand.vmem [shape: f32[1,32], index: 13, kind: input, shape index: {}]
  %s14 = inlined_call_operand.vmem [shape: f32[1,32], index: 14, kind: input, shape index: {}]
  %s15 = inlined_call_operand.vmem [shape: f32[1,32], index: 15, kind: input, shape index: {}]
  %s16 = inlined_call_operand.vmem [shape: f32[32,32], index: 16, kind: input, shape index: {}]
  %s17 = inlined_call_operand.vmem [shape: f32[1,32], index: 17, kind: input, shape index: {}]
  %s18 = inlined_call_operand.vmem [shape: f32[16,32], index: 18, kind: output, shape index: {0}]
  %s19 = inlined_call_operand.vmem [shape: f32[16,32], index: 19, kind: output, shape index: {1}]
  %20 = xla_tuple %s18, %s19
  %s21 = sld [smem:[#allocation0]]
  $region90: #{attention_forward.3} parent=0
    _
  %s23 = ssub.s32 1, %s21
  %s24 = scalar_select 0, %s23, %s21
  // Predicated region
  $region2: #{attention_forward.3} parent=0 // pred_check
    _
  $region3: #{attention_forward.3} parent=0 // pred_check_branch
    %26 = sbr.rel (0) target = $region5
  $region4: #{attention_forward.3} parent=0 // pred_region
    _
  $region5: #{attention_forward.3} parent=0 // pred_fallthru
    _
  // Predicated region
  $region6: #{attention_forward.3} parent=0 // pred_check
    _
  $region7: #{attention_forward.3} parent=0 // pred_check_branch
    %28 = sbr.rel (0) target = $region9
  $region8: #{attention_forward.3} parent=0 // pred_region
    _
  $region9: #{attention_forward.3} parent=0 // pred_fallthru
    _
  // Predicated region
  $region10: #{attention_forward.3} parent=0 // pred_check
    _
  $region11: #{attention_forward.3} parent=0 // pred_check_branch
    %30 = sbr.rel (0) target = $region13
  $region12: #{attention_forward.3} parent=0 // pred_region
    _
  $region13: #{attention_forward.3} parent=0 // pred_fallthru
    _
  // Predicated region
  $region14: #{attention_forward.3} parent=0 // pred_check
    _
  $region15: #{attention_forward.3} parent=0 // pred_check_branch
    %32 = sbr.rel (0) target = $region17
  $region16: #{attention_forward.3} parent=0 // pred_region
    _
  $region17: #{attention_forward.3} parent=0 // pred_fallthru
    _
  // Predicated region
  $region18: #{attention_forward.3} parent=0 // pred_check
    _
  $region19: #{attention_forward.3} parent=0 // pred_check_branch
    %34 = sbr.rel (0) target = $region21
  $region20: #{attention_forward.3} parent=0 // pred_region
    _
  $region21: #{attention_forward.3} parent=0 // pred_fallthru
    _
  // Predicated region
  $region22: #{attention_forward.3} parent=0 // pred_check
    _
  $region23: #{attention_forward.3} parent=0 // pred_check_branch
    %36 = sbr.rel (0) target = $region25
  $region24: #{attention_forward.3} parent=0 // pred_region
    _
  $region25: #{attention_forward.3} parent=0 // pred_fallthru
    _
  // Predicated region
  $region26: #{attention_forward.3} parent=0 // pred_check
    _
  $region27: #{attention_forward.3} parent=0 // pred_check_branch
    %38 = sbr.rel (0) target = $region29
  $region28: #{attention_forward.3} parent=0 // pred_region
    _
  $region29: #{attention_forward.3} parent=0 // pred_fallthru
    _
  // Predicated region
  $region30: #{attention_forward.3} parent=0 // pred_check
    _
  $region31: #{attention_forward.3} parent=0 // pred_check_branch
    %40 = sbr.rel (0) target = $region33
  $region32: #{attention_forward.3} parent=0 // pred_region
    _
  $region33: #{attention_forward.3} parent=0 // pred_fallthru
    _
  // Predicated region
  $region34: #{attention_forward.3} parent=0 // pred_check
    _
  $region35: #{attention_forward.3} parent=0 // pred_check_branch
    %42 = sbr.rel (0) target = $region37
  $region36: #{attention_forward.3} parent=0 // pred_region
    _
  $region37: #{attention_forward.3} parent=0 // pred_fallthru
    _
  // Predicated region
  $region38: #{attention_forward.3} parent=0 // pred_check
    _
  $region39: #{attention_forward.3} parent=0 // pred_check_branch
    %44 = sbr.rel (0) target = $region41
  $region40: #{attention_forward.3} parent=0 // pred_region
    _
  $region41: #{attention_forward.3} parent=0 // pred_fallthru
    _
  // Predicated region
  $region42: #{attention_forward.3} parent=0 // pred_check
    _
  $region43: #{attention_forward.3} parent=0 // pred_check_branch
    %46 = sbr.rel (0) target = $region45
  $region44: #{attention_forward.3} parent=0 // pred_region
    _
  $region45: #{attention_forward.3} parent=0 // pred_fallthru
    _
  // Predicated region
  $region46: #{attention_forward.3} parent=0 // pred_check
    _
  $region47: #{attention_forward.3} parent=0 // pred_check_branch
    %48 = sbr.rel (0) target = $region49
  $region48: #{attention_forward.3} parent=0 // pred_region
    _
  $region49: #{attention_forward.3} parent=0 // pred_fallthru
    _
  // Predicated region
  $region50: #{attention_forward.3} parent=0 // pred_check
    _
  $region51: #{attention_forward.3} parent=0 // pred_check_branch
    %50 = sbr.rel (0) target = $region53
  $region52: #{attention_forward.3} parent=0 // pred_region
    _
  $region53: #{attention_forward.3} parent=0 // pred_fallthru
    _
  // Predicated region
  $region54: #{attention_forward.3} parent=0 // pred_check
    _
  $region55: #{attention_forward.3} parent=0 // pred_check_branch
    %52 = sbr.rel (0) target = $region57
  $region56: #{attention_forward.3} parent=0 // pred_region
    _
  $region57: #{attention_forward.3} parent=0 // pred_fallthru
    _
  // Predicated region
  $region58: #{attention_forward.3} parent=0 // pred_check
    _
  $region59: #{attention_forward.3} parent=0 // pred_check_branch
    %54 = sbr.rel (0) target = $region61
  $region60: #{attention_forward.3} parent=0 // pred_region
    _
  $region61: #{attention_forward.3} parent=0 // pred_fallthru
    _
  // Predicated region
  $region62: #{attention_forward.3} parent=0 // pred_check
    _
  $region63: #{attention_forward.3} parent=0 // pred_check_branch
    %56 = sbr.rel (0) target = $region65
  $region64: #{attention_forward.3} parent=0 // pred_region
    _
  $region65: #{attention_forward.3} parent=0 // pred_fallthru
    _
  // Predicated region
  $region66: #{attention_forward.3} parent=0 // pred_check
    _
  $region67: #{attention_forward.3} parent=0 // pred_check_branch
    %58 = sbr.rel (0) target = $region69
  $region68: #{attention_forward.3} parent=0 // pred_region
    _
  $region69: #{attention_forward.3} parent=0 // pred_fallthru
    _
  // Predicated region
  $region70: #{attention_forward.3} parent=0 // pred_check
    _
  $region71: #{attention_forward.3} parent=0 // pred_check_branch
    %60 = sbr.rel (0) target = $region73
  $region72: #{attention_forward.3} parent=0 // pred_region
    _
  $region73: #{attention_forward.3} parent=0 // pred_fallthru
    _
  %v61 = vld [vmem:[%s0] sm:$0xff]
  %v62 = vld [vmem:[%s0 + $0x8] sm:$0xff]
  %v63 = vld [vmem:[%s4] sm:$0xff]
  %v64 = vld [vmem:[%s4 + $0x8] sm:$0xff]
  %v65 = vld [vmem:[%s4 + $0x10] sm:$0xff]
  %v66 = vld [vmem:[%s4 + $0x18] sm:$0xff]
  %v67 = vld [vmem:[%s5] sm:$0x1]
  %v69 = vlaneseq
  %v70 = vshrl.u32 %v69, 7
  %v71 = vsub.s32 0, %v70
  %v72 = vrot.slane %v67, %v71
  %vm74 = vcmask 261120
  %v76 = vsel %vm74, %v61, 0
  %v79 = vsel %vm74, %v62, 0
  %81 = vmatprep.subr.mxu0 0.0
  %82 = vmatpush1.msra.mxu0 0.0
  %83 = vmatprep.subr.mxu0 0.0
  %84 = vmatpush1.msra.mxu0 0.0
  %85 = vmatprep.subr.mxu0 0.0
  %86 = vmatpush1.msra.mxu0 0.0
  %87 = vmatprep.subr.mxu0 0.0
  %88 = vmatpush1.msra.mxu0 0.0
  %89 = vmatprep.subr.mxu0 0.0
  %90 = vmatpush1.msra.mxu0 0.0
  %91 = vmatprep.subr.mxu0 0.0
  %92 = vmatpush1.msra.mxu0 0.0
  %93 = vmatprep.subr.mxu0 0.0
  %94 = vmatpush1.msra.mxu0 0.0
  %95 = vmatprep.subr.mxu0 0.0
  %96 = vmatpush1.msra.mxu0 0.0
  %97 = vmatprep.subr.mxu0 0.0
  %98 = vmatpush1.msra.mxu0 0.0
  %99 = vmatprep.subr.mxu0 0.0
  %100 = vmatpush1.msra.mxu0 0.0
  %101 = vmatprep.subr.mxu0 0.0
  %102 = vmatpush1.msra.mxu0 0.0
  %103 = vmatprep.subr.mxu0 0.0
  %104 = vmatpush1.msra.mxu0 0.0
  %105 = vmatprep.subr.mxu0 0.0
  %106 = vmatpush1.msra.mxu0 %v66
  %107 = vmatprep.subr.mxu0 0.0
  %108 = vmatpush1.msra.mxu0 %v65
  %109 = vmatprep.subr.mxu0 0.0
  %110 = vmatpush1.msra.mxu0 %v64
  %111 = vmatprep.subr.mxu0 0.0
  %112 = vmatpush1.msra.mxu0 %v63
  %113 = vmatprep.subr.mxu0 0.0
  %114 = vmatpush2.msra.mxu0 0.0
  %115 = vmatprep.subr.mxu0 0.0
  %116 = vmatpush2.msra.mxu0 0.0
  %117 = vmatprep.subr.mxu0 0.0
  %118 = vmatpush2.msra.mxu0 0.0
  %119 = vmatprep.subr.mxu0 0.0
  %120 = vmatpush2.msra.mxu0 0.0
  %121 = vmatprep.subr.mxu0 0.0
  %122 = vmatpush2.msra.mxu0 0.0
  %123 = vmatprep.subr.mxu0 0.0
  %124 = vmatpush2.msra.mxu0 0.0
  %125 = vmatprep.subr.mxu0 0.0
  %126 = vmatpush2.msra.mxu0 0.0
  %127 = vmatprep.subr.mxu0 0.0
  %128 = vmatpush2.msra.mxu0 0.0
  %129 = vmatprep.subr.mxu0 0.0
  %130 = vmatpush2.msra.mxu0 0.0
  %131 = vmatprep.subr.mxu0 0.0
  %132 = vmatpush2.msra.mxu0 0.0
  %133 = vmatprep.subr.mxu0 0.0
  %134 = vmatpush2.msra.mxu0 0.0
  %135 = vmatprep.subr.mxu0 0.0
  %136 = vmatpush2.msra.mxu0 0.0
  %137 = vmatprep.subr.mxu0 0.0
  %138 = vmatpush2.msra.mxu0 0.0
  %139 = vmatprep.subr.mxu0 0.0
  %140 = vmatpush2.msra.mxu0 0.0
  %141 = vmatprep.subr.mxu0 0.0
  %142 = vmatpush2.msra.mxu0 0.0
  %143 = vmatprep.subr.mxu0 0.0
  %144 = vmatpush2.msra.mxu0 0.0
  %145 = vmatprep.mubr.f32.mxu0 0.0
  %146 = vmatmul.mubr.f32.gmra.mxu0 %v76
  %v147 = vpop.f32.mrf.mxu0
  %v148 = vadd.f32 %v72, %v147
  %v149 = vpop.f32.mrf.mxu0
  %150 = vmatprep.mubr.f32.mxu0 0.0
  %151 = vmatmul.mubr.f32.gmra.mxu0 %v79
  %v152 = vpop.f32.mrf.mxu0
  %v153 = vadd.f32 %v72, %v152
  %v154 = vpop.f32.mrf.mxu0
  %155 = vdwg.mxu0
  %v156 = vmul.f32 %v148, 0.35355338
  %v157 = vmul.f32 %v153, 0.35355338
  %v158 = vld [vmem:[%s1] sm:$0xff]
  %v159 = vld [vmem:[%s1 + $0x8] sm:$0xff]
  %v160 = vld [vmem:[%s2] sm:$0x1]
  %161 = vset.pattern.permute.xlu0 0
  %162 = vperm.xlu0 %161, %v158
  %v163 = vpop.permute.xlu0 %162
  %164 = vset.pattern.permute.xlu0 0
  %165 = vperm.xlu0 %164, %v159
  %v166 = vpop.permute.xlu0 %165
  %v167 = vlaneseq
  %v168 = vshrl.u32 %v167, 7
  %v169 = vsub.s32 0, %v168
  %v170 = vrot.slane %v160, %v169
  %vm171 = vcmp.eq.s32.totalorder %v163, %v170
  %vm172 = vcmp.eq.s32.totalorder %v166, %v170
  %v173 = vld [vmem:[%s3] sm:$0xf]
  %v174 = vlaneseq
  %v175 = vshrl.u32 %v174, 7
  %v176 = vsub.s32 0, %v175
  %v177 = vrot.slane %v173, %v176
  %v178 = vmul.f32 %v156, %v177
  %v179 = vmul.f32 %v157, %v177
  %182 = vrot.lane.b32.xlu0 %v148, 96
  %v183 = vpop.permute.xlu0 %182
  %184 = vrot.lane.b32.xlu0 %v153, 96
  %v185 = vpop.permute.xlu0 %184
  %v187 = vsel %vm74, %v178, 0
  %v190 = vsel %vm74, %v179, 0
  %v192 = vsel %vm74, %v183, 0
  %v194 = vsel %vm74, %v185, 0
  %196 = vmatprep.subr.mxu0 0.0
  %197 = vmatpush1.xpose.msra.mxu0 0.0
  %198 = vmatprep.subr.mxu0 0.0
  %199 = vmatpush1.xpose.msra.mxu0 0.0
  %200 = vmatprep.subr.mxu0 0.0
  %201 = vmatpush1.xpose.msra.mxu0 0.0
  %202 = vmatprep.subr.mxu0 0.0
  %203 = vmatpush1.xpose.msra.mxu0 0.0
  %204 = vmatprep.subr.mxu0 0.0
  %205 = vmatpush1.xpose.msra.mxu0 0.0
  %206 = vmatprep.subr.mxu0 0.0
  %207 = vmatpush1.xpose.msra.mxu0 0.0
  %208 = vmatprep.subr.mxu0 0.0
  %209 = vmatpush1.xpose.msra.mxu0 0.0
  %210 = vmatprep.subr.mxu0 0.0
  %211 = vmatpush1.xpose.msra.mxu0 0.0
  %212 = vmatprep.subr.mxu0 0.0
  %213 = vmatpush1.xpose.msra.mxu0 0.0
  %214 = vmatprep.subr.mxu0 0.0
  %215 = vmatpush1.xpose.msra.mxu0 0.0
  %216 = vmatprep.subr.mxu0 0.0
  %217 = vmatpush1.xpose.msra.mxu0 0.0
  %218 = vmatprep.subr.mxu0 0.0
  %219 = vmatpush1.xpose.msra.mxu0 0.0
  %220 = vmatprep.subr.mxu0 0.0
  %221 = vmatpush1.xpose.msra.mxu0 0.0
  %222 = vmatprep.subr.mxu0 0.0
  %223 = vmatpush1.xpose.msra.mxu0 0.0
  %224 = vmatprep.subr.mxu0 0.0
  %225 = vmatpush1.xpose.msra.mxu0 %v194
  %226 = vmatprep.subr.mxu0 0.0
  %227 = vmatpush1.xpose.msra.mxu0 %v192
  %228 = vmatprep.subr.mxu0 0.0
  %229 = vmatpush2.xpose.msra.mxu0 0.0
  %230 = vmatprep.subr.mxu0 0.0
  %231 = vmatpush2.xpose.msra.mxu0 0.0
  %232 = vmatprep.subr.mxu0 0.0
  %233 = vmatpush2.xpose.msra.mxu0 0.0
  %234 = vmatprep.subr.mxu0 0.0
  %235 = vmatpush2.xpose.msra.mxu0 0.0
  %236 = vmatprep.subr.mxu0 0.0
  %237 = vmatpush2.xpose.msra.mxu0 0.0
  %238 = vmatprep.subr.mxu0 0.0
  %239 = vmatpush2.xpose.msra.mxu0 0.0
  %240 = vmatprep.subr.mxu0 0.0
  %241 = vmatpush2.xpose.msra.mxu0 0.0
  %242 = vmatprep.subr.mxu0 0.0
  %243 = vmatpush2.xpose.msra.mxu0 0.0
  %244 = vmatprep.subr.mxu0 0.0
  %245 = vmatpush2.xpose.msra.mxu0 0.0
  %246 = vmatprep.subr.mxu0 0.0
  %247 = vmatpush2.xpose.msra.mxu0 0.0
  %248 = vmatprep.subr.mxu0 0.0
  %249 = vmatpush2.xpose.msra.mxu0 0.0
  %250 = vmatprep.subr.mxu0 0.0
  %251 = vmatpush2.xpose.msra.mxu0 0.0
  %252 = vmatprep.subr.mxu0 0.0
  %253 = vmatpush2.xpose.msra.mxu0 0.0
  %254 = vmatprep.subr.mxu0 0.0
  %255 = vmatpush2.xpose.msra.mxu0 0.0
  %256 = vmatprep.subr.mxu0 0.0
  %257 = vmatpush2.xpose.msra.mxu0 0.0
  %258 = vmatprep.subr.mxu0 0.0
  %259 = vmatpush2.xpose.msra.mxu0 0.0
  %260 = vmatprep.mubr.f32.mxu0 0.0
  %261 = vmatmul.mubr.f32.gmra.mxu0 %v187
  %v262 = vpop.f32.mrf.mxu0
  %v263 = vadd.f32 0.0, %v262
  %v264 = vpop.f32.mrf.mxu0
  %265 = vmatprep.mubr.f32.mxu0 0.0
  %266 = vmatmul.mubr.f32.gmra.mxu0 %v190
  %v267 = vpop.f32.mrf.mxu0
  %v268 = vadd.f32 0.0, %v267
  %v269 = vpop.f32.mrf.mxu0
  %270 = vdwg.mxu0
  %v271 = vsel %vm171, %v263, -1e+30
  %v272 = vsel %vm172, %v268, -1e+30
  %vm273 = vcmask 130048
  %v274 = vsel %vm273, %v271, -inf
  %275 = vmax.xlane.f32.xlu0 %v274
  %v276 = vpop.xlane.xlu0 %275
  %v277 = vsel %vm273, %v272, -inf
  %278 = vmax.xlane.f32.xlu0 %v277
  %v279 = vpop.xlane.xlu0 %278
  %v280 = vsub.f32 %v271, %v276
  %v281 = vsub.f32 %v272, %v279
  %v282 = vmul.f32 %v280, 1.442695
  %v283 = vpow.pop %v282
  %v284 = vmul.f32 %v281, 1.442695
  %v285 = vpow.pop %v284
  %v286 = vsel %vm273, %v283, 0.0
  %287 = vadd.xlane.f32.xlu0 %v286
  %v288 = vpop.xlane.xlu0 %287
  %v289 = vsel %vm273, %v285, 0.0
  %290 = vadd.xlane.f32.xlu0 %v289
  %v291 = vpop.xlane.xlu0 %290
  %v292 = vrcp.pop %v288
  %v293 = vrcp.pop %v291
  %v294 = vmul.f32 %v283, %v292
  %v295 = vmul.f32 %v285, %v293
  %297 = vrot.lane.b32.xlu0 %v177, 64
  %v298 = vpop.permute.xlu0 %297
  %v300 = vmul.f32 %v148, %v298
  %v301 = vmul.f32 %v153, %v298
  %v302 = vlaneseq
  %v303 = vshrl.u32 %v302, 7
  %v304 = vsub.s32 1, %v303
  %v305 = vrot.slane %v173, %v304
  %v306 = vmul.f32 %v156, %v305
  %v307 = vmul.f32 %v157, %v305
  %v309 = vsel %vm74, %v306, 0
  %v312 = vsel %vm74, %v307, 0
  %314 = vmatprep.subr.mxu0 0.0
  %315 = vmatpush1.xpose.msra.mxu0 0.0
  %316 = vmatprep.subr.mxu0 0.0
  %317 = vmatpush1.xpose.msra.mxu0 0.0
  %318 = vmatprep.subr.mxu0 0.0
  %319 = vmatpush1.xpose.msra.mxu0 0.0
  %320 = vmatprep.subr.mxu0 0.0
  %321 = vmatpush1.xpose.msra.mxu0 0.0
  %322 = vmatprep.subr.mxu0 0.0
  %323 = vmatpush1.xpose.msra.mxu0 0.0
  %324 = vmatprep.subr.mxu0 0.0
  %325 = vmatpush1.xpose.msra.mxu0 0.0
  %326 = vmatprep.subr.mxu0 0.0
  %327 = vmatpush1.xpose.msra.mxu0 0.0
  %328 = vmatprep.subr.mxu0 0.0
  %329 = vmatpush1.xpose.msra.mxu0 0.0
  %330 = vmatprep.subr.mxu0 0.0
  %331 = vmatpush1.xpose.msra.mxu0 0.0
  %332 = vmatprep.subr.mxu0 0.0
  %333 = vmatpush1.xpose.msra.mxu0 0.0
  %334 = vmatprep.subr.mxu0 0.0
  %335 = vmatpush1.xpose.msra.mxu0 0.0
  %336 = vmatprep.subr.mxu0 0.0
  %337 = vmatpush1.xpose.msra.mxu0 0.0
  %338 = vmatprep.subr.mxu0 0.0
  %339 = vmatpush1.xpose.msra.mxu0 0.0
  %340 = vmatprep.subr.mxu0 0.0
  %341 = vmatpush1.xpose.msra.mxu0 0.0
  %342 = vmatprep.subr.mxu0 0.0
  %343 = vmatpush1.xpose.msra.mxu0 %v194
  %344 = vmatprep.subr.mxu0 0.0
  %345 = vmatpush1.xpose.msra.mxu0 %v192
  %346 = vmatprep.subr.mxu0 0.0
  %347 = vmatpush2.xpose.msra.mxu0 0.0
  %348 = vmatprep.subr.mxu0 0.0
  %349 = vmatpush2.xpose.msra.mxu0 0.0
  %350 = vmatprep.subr.mxu0 0.0
  %351 = vmatpush2.xpose.msra.mxu0 0.0
  %352 = vmatprep.subr.mxu0 0.0
  %353 = vmatpush2.xpose.msra.mxu0 0.0
  %354 = vmatprep.subr.mxu0 0.0
  %355 = vmatpush2.xpose.msra.mxu0 0.0
  %356 = vmatprep.subr.mxu0 0.0
  %357 = vmatpush2.xpose.msra.mxu0 0.0
  %358 = vmatprep.subr.mxu0 0.0
  %359 = vmatpush2.xpose.msra.mxu0 0.0
  %360 = vmatprep.subr.mxu0 0.0
  %361 = vmatpush2.xpose.msra.mxu0 0.0
  %362 = vmatprep.subr.mxu0 0.0
  %363 = vmatpush2.xpose.msra.mxu0 0.0
  %364 = vmatprep.subr.mxu0 0.0
  %365 = vmatpush2.xpose.msra.mxu0 0.0
  %366 = vmatprep.subr.mxu0 0.0
  %367 = vmatpush2.xpose.msra.mxu0 0.0
  %368 = vmatprep.subr.mxu0 0.0
  %369 = vmatpush2.xpose.msra.mxu0 0.0
  %370 = vmatprep.subr.mxu0 0.0
  %371 = vmatpush2.xpose.msra.mxu0 0.0
  %372 = vmatprep.subr.mxu0 0.0
  %373 = vmatpush2.xpose.msra.mxu0 0.0
  %374 = vmatprep.subr.mxu0 0.0
  %375 = vmatpush2.xpose.msra.mxu0 0.0
  %376 = vmatprep.subr.mxu0 0.0
  %377 = vmatpush2.xpose.msra.mxu0 0.0
  %378 = vmatprep.mubr.f32.mxu0 0.0
  %379 = vmatmul.mubr.f32.gmra.mxu0 %v309
  %v380 = vpop.f32.mrf.mxu0
  %v381 = vadd.f32 0.0, %v380
  %v382 = vpop.f32.mrf.mxu0
  %383 = vmatprep.mubr.f32.mxu0 0.0
  %384 = vmatmul.mubr.f32.gmra.mxu0 %v312
  %v385 = vpop.f32.mrf.mxu0
  %v386 = vadd.f32 0.0, %v385
  %v387 = vpop.f32.mrf.mxu0
  %388 = vdwg.mxu0
  %v389 = vsel %vm171, %v381, -1e+30
  %v390 = vsel %vm172, %v386, -1e+30
  %v391 = vsel %vm273, %v389, -inf
  %392 = vmax.xlane.f32.xlu0 %v391
  %v393 = vpop.xlane.xlu0 %392
  %v394 = vsel %vm273, %v390, -inf
  %395 = vmax.xlane.f32.xlu0 %v394
  %v396 = vpop.xlane.xlu0 %395
  %v397 = vsub.f32 %v389, %v393
  %v398 = vsub.f32 %v390, %v396
  %v399 = vmul.f32 %v397, 1.442695
  %v400 = vpow.pop %v399
  %v401 = vmul.f32 %v398, 1.442695
  %v402 = vpow.pop %v401
  %v403 = vsel %vm273, %v400, 0.0
  %404 = vadd.xlane.f32.xlu0 %v403
  %v405 = vpop.xlane.xlu0 %404
  %v406 = vsel %vm273, %v402, 0.0
  %407 = vadd.xlane.f32.xlu0 %v406
  %v408 = vpop.xlane.xlu0 %407
  %v409 = vrcp.pop %v405
  %v410 = vrcp.pop %v408
  %v411 = vmul.f32 %v400, %v409
  %v412 = vmul.f32 %v402, %v410
  %414 = vrot.lane.b32.xlu0 %v305, 64
  %v415 = vpop.permute.xlu0 %414
  %v417 = vmul.f32 %v148, %v415
  %v418 = vmul.f32 %v153, %v415
  %421 = vrot.lane.b32.xlu0 %v417, 64
  %v422 = vpop.permute.xlu0 %421
  %423 = vrot.lane.b32.xlu0 %v418, 64
  %v424 = vpop.permute.xlu0 %423
  %v428 = vsel %vm273, %v411, 0
  %v431 = vsel %vm273, %v412, 0
  %433 = vmatprep.subr.mxu0 0.0
  %434 = vmatpush1.msra.mxu0 0.0
  %435 = vmatprep.subr.mxu0 0.0
  %436 = vmatpush1.msra.mxu0 0.0
  %437 = vmatprep.subr.mxu0 0.0
  %438 = vmatpush1.msra.mxu0 0.0
  %439 = vmatprep.subr.mxu0 0.0
  %440 = vmatpush1.msra.mxu0 0.0
  %441 = vmatprep.subr.mxu0 0.0
  %442 = vmatpush1.msra.mxu0 0.0
  %443 = vmatprep.subr.mxu0 0.0
  %444 = vmatpush1.msra.mxu0 0.0
  %445 = vmatprep.subr.mxu0 0.0
  %446 = vmatpush1.msra.mxu0 0.0
  %447 = vmatprep.subr.mxu0 0.0
  %448 = vmatpush1.msra.mxu0 0.0
  %449 = vmatprep.subr.mxu0 0.0
  %450 = vmatpush1.msra.mxu0 0.0
  %451 = vmatprep.subr.mxu0 0.0
  %452 = vmatpush1.msra.mxu0 0.0
  %453 = vmatprep.subr.mxu0 0.0
  %454 = vmatpush1.msra.mxu0 0.0
  %455 = vmatprep.subr.mxu0 0.0
  %456 = vmatpush1.msra.mxu0 0.0
  %457 = vmatprep.subr.mxu0 0.0
  %458 = vmatpush1.msra.mxu0 0.0
  %459 = vmatprep.subr.mxu0 0.0
  %460 = vmatpush1.msra.mxu0 0.0
  %461 = vmatprep.subr.mxu0 0.0
  %462 = vmatpush1.msra.mxu0 %v424
  %463 = vmatprep.subr.mxu0 0.0
  %464 = vmatpush1.msra.mxu0 %v422
  %465 = vmatprep.subr.mxu0 0.0
  %466 = vmatpush2.msra.mxu0 0.0
  %467 = vmatprep.subr.mxu0 0.0
  %468 = vmatpush2.msra.mxu0 0.0
  %469 = vmatprep.subr.mxu0 0.0
  %470 = vmatpush2.msra.mxu0 0.0
  %471 = vmatprep.subr.mxu0 0.0
  %472 = vmatpush2.msra.mxu0 0.0
  %473 = vmatprep.subr.mxu0 0.0
  %474 = vmatpush2.msra.mxu0 0.0
  %475 = vmatprep.subr.mxu0 0.0
  %476 = vmatpush2.msra.mxu0 0.0
  %477 = vmatprep.subr.mxu0 0.0
  %478 = vmatpush2.msra.mxu0 0.0
  %479 = vmatprep.subr.mxu0 0.0
  %480 = vmatpush2.msra.mxu0 0.0
  %481 = vmatprep.subr.mxu0 0.0
  %482 = vmatpush2.msra.mxu0 0.0
  %483 = vmatprep.subr.mxu0 0.0
  %484 = vmatpush2.msra.mxu0 0.0
  %485 = vmatprep.subr.mxu0 0.0
  %486 = vmatpush2.msra.mxu0 0.0
  %487 = vmatprep.subr.mxu0 0.0
  %488 = vmatpush2.msra.mxu0 0.0
  %489 = vmatprep.subr.mxu0 0.0
  %490 = vmatpush2.msra.mxu0 0.0
  %491 = vmatprep.subr.mxu0 0.0
  %492 = vmatpush2.msra.mxu0 0.0
  %493 = vmatprep.subr.mxu0 0.0
  %494 = vmatpush2.msra.mxu0 0.0
  %495 = vmatprep.subr.mxu0 0.0
  %496 = vmatpush2.msra.mxu0 0.0
  %497 = vmatprep.mubr.f32.mxu0 0.0
  %498 = vmatmul.mubr.f32.gmra.mxu0 %v428
  %v499 = vpop.f32.mrf.mxu0
  %v500 = vadd.f32 0.0, %v499
  %v501 = vpop.f32.mrf.mxu0
  %502 = vmatprep.mubr.f32.mxu0 0.0
  %503 = vmatmul.mubr.f32.gmra.mxu0 %v431
  %v504 = vpop.f32.mrf.mxu0
  %v505 = vadd.f32 0.0, %v504
  %v506 = vpop.f32.mrf.mxu0
  %507 = vdwg.mxu0
  %510 = vrot.lane.b32.xlu0 %v300, 64
  %v511 = vpop.permute.xlu0 %510
  %512 = vrot.lane.b32.xlu0 %v301, 64
  %v513 = vpop.permute.xlu0 %512
  %v517 = vsel %vm273, %v294, 0
  %v520 = vsel %vm273, %v295, 0
  %522 = vmatprep.subr.mxu0 0.0
  %523 = vmatpush1.msra.mxu0 0.0
  %524 = vmatprep.subr.mxu0 0.0
  %525 = vmatpush1.msra.mxu0 0.0
  %526 = vmatprep.subr.mxu0 0.0
  %527 = vmatpush1.msra.mxu0 0.0
  %528 = vmatprep.subr.mxu0 0.0
  %529 = vmatpush1.msra.mxu0 0.0
  %530 = vmatprep.subr.mxu0 0.0
  %531 = vmatpush1.msra.mxu0 0.0
  %532 = vmatprep.subr.mxu0 0.0
  %533 = vmatpush1.msra.mxu0 0.0
  %534 = vmatprep.subr.mxu0 0.0
  %535 = vmatpush1.msra.mxu0 0.0
  %536 = vmatprep.subr.mxu0 0.0
  %537 = vmatpush1.msra.mxu0 0.0
  %538 = vmatprep.subr.mxu0 0.0
  %539 = vmatpush1.msra.mxu0 0.0
  %540 = vmatprep.subr.mxu0 0.0
  %541 = vmatpush1.msra.mxu0 0.0
  %542 = vmatprep.subr.mxu0 0.0
  %543 = vmatpush1.msra.mxu0 0.0
  %544 = vmatprep.subr.mxu0 0.0
  %545 = vmatpush1.msra.mxu0 0.0
  %546 = vmatprep.subr.mxu0 0.0
  %547 = vmatpush1.msra.mxu0 0.0
  %548 = vmatprep.subr.mxu0 0.0
  %549 = vmatpush1.msra.mxu0 0.0
  %550 = vmatprep.subr.mxu0 0.0
  %551 = vmatpush1.msra.mxu0 %v513
  %552 = vmatprep.subr.mxu0 0.0
  %553 = vmatpush1.msra.mxu0 %v511
  %554 = vmatprep.subr.mxu0 0.0
  %555 = vmatpush2.msra.mxu0 0.0
  %556 = vmatprep.subr.mxu0 0.0
  %557 = vmatpush2.msra.mxu0 0.0
  %558 = vmatprep.subr.mxu0 0.0
  %559 = vmatpush2.msra.mxu0 0.0
  %560 = vmatprep.subr.mxu0 0.0
  %561 = vmatpush2.msra.mxu0 0.0
  %562 = vmatprep.subr.mxu0 0.0
  %563 = vmatpush2.msra.mxu0 0.0
  %564 = vmatprep.subr.mxu0 0.0
  %565 = vmatpush2.msra.mxu0 0.0
  %566 = vmatprep.subr.mxu0 0.0
  %567 = vmatpush2.msra.mxu0 0.0
  %568 = vmatprep.subr.mxu0 0.0
  %569 = vmatpush2.msra.mxu0 0.0
  %570 = vmatprep.subr.mxu0 0.0
  %571 = vmatpush2.msra.mxu0 0.0
  %572 = vmatprep.subr.mxu0 0.0
  %573 = vmatpush2.msra.mxu0 0.0
  %574 = vmatprep.subr.mxu0 0.0
  %575 = vmatpush2.msra.mxu0 0.0
  %576 = vmatprep.subr.mxu0 0.0
  %577 = vmatpush2.msra.mxu0 0.0
  %578 = vmatprep.subr.mxu0 0.0
  %579 = vmatpush2.msra.mxu0 0.0
  %580 = vmatprep.subr.mxu0 0.0
  %581 = vmatpush2.msra.mxu0 0.0
  %582 = vmatprep.subr.mxu0 0.0
  %583 = vmatpush2.msra.mxu0 0.0
  %584 = vmatprep.subr.mxu0 0.0
  %585 = vmatpush2.msra.mxu0 0.0
  %586 = vmatprep.mubr.f32.mxu0 0.0
  %587 = vmatmul.mubr.f32.gmra.mxu0 %v517
  %v588 = vpop.f32.mrf.mxu0
  %v589 = vadd.f32 %v500, %v588
  %v590 = vpop.f32.mrf.mxu0
  %591 = vmatprep.mubr.f32.mxu0 0.0
  %592 = vmatmul.mubr.f32.gmra.mxu0 %v520
  %v593 = vpop.f32.mrf.mxu0
  %v594 = vadd.f32 %v505, %v593
  %v595 = vpop.f32.mrf.mxu0
  %596 = vdwg.mxu0
  %v597 = vlaneseq
  %v598 = vshrl.u32 %v597, 7
  %v599 = vsub.s32 2, %v598
  %v600 = vrot.slane %v173, %v599
  %v601 = vmul.f32 %v156, %v600
  %v602 = vmul.f32 %v157, %v600
  %v604 = vsel %vm74, %v601, 0
  %v607 = vsel %vm74, %v602, 0
  %609 = vmatprep.subr.mxu0 0.0
  %610 = vmatpush1.xpose.msra.mxu0 0.0
  %611 = vmatprep.subr.mxu0 0.0
  %612 = vmatpush1.xpose.msra.mxu0 0.0
  %613 = vmatprep.subr.mxu0 0.0
  %614 = vmatpush1.xpose.msra.mxu0 0.0
  %615 = vmatprep.subr.mxu0 0.0
  %616 = vmatpush1.xpose.msra.mxu0 0.0
  %617 = vmatprep.subr.mxu0 0.0
  %618 = vmatpush1.xpose.msra.mxu0 0.0
  %619 = vmatprep.subr.mxu0 0.0
  %620 = vmatpush1.xpose.msra.mxu0 0.0
  %621 = vmatprep.subr.mxu0 0.0
  %622 = vmatpush1.xpose.msra.mxu0 0.0
  %623 = vmatprep.subr.mxu0 0.0
  %624 = vmatpush1.xpose.msra.mxu0 0.0
  %625 = vmatprep.subr.mxu0 0.0
  %626 = vmatpush1.xpose.msra.mxu0 0.0
  %627 = vmatprep.subr.mxu0 0.0
  %628 = vmatpush1.xpose.msra.mxu0 0.0
  %629 = vmatprep.subr.mxu0 0.0
  %630 = vmatpush1.xpose.msra.mxu0 0.0
  %631 = vmatprep.subr.mxu0 0.0
  %632 = vmatpush1.xpose.msra.mxu0 0.0
  %633 = vmatprep.subr.mxu0 0.0
  %634 = vmatpush1.xpose.msra.mxu0 0.0
  %635 = vmatprep.subr.mxu0 0.0
  %636 = vmatpush1.xpose.msra.mxu0 0.0
  %637 = vmatprep.subr.mxu0 0.0
  %638 = vmatpush1.xpose.msra.mxu0 %v194
  %639 = vmatprep.subr.mxu0 0.0
  %640 = vmatpush1.xpose.msra.mxu0 %v192
  %641 = vmatprep.subr.mxu0 0.0
  %642 = vmatpush2.xpose.msra.mxu0 0.0
  %643 = vmatprep.subr.mxu0 0.0
  %644 = vmatpush2.xpose.msra.mxu0 0.0
  %645 = vmatprep.subr.mxu0 0.0
  %646 = vmatpush2.xpose.msra.mxu0 0.0
  %647 = vmatprep.subr.mxu0 0.0
  %648 = vmatpush2.xpose.msra.mxu0 0.0
  %649 = vmatprep.subr.mxu0 0.0
  %650 = vmatpush2.xpose.msra.mxu0 0.0
  %651 = vmatprep.subr.mxu0 0.0
  %652 = vmatpush2.xpose.msra.mxu0 0.0
  %653 = vmatprep.subr.mxu0 0.0
  %654 = vmatpush2.xpose.msra.mxu0 0.0
  %655 = vmatprep.subr.mxu0 0.0
  %656 = vmatpush2.xpose.msra.mxu0 0.0
  %657 = vmatprep.subr.mxu0 0.0
  %658 = vmatpush2.xpose.msra.mxu0 0.0
  %659 = vmatprep.subr.mxu0 0.0
  %660 = vmatpush2.xpose.msra.mxu0 0.0
  %661 = vmatprep.subr.mxu0 0.0
  %662 = vmatpush2.xpose.msra.mxu0 0.0
  %663 = vmatprep.subr.mxu0 0.0
  %664 = vmatpush2.xpose.msra.mxu0 0.0
  %665 = vmatprep.subr.mxu0 0.0
  %666 = vmatpush2.xpose.msra.mxu0 0.0
  %667 = vmatprep.subr.mxu0 0.0
  %668 = vmatpush2.xpose.msra.mxu0 0.0
  %669 = vmatprep.subr.mxu0 0.0
  %670 = vmatpush2.xpose.msra.mxu0 0.0
  %671 = vmatprep.subr.mxu0 0.0
  %672 = vmatpush2.xpose.msra.mxu0 0.0
  %673 = vmatprep.mubr.f32.mxu0 0.0
  %674 = vmatmul.mubr.f32.gmra.mxu0 %v604
  %v675 = vpop.f32.mrf.mxu0
  %v676 = vadd.f32 0.0, %v675
  %v677 = vpop.f32.mrf.mxu0
  %678 = vmatprep.mubr.f32.mxu0 0.0
  %679 = vmatmul.mubr.f32.gmra.mxu0 %v607
  %v680 = vpop.f32.mrf.mxu0
  %v681 = vadd.f32 0.0, %v680
  %v682 = vpop.f32.mrf.mxu0
  %683 = vdwg.mxu0
  %v684 = vsel %vm171, %v676, -1e+30
  %v685 = vsel %vm172, %v681, -1e+30
  %v686 = vsel %vm273, %v684, -inf
  %687 = vmax.xlane.f32.xlu0 %v686
  %v688 = vpop.xlane.xlu0 %687
  %v689 = vsel %vm273, %v685, -inf
  %690 = vmax.xlane.f32.xlu0 %v689
  %v691 = vpop.xlane.xlu0 %690
  %v692 = vsub.f32 %v684, %v688
  %v693 = vsub.f32 %v685, %v691
  %v694 = vmul.f32 %v692, 1.442695
  %v695 = vpow.pop %v694
  %v696 = vmul.f32 %v693, 1.442695
  %v697 = vpow.pop %v696
  %v698 = vsel %vm273, %v695, 0.0
  %699 = vadd.xlane.f32.xlu0 %v698
  %v700 = vpop.xlane.xlu0 %699
  %v701 = vsel %vm273, %v697, 0.0
  %702 = vadd.xlane.f32.xlu0 %v701
  %v703 = vpop.xlane.xlu0 %702
  %v704 = vrcp.pop %v700
  %v705 = vrcp.pop %v703
  %v706 = vmul.f32 %v695, %v704
  %v707 = vmul.f32 %v697, %v705
  %709 = vrot.lane.b32.xlu0 %v600, 64
  %v710 = vpop.permute.xlu0 %709
  %v712 = vmul.f32 %v148, %v710
  %v713 = vmul.f32 %v153, %v710
  %716 = vrot.lane.b32.xlu0 %v712, 64
  %v717 = vpop.permute.xlu0 %716
  %718 = vrot.lane.b32.xlu0 %v713, 64
  %v719 = vpop.permute.xlu0 %718
  %v723 = vsel %vm273, %v706, 0
  %v726 = vsel %vm273, %v707, 0
  %728 = vmatprep.subr.mxu0 0.0
  %729 = vmatpush1.msra.mxu0 0.0
  %730 = vmatprep.subr.mxu0 0.0
  %731 = vmatpush1.msra.mxu0 0.0
  %732 = vmatprep.subr.mxu0 0.0
  %733 = vmatpush1.msra.mxu0 0.0
  %734 = vmatprep.subr.mxu0 0.0
  %735 = vmatpush1.msra.mxu0 0.0
  %736 = vmatprep.subr.mxu0 0.0
  %737 = vmatpush1.msra.mxu0 0.0
  %738 = vmatprep.subr.mxu0 0.0
  %739 = vmatpush1.msra.mxu0 0.0
  %740 = vmatprep.subr.mxu0 0.0
  %741 = vmatpush1.msra.mxu0 0.0
  %742 = vmatprep.subr.mxu0 0.0
  %743 = vmatpush1.msra.mxu0 0.0
  %744 = vmatprep.subr.mxu0 0.0
  %745 = vmatpush1.msra.mxu0 0.0
  %746 = vmatprep.subr.mxu0 0.0
  %747 = vmatpush1.msra.mxu0 0.0
  %748 = vmatprep.subr.mxu0 0.0
  %749 = vmatpush1.msra.mxu0 0.0
  %750 = vmatprep.subr.mxu0 0.0
  %751 = vmatpush1.msra.mxu0 0.0
  %752 = vmatprep.subr.mxu0 0.0
  %753 = vmatpush1.msra.mxu0 0.0
  %754 = vmatprep.subr.mxu0 0.0
  %755 = vmatpush1.msra.mxu0 0.0
  %756 = vmatprep.subr.mxu0 0.0
  %757 = vmatpush1.msra.mxu0 %v719
  %758 = vmatprep.subr.mxu0 0.0
  %759 = vmatpush1.msra.mxu0 %v717
  %760 = vmatprep.subr.mxu0 0.0
  %761 = vmatpush2.msra.mxu0 0.0
  %762 = vmatprep.subr.mxu0 0.0
  %763 = vmatpush2.msra.mxu0 0.0
  %764 = vmatprep.subr.mxu0 0.0
  %765 = vmatpush2.msra.mxu0 0.0
  %766 = vmatprep.subr.mxu0 0.0
  %767 = vmatpush2.msra.mxu0 0.0
  %768 = vmatprep.subr.mxu0 0.0
  %769 = vmatpush2.msra.mxu0 0.0
  %770 = vmatprep.subr.mxu0 0.0
  %771 = vmatpush2.msra.mxu0 0.0
  %772 = vmatprep.subr.mxu0 0.0
  %773 = vmatpush2.msra.mxu0 0.0
  %774 = vmatprep.subr.mxu0 0.0
  %775 = vmatpush2.msra.mxu0 0.0
  %776 = vmatprep.subr.mxu0 0.0
  %777 = vmatpush2.msra.mxu0 0.0
  %778 = vmatprep.subr.mxu0 0.0
  %779 = vmatpush2.msra.mxu0 0.0
  %780 = vmatprep.subr.mxu0 0.0
  %781 = vmatpush2.msra.mxu0 0.0
  %782 = vmatprep.subr.mxu0 0.0
  %783 = vmatpush2.msra.mxu0 0.0
  %784 = vmatprep.subr.mxu0 0.0
  %785 = vmatpush2.msra.mxu0 0.0
  %786 = vmatprep.subr.mxu0 0.0
  %787 = vmatpush2.msra.mxu0 0.0
  %788 = vmatprep.subr.mxu0 0.0
  %789 = vmatpush2.msra.mxu0 0.0
  %790 = vmatprep.subr.mxu0 0.0
  %791 = vmatpush2.msra.mxu0 0.0
  %792 = vmatprep.mubr.f32.mxu0 0.0
  %793 = vmatmul.mubr.f32.gmra.mxu0 %v723
  %v794 = vpop.f32.mrf.mxu0
  %v795 = vadd.f32 0.0, %v794
  %v796 = vpop.f32.mrf.mxu0
  %797 = vmatprep.mubr.f32.mxu0 0.0
  %798 = vmatmul.mubr.f32.gmra.mxu0 %v726
  %v799 = vpop.f32.mrf.mxu0
  %v800 = vadd.f32 0.0, %v799
  %v801 = vpop.f32.mrf.mxu0
  %802 = vdwg.mxu0
  %v803 = vadd.f32 %v589, %v795
  %v804 = vadd.f32 %v594, %v800
  %v805 = vlaneseq
  %v806 = vshrl.u32 %v805, 7
  %v807 = vsub.s32 3, %v806
  %v808 = vrot.slane %v173, %v807
  %v809 = vmul.f32 %v156, %v808
  %v810 = vmul.f32 %v157, %v808
  %v812 = vsel %vm74, %v809, 0
  %v815 = vsel %vm74, %v810, 0
  %817 = vmatprep.subr.mxu0 0.0
  %818 = vmatpush1.xpose.msra.mxu0 0.0
  %819 = vmatprep.subr.mxu0 0.0
  %820 = vmatpush1.xpose.msra.mxu0 0.0
  %821 = vmatprep.subr.mxu0 0.0
  %822 = vmatpush1.xpose.msra.mxu0 0.0
  %823 = vmatprep.subr.mxu0 0.0
  %824 = vmatpush1.xpose.msra.mxu0 0.0
  %825 = vmatprep.subr.mxu0 0.0
  %826 = vmatpush1.xpose.msra.mxu0 0.0
  %827 = vmatprep.subr.mxu0 0.0
  %828 = vmatpush1.xpose.msra.mxu0 0.0
  %829 = vmatprep.subr.mxu0 0.0
  %830 = vmatpush1.xpose.msra.mxu0 0.0
  %831 = vmatprep.subr.mxu0 0.0
  %832 = vmatpush1.xpose.msra.mxu0 0.0
  %833 = vmatprep.subr.mxu0 0.0
  %834 = vmatpush1.xpose.msra.mxu0 0.0
  %835 = vmatprep.subr.mxu0 0.0
  %836 = vmatpush1.xpose.msra.mxu0 0.0
  %837 = vmatprep.subr.mxu0 0.0
  %838 = vmatpush1.xpose.msra.mxu0 0.0
  %839 = vmatprep.subr.mxu0 0.0
  %840 = vmatpush1.xpose.msra.mxu0 0.0
  %841 = vmatprep.subr.mxu0 0.0
  %842 = vmatpush1.xpose.msra.mxu0 0.0
  %843 = vmatprep.subr.mxu0 0.0
  %844 = vmatpush1.xpose.msra.mxu0 0.0
  %845 = vmatprep.subr.mxu0 0.0
  %846 = vmatpush1.xpose.msra.mxu0 %v194
  %847 = vmatprep.subr.mxu0 0.0
  %848 = vmatpush1.xpose.msra.mxu0 %v192
  %849 = vmatprep.subr.mxu0 0.0
  %850 = vmatpush2.xpose.msra.mxu0 0.0
  %851 = vmatprep.subr.mxu0 0.0
  %852 = vmatpush2.xpose.msra.mxu0 0.0
  %853 = vmatprep.subr.mxu0 0.0
  %854 = vmatpush2.xpose.msra.mxu0 0.0
  %855 = vmatprep.subr.mxu0 0.0
  %856 = vmatpush2.xpose.msra.mxu0 0.0
  %857 = vmatprep.subr.mxu0 0.0
  %858 = vmatpush2.xpose.msra.mxu0 0.0
  %859 = vmatprep.subr.mxu0 0.0
  %860 = vmatpush2.xpose.msra.mxu0 0.0
  %861 = vmatprep.subr.mxu0 0.0
  %862 = vmatpush2.xpose.msra.mxu0 0.0
  %863 = vmatprep.subr.mxu0 0.0
  %864 = vmatpush2.xpose.msra.mxu0 0.0
  %865 = vmatprep.subr.mxu0 0.0
  %866 = vmatpush2.xpose.msra.mxu0 0.0
  %867 = vmatprep.subr.mxu0 0.0
  %868 = vmatpush2.xpose.msra.mxu0 0.0
  %869 = vmatprep.subr.mxu0 0.0
  %870 = vmatpush2.xpose.msra.mxu0 0.0
  %871 = vmatprep.subr.mxu0 0.0
  %872 = vmatpush2.xpose.msra.mxu0 0.0
  %873 = vmatprep.subr.mxu0 0.0
  %874 = vmatpush2.xpose.msra.mxu0 0.0
  %875 = vmatprep.subr.mxu0 0.0
  %876 = vmatpush2.xpose.msra.mxu0 0.0
  %877 = vmatprep.subr.mxu0 0.0
  %878 = vmatpush2.xpose.msra.mxu0 0.0
  %879 = vmatprep.subr.mxu0 0.0
  %880 = vmatpush2.xpose.msra.mxu0 0.0
  %881 = vmatprep.mubr.f32.mxu0 0.0
  %882 = vmatmul.mubr.f32.gmra.mxu0 %v812
  %v883 = vpop.f32.mrf.mxu0
  %v884 = vadd.f32 0.0, %v883
  %v885 = vpop.f32.mrf.mxu0
  %886 = vmatprep.mubr.f32.mxu0 0.0
  %887 = vmatmul.mubr.f32.gmra.mxu0 %v815
  %v888 = vpop.f32.mrf.mxu0
  %v889 = vadd.f32 0.0, %v888
  %v890 = vpop.f32.mrf.mxu0
  %891 = vdwg.mxu0
  %v892 = vsel %vm171, %v884, -1e+30
  %v893 = vsel %vm172, %v889, -1e+30
  %v894 = vsel %vm273, %v892, -inf
  %895 = vmax.xlane.f32.xlu0 %v894
  %v896 = vpop.xlane.xlu0 %895
  %v897 = vsel %vm273, %v893, -inf
  %898 = vmax.xlane.f32.xlu0 %v897
  %v899 = vpop.xlane.xlu0 %898
  %v900 = vsub.f32 %v892, %v896
  %v901 = vsub.f32 %v893, %v899
  %v902 = vmul.f32 %v900, 1.442695
  %v903 = vpow.pop %v902
  %v904 = vmul.f32 %v901, 1.442695
  %v905 = vpow.pop %v904
  %v906 = vsel %vm273, %v903, 0.0
  %907 = vadd.xlane.f32.xlu0 %v906
  %v908 = vpop.xlane.xlu0 %907
  %v909 = vsel %vm273, %v905, 0.0
  %910 = vadd.xlane.f32.xlu0 %v909
  %v911 = vpop.xlane.xlu0 %910
  %v912 = vrcp.pop %v908
  %v913 = vrcp.pop %v911
  %v914 = vmul.f32 %v903, %v912
  %v915 = vmul.f32 %v905, %v913
  %917 = vrot.lane.b32.xlu0 %v808, 64
  %v918 = vpop.permute.xlu0 %917
  %v920 = vmul.f32 %v148, %v918
  %v921 = vmul.f32 %v153, %v918
  %924 = vrot.lane.b32.xlu0 %v920, 64
  %v925 = vpop.permute.xlu0 %924
  %926 = vrot.lane.b32.xlu0 %v921, 64
  %v927 = vpop.permute.xlu0 %926
  %v931 = vsel %vm273, %v914, 0
  %v934 = vsel %vm273, %v915, 0
  %936 = vmatprep.subr.mxu0 0.0
  %937 = vmatpush1.msra.mxu0 0.0
  %938 = vmatprep.subr.mxu0 0.0
  %939 = vmatpush1.msra.mxu0 0.0
  %940 = vmatprep.subr.mxu0 0.0
  %941 = vmatpush1.msra.mxu0 0.0
  %942 = vmatprep.subr.mxu0 0.0
  %943 = vmatpush1.msra.mxu0 0.0
  %944 = vmatprep.subr.mxu0 0.0
  %945 = vmatpush1.msra.mxu0 0.0
  %946 = vmatprep.subr.mxu0 0.0
  %947 = vmatpush1.msra.mxu0 0.0
  %948 = vmatprep.subr.mxu0 0.0
  %949 = vmatpush1.msra.mxu0 0.0
  %950 = vmatprep.subr.mxu0 0.0
  %951 = vmatpush1.msra.mxu0 0.0
  %952 = vmatprep.subr.mxu0 0.0
  %953 = vmatpush1.msra.mxu0 0.0
  %954 = vmatprep.subr.mxu0 0.0
  %955 = vmatpush1.msra.mxu0 0.0
  %956 = vmatprep.subr.mxu0 0.0
  %957 = vmatpush1.msra.mxu0 0.0
  %958 = vmatprep.subr.mxu0 0.0
  %959 = vmatpush1.msra.mxu0 0.0
  %960 = vmatprep.subr.mxu0 0.0
  %961 = vmatpush1.msra.mxu0 0.0
  %962 = vmatprep.subr.mxu0 0.0
  %963 = vmatpush1.msra.mxu0 0.0
  %964 = vmatprep.subr.mxu0 0.0
  %965 = vmatpush1.msra.mxu0 %v927
  %966 = vmatprep.subr.mxu0 0.0
  %967 = vmatpush1.msra.mxu0 %v925
  %968 = vmatprep.subr.mxu0 0.0
  %969 = vmatpush2.msra.mxu0 0.0
  %970 = vmatprep.subr.mxu0 0.0
  %971 = vmatpush2.msra.mxu0 0.0
  %972 = vmatprep.subr.mxu0 0.0
  %973 = vmatpush2.msra.mxu0 0.0
  %974 = vmatprep.subr.mxu0 0.0
  %975 = vmatpush2.msra.mxu0 0.0
  %976 = vmatprep.subr.mxu0 0.0
  %977 = vmatpush2.msra.mxu0 0.0
  %978 = vmatprep.subr.mxu0 0.0
  %979 = vmatpush2.msra.mxu0 0.0
  %980 = vmatprep.subr.mxu0 0.0
  %981 = vmatpush2.msra.mxu0 0.0
  %982 = vmatprep.subr.mxu0 0.0
  %983 = vmatpush2.msra.mxu0 0.0
  %984 = vmatprep.subr.mxu0 0.0
  %985 = vmatpush2.msra.mxu0 0.0
  %986 = vmatprep.subr.mxu0 0.0
  %987 = vmatpush2.msra.mxu0 0.0
  %988 = vmatprep.subr.mxu0 0.0
  %989 = vmatpush2.msra.mxu0 0.0
  %990 = vmatprep.subr.mxu0 0.0
  %991 = vmatpush2.msra.mxu0 0.0
  %992 = vmatprep.subr.mxu0 0.0
  %993 = vmatpush2.msra.mxu0 0.0
  %994 = vmatprep.subr.mxu0 0.0
  %995 = vmatpush2.msra.mxu0 0.0
  %996 = vmatprep.subr.mxu0 0.0
  %997 = vmatpush2.msra.mxu0 0.0
  %998 = vmatprep.subr.mxu0 0.0
  %999 = vmatpush2.msra.mxu0 0.0
  %1000 = vmatprep.mubr.f32.mxu0 0.0
  %1001 = vmatmul.mubr.f32.gmra.mxu0 %v931
  %v1002 = vpop.f32.mrf.mxu0
  %v1003 = vadd.f32 0.0, %v1002
  %v1004 = vpop.f32.mrf.mxu0
  %1005 = vmatprep.mubr.f32.mxu0 0.0
  %1006 = vmatmul.mubr.f32.gmra.mxu0 %v934
  %v1007 = vpop.f32.mrf.mxu0
  %v1008 = vadd.f32 0.0, %v1007
  %v1009 = vpop.f32.mrf.mxu0
  %1010 = vdwg.mxu0
  %v1011 = vadd.f32 %v803, %v1003
  %v1012 = vadd.f32 %v804, %v1008
  %v1013 = vld [vmem:[%s6] sm:$0xff]
  %v1014 = vld [vmem:[%s6 + $0x8] sm:$0xff]
  %v1015 = vld [vmem:[%s6 + $0x10] sm:$0xff]
  %v1016 = vld [vmem:[%s6 + $0x18] sm:$0xff]
  %v1017 = vld [vmem:[%s7] sm:$0x1]
  %v1019 = vlaneseq
  %v1020 = vshrl.u32 %v1019, 7
  %v1021 = vsub.s32 0, %v1020
  %v1022 = vrot.slane %v1017, %v1021
  %v1025 = vsel %vm74, %v1011, 0
  %v1028 = vsel %vm74, %v1012, 0
  %1030 = vmatprep.subr.mxu0 0.0
  %1031 = vmatpush1.msra.mxu0 0.0
  %1032 = vmatprep.subr.mxu0 0.0
  %1033 = vmatpush1.msra.mxu0 0.0
  %1034 = vmatprep.subr.mxu0 0.0
  %1035 = vmatpush1.msra.mxu0 0.0
  %1036 = vmatprep.subr.mxu0 0.0
  %1037 = vmatpush1.msra.mxu0 0.0
  %1038 = vmatprep.subr.mxu0 0.0
  %1039 = vmatpush1.msra.mxu0 0.0
  %1040 = vmatprep.subr.mxu0 0.0
  %1041 = vmatpush1.msra.mxu0 0.0
  %1042 = vmatprep.subr.mxu0 0.0
  %1043 = vmatpush1.msra.mxu0 0.0
  %1044 = vmatprep.subr.mxu0 0.0
  %1045 = vmatpush1.msra.mxu0 0.0
  %1046 = vmatprep.subr.mxu0 0.0
  %1047 = vmatpush1.msra.mxu0 0.0
  %1048 = vmatprep.subr.mxu0 0.0
  %1049 = vmatpush1.msra.mxu0 0.0
  %1050 = vmatprep.subr.mxu0 0.0
  %1051 = vmatpush1.msra.mxu0 0.0
  %1052 = vmatprep.subr.mxu0 0.0
  %1053 = vmatpush1.msra.mxu0 0.0
  %1054 = vmatprep.subr.mxu0 0.0
  %1055 = vmatpush1.msra.mxu0 %v1016
  %1056 = vmatprep.subr.mxu0 0.0
  %1057 = vmatpush1.msra.mxu0 %v1015
  %1058 = vmatprep.subr.mxu0 0.0
  %1059 = vmatpush1.msra.mxu0 %v1014
  %1060 = vmatprep.subr.mxu0 0.0
  %1061 = vmatpush1.msra.mxu0 %v1013
  %1062 = vmatprep.subr.mxu0 0.0
  %1063 = vmatpush2.msra.mxu0 0.0
  %1064 = vmatprep.subr.mxu0 0.0
  %1065 = vmatpush2.msra.mxu0 0.0
  %1066 = vmatprep.subr.mxu0 0.0
  %1067 = vmatpush2.msra.mxu0 0.0
  %1068 = vmatprep.subr.mxu0 0.0
  %1069 = vmatpush2.msra.mxu0 0.0
  %1070 = vmatprep.subr.mxu0 0.0
  %1071 = vmatpush2.msra.mxu0 0.0
  %1072 = vmatprep.subr.mxu0 0.0
  %1073 = vmatpush2.msra.mxu0 0.0
  %1074 = vmatprep.subr.mxu0 0.0
  %1075 = vmatpush2.msra.mxu0 0.0
  %1076 = vmatprep.subr.mxu0 0.0
  %1077 = vmatpush2.msra.mxu0 0.0
  %1078 = vmatprep.subr.mxu0 0.0
  %1079 = vmatpush2.msra.mxu0 0.0
  %1080 = vmatprep.subr.mxu0 0.0
  %1081 = vmatpush2.msra.mxu0 0.0
  %1082 = vmatprep.subr.mxu0 0.0
  %1083 = vmatpush2.msra.mxu0 0.0
  %1084 = vmatprep.subr.mxu0 0.0
  %1085 = vmatpush2.msra.mxu0 0.0
  %1086 = vmatprep.subr.mxu0 0.0
  %1087 = vmatpush2.msra.mxu0 0.0
  %1088 = vmatprep.subr.mxu0 0.0
  %1089 = vmatpush2.msra.mxu0 0.0
  %1090 = vmatprep.subr.mxu0 0.0
  %1091 = vmatpush2.msra.mxu0 0.0
  %1092 = vmatprep.subr.mxu0 0.0
  %1093 = vmatpush2.msra.mxu0 0.0
  %1094 = vmatprep.mubr.f32.mxu0 0.0
  %1095 = vmatmul.mubr.f32.gmra.mxu0 %v1025
  %v1096 = vpop.f32.mrf.mxu0
  %v1097 = vadd.f32 %v1022, %v1096
  %v1098 = vpop.f32.mrf.mxu0
  %1099 = vmatprep.mubr.f32.mxu0 0.0
  %1100 = vmatmul.mubr.f32.gmra.mxu0 %v1028
  %v1101 = vpop.f32.mrf.mxu0
  %v1102 = vadd.f32 %v1022, %v1101
  %v1103 = vpop.f32.mrf.mxu0
  %1104 = vdwg.mxu0
  %v1105 = vadd.f32 %v61, %v1097
  %v1106 = vadd.f32 %v62, %v1102
  %v1107 = vsel %vm74, %v1105, 0.0
  %1108 = vadd.xlane.f32.xlu0 %v1107
  %v1109 = vpop.xlane.xlu0 %1108
  %v1110 = vsel %vm74, %v1106, 0.0
  %1111 = vadd.xlane.f32.xlu0 %v1110
  %v1112 = vpop.xlane.xlu0 %1111
  %v1113 = vrcp.pop 32.0
  %v1114 = vmul.f32 %v1109, %v1113
  %v1115 = vmul.f32 %v1112, %v1113
  %v1116 = vsub.f32 %v1105, %v1114
  %v1117 = vsub.f32 %v1106, %v1115
  %v1118 = vmul.f32 %v1116, %v1116
  %v1119 = vmul.f32 %v1117, %v1117
  %v1120 = vsel %vm74, %v1118, 0.0
  %1121 = vadd.xlane.f32.xlu0 %v1120
  %v1122 = vpop.xlane.xlu0 %1121
  %v1123 = vsel %vm74, %v1119, 0.0
  %1124 = vadd.xlane.f32.xlu0 %v1123
  %v1125 = vpop.xlane.xlu0 %1124
  %v1126 = vmul.f32 %v1122, %v1113
  %v1127 = vmul.f32 %v1125, %v1113
  %v1128 = vadd.f32 %v1126, 1e-05
  %v1129 = vadd.f32 %v1127, 1e-05
  %v1130 = vrsqrt.pop %v1128
  %v1131 = vrsqrt.pop %v1129
  %v1132 = vmul.f32 %v1116, %v1130
  %v1133 = vmul.f32 %v1117, %v1131
  %v1134 = vld [vmem:[%s12] sm:$0x1]
  %v1136 = vlaneseq
  %v1137 = vshrl.u32 %v1136, 7
  %v1138 = vsub.s32 0, %v1137
  %v1139 = vrot.slane %v1134, %v1138
  %v1141 = vmul.f32 %v1132, %v1139
  %v1142 = vmul.f32 %v1133, %v1139
  %v1143 = vld [vmem:[%s13] sm:$0x1]
  %v1145 = vlaneseq
  %v1146 = vshrl.u32 %v1145, 7
  %v1147 = vsub.s32 0, %v1146
  %v1148 = vrot.slane %v1143, %v1147
  %v1150 = vadd.f32 %v1141, %v1148
  %v1151 = vadd.f32 %v1142, %v1148
  %v1152 = vld [vmem:[%s8] sm:$0xff]
  %v1153 = vld [vmem:[%s8 + $0x8] sm:$0xff]
  %v1154 = vld [vmem:[%s8 + $0x10] sm:$0xff]
  %v1155 = vld [vmem:[%s8 + $0x18] sm:$0xff]
  %v1156 = vld [vmem:[%s9] sm:$0x1]
  %v1158 = vlaneseq
  %v1159 = vshrl.u32 %v1158, 7
  %v1160 = vsub.s32 0, %v1159
  %v1161 = vrot.slane %v1156, %v1160
  %v1164 = vsel %vm74, %v1150, 0
  %v1167 = vsel %vm74, %v1151, 0
  %1169 = vmatprep.subr.mxu0 0.0
  %1170 = vmatpush1.msra.mxu0 0.0
  %1171 = vmatprep.subr.mxu0 0.0
  %1172 = vmatpush1.msra.mxu0 0.0
  %1173 = vmatprep.subr.mxu0 0.0
  %1174 = vmatpush1.msra.mxu0 0.0
  %1175 = vmatprep.subr.mxu0 0.0
  %1176 = vmatpush1.msra.mxu0 0.0
  %1177 = vmatprep.subr.mxu0 0.0
  %1178 = vmatpush1.msra.mxu0 0.0
  %1179 = vmatprep.subr.mxu0 0.0
  %1180 = vmatpush1.msra.mxu0 0.0
  %1181 = vmatprep.subr.mxu0 0.0
  %1182 = vmatpush1.msra.mxu0 0.0
  %1183 = vmatprep.subr.mxu0 0.0
  %1184 = vmatpush1.msra.mxu0 0.0
  %1185 = vmatprep.subr.mxu0 0.0
  %1186 = vmatpush1.msra.mxu0 0.0
  %1187 = vmatprep.subr.mxu0 0.0
  %1188 = vmatpush1.msra.mxu0 0.0
  %1189 = vmatprep.subr.mxu0 0.0
  %1190 = vmatpush1.msra.mxu0 0.0
  %1191 = vmatprep.subr.mxu0 0.0
  %1192 = vmatpush1.msra.mxu0 0.0
  %1193 = vmatprep.subr.mxu0 0.0
  %1194 = vmatpush1.msra.mxu0 %v1155
  %1195 = vmatprep.subr.mxu0 0.0
  %1196 = vmatpush1.msra.mxu0 %v1154
  %1197 = vmatprep.subr.mxu0 0.0
  %1198 = vmatpush1.msra.mxu0 %v1153
  %1199 = vmatprep.subr.mxu0 0.0
  %1200 = vmatpush1.msra.mxu0 %v1152
  %1201 = vmatprep.subr.mxu0 0.0
  %1202 = vmatpush2.msra.mxu0 0.0
  %1203 = vmatprep.subr.mxu0 0.0
  %1204 = vmatpush2.msra.mxu0 0.0
  %1205 = vmatprep.subr.mxu0 0.0
  %1206 = vmatpush2.msra.mxu0 0.0
  %1207 = vmatprep.subr.mxu0 0.0
  %1208 = vmatpush2.msra.mxu0 0.0
  %1209 = vmatprep.subr.mxu0 0.0
  %1210 = vmatpush2.msra.mxu0 0.0
  %1211 = vmatprep.subr.mxu0 0.0
  %1212 = vmatpush2.msra.mxu0 0.0
  %1213 = vmatprep.subr.mxu0 0.0
  %1214 = vmatpush2.msra.mxu0 0.0
  %1215 = vmatprep.subr.mxu0 0.0
  %1216 = vmatpush2.msra.mxu0 0.0
  %1217 = vmatprep.subr.mxu0 0.0
  %1218 = vmatpush2.msra.mxu0 0.0
  %1219 = vmatprep.subr.mxu0 0.0
  %1220 = vmatpush2.msra.mxu0 0.0
  %1221 = vmatprep.subr.mxu0 0.0
  %1222 = vmatpush2.msra.mxu0 0.0
  %1223 = vmatprep.subr.mxu0 0.0
  %1224 = vmatpush2.msra.mxu0 0.0
  %1225 = vmatprep.subr.mxu0 0.0
  %1226 = vmatpush2.msra.mxu0 0.0
  %1227 = vmatprep.subr.mxu0 0.0
  %1228 = vmatpush2.msra.mxu0 0.0
  %1229 = vmatprep.subr.mxu0 0.0
  %1230 = vmatpush2.msra.mxu0 0.0
  %1231 = vmatprep.subr.mxu0 0.0
  %1232 = vmatpush2.msra.mxu0 0.0
  %1233 = vmatprep.mubr.f32.mxu0 0.0
  %1234 = vmatmul.mubr.f32.gmra.mxu0 %v1164
  %v1235 = vpop.f32.mrf.mxu0
  %v1236 = vadd.f32 %v1161, %v1235
  %v1237 = vpop.f32.mrf.mxu0
  %1238 = vmatprep.mubr.f32.mxu0 0.0
  %1239 = vmatmul.mubr.f32.gmra.mxu0 %v1167
  %v1240 = vpop.f32.mrf.mxu0
  %v1241 = vadd.f32 %v1161, %v1240
  %v1242 = vpop.f32.mrf.mxu0
  %1243 = vdwg.mxu0
  %v1244 = vmax.f32 %v1236, 0.0
  %v1245 = vmax.f32 %v1241, 0.0
  %v1246 = vld [vmem:[%s10] sm:$0xff]
  %v1247 = vld [vmem:[%s10 + $0x8] sm:$0xff]
  %v1248 = vld [vmem:[%s10 + $0x10] sm:$0xff]
  %v1249 = vld [vmem:[%s10 + $0x18] sm:$0xff]
  %v1250 = vld [vmem:[%s10 + $0x20] sm:$0xff]
  %v1251 = vld [vmem:[%s10 + $0x28] sm:$0xff]
  %v1252 = vld [vmem:[%s10 + $0x30] sm:$0xff]
  %v1253 = vld [vmem:[%s10 + $0x38] sm:$0xff]
  %v1254 = vld [vmem:[%s11] sm:$0x1]
  %v1256 = vlaneseq
  %v1257 = vshrl.u32 %v1256, 7
  %v1258 = vsub.s32 0, %v1257
  %v1259 = vrot.slane %v1254, %v1258
  %vm1261 = vcmask 523264
  %v1263 = vsel %vm1261, %v1244, 0
  %v1266 = vsel %vm1261, %v1245, 0
  %1268 = vmatprep.subr.mxu0 0.0
  %1269 = vmatpush1.msra.mxu0 0.0
  %1270 = vmatprep.subr.mxu0 0.0
  %1271 = vmatpush1.msra.mxu0 0.0
  %1272 = vmatprep.subr.mxu0 0.0
  %1273 = vmatpush1.msra.mxu0 0.0
  %1274 = vmatprep.subr.mxu0 0.0
  %1275 = vmatpush1.msra.mxu0 0.0
  %1276 = vmatprep.subr.mxu0 0.0
  %1277 = vmatpush1.msra.mxu0 0.0
  %1278 = vmatprep.subr.mxu0 0.0
  %1279 = vmatpush1.msra.mxu0 0.0
  %1280 = vmatprep.subr.mxu0 0.0
  %1281 = vmatpush1.msra.mxu0 0.0
  %1282 = vmatprep.subr.mxu0 0.0
  %1283 = vmatpush1.msra.mxu0 0.0
  %1284 = vmatprep.subr.mxu0 0.0
  %1285 = vmatpush1.msra.mxu0 %v1253
  %1286 = vmatprep.subr.mxu0 0.0
  %1287 = vmatpush1.msra.mxu0 %v1252
  %1288 = vmatprep.subr.mxu0 0.0
  %1289 = vmatpush1.msra.mxu0 %v1251
  %1290 = vmatprep.subr.mxu0 0.0
  %1291 = vmatpush1.msra.mxu0 %v1250
  %1292 = vmatprep.subr.mxu0 0.0
  %1293 = vmatpush1.msra.mxu0 %v1249
  %1294 = vmatprep.subr.mxu0 0.0
  %1295 = vmatpush1.msra.mxu0 %v1248
  %1296 = vmatprep.subr.mxu0 0.0
  %1297 = vmatpush1.msra.mxu0 %v1247
  %1298 = vmatprep.subr.mxu0 0.0
  %1299 = vmatpush1.msra.mxu0 %v1246
  %1300 = vmatprep.subr.mxu0 0.0
  %1301 = vmatpush2.msra.mxu0 0.0
  %1302 = vmatprep.subr.mxu0 0.0
  %1303 = vmatpush2.msra.mxu0 0.0
  %1304 = vmatprep.subr.mxu0 0.0
  %1305 = vmatpush2.msra.mxu0 0.0
  %1306 = vmatprep.subr.mxu0 0.0
  %1307 = vmatpush2.msra.mxu0 0.0
  %1308 = vmatprep.subr.mxu0 0.0
  %1309 = vmatpush2.msra.mxu0 0.0
  %1310 = vmatprep.subr.mxu0 0.0
  %1311 = vmatpush2.msra.mxu0 0.0
  %1312 = vmatprep.subr.mxu0 0.0
  %1313 = vmatpush2.msra.mxu0 0.0
  %1314 = vmatprep.subr.mxu0 0.0
  %1315 = vmatpush2.msra.mxu0 0.0
  %1316 = vmatprep.subr.mxu0 0.0
  %1317 = vmatpush2.msra.mxu0 0.0
  %1318 = vmatprep.subr.mxu0 0.0
  %1319 = vmatpush2.msra.mxu0 0.0
  %1320 = vmatprep.subr.mxu0 0.0
  %1321 = vmatpush2.msra.mxu0 0.0
  %1322 = vmatprep.subr.mxu0 0.0
  %1323 = vmatpush2.msra.mxu0 0.0
  %1324 = vmatprep.subr.mxu0 0.0
  %1325 = vmatpush2.msra.mxu0 0.0
  %1326 = vmatprep.subr.mxu0 0.0
  %1327 = vmatpush2.msra.mxu0 0.0
  %1328 = vmatprep.subr.mxu0 0.0
  %1329 = vmatpush2.msra.mxu0 0.0
  %1330 = vmatprep.subr.mxu0 0.0
  %1331 = vmatpush2.msra.mxu0 0.0
  %1332 = vmatprep.mubr.f32.mxu0 0.0
  %1333 = vmatmul.mubr.f32.gmra.mxu0 %v1263
  %v1334 = vpop.f32.mrf.mxu0
  %v1335 = vadd.f32 %v1259, %v1334
  %v1336 = vpop.f32.mrf.mxu0
  %1337 = vmatprep.mubr.f32.mxu0 0.0
  %1338 = vmatmul.mubr.f32.gmra.mxu0 %v1266
  %v1339 = vpop.f32.mrf.mxu0
  %v1340 = vadd.f32 %v1259, %v1339
  %v1341 = vpop.f32.mrf.mxu0
  %1342 = vdwg.mxu0
  %v1343 = vadd.f32 %v1150, %v1335
  %v1344 = vadd.f32 %v1151, %v1340
  %v1345 = vsel %vm74, %v1343, 0.0
  %1346 = vadd.xlane.f32.xlu0 %v1345
  %v1347 = vpop.xlane.xlu0 %1346
  %v1348 = vsel %vm74, %v1344, 0.0
  %1349 = vadd.xlane.f32.xlu0 %v1348
  %v1350 = vpop.xlane.xlu0 %1349
  %v1351 = vmul.f32 %v1347, %v1113
  %v1352 = vmul.f32 %v1350, %v1113
  %v1353 = vsub.f32 %v1343, %v1351
  %v1354 = vsub.f32 %v1344, %v1352
  %v1355 = vmul.f32 %v1353, %v1353
  %v1356 = vmul.f32 %v1354, %v1354
  %v1357 = vsel %vm74, %v1355, 0.0
  %1358 = vadd.xlane.f32.xlu0 %v1357
  %v1359 = vpop.xlane.xlu0 %1358
  %v1360 = vsel %vm74, %v1356, 0.0
  %1361 = vadd.xlane.f32.xlu0 %v1360
  %v1362 = vpop.xlane.xlu0 %1361
  %v1363 = vmul.f32 %v1359, %v1113
  %v1364 = vmul.f32 %v1362, %v1113
  %v1365 = vadd.f32 %v1363, 1e-05
  %v1366 = vadd.f32 %v1364, 1e-05
  %v1367 = vrsqrt.pop %v1365
  %v1368 = vrsqrt.pop %v1366
  %v1369 = vmul.f32 %v1353, %v1367
  %v1370 = vmul.f32 %v1354, %v1368
  %v1371 = vld [vmem:[%s14] sm:$0x1]
  %v1373 = vlaneseq
  %v1374 = vshrl.u32 %v1373, 7
  %v1375 = vsub.s32 0, %v1374
  %v1376 = vrot.slane %v1371, %v1375
  %v1378 = vmul.f32 %v1369, %v1376
  %v1379 = vmul.f32 %v1370, %v1376
  %v1380 = vld [vmem:[%s15] sm:$0x1]
  %v1382 = vlaneseq
  %v1383 = vshrl.u32 %v1382, 7
  %v1384 = vsub.s32 0, %v1383
  %v1385 = vrot.slane %v1380, %v1384
  %v1387 = vadd.f32 %v1378, %v1385
  %v1388 = vadd.f32 %v1379, %v1385
  %1389 = vst.msk [vmem:[%s18] sm:$0xff] %vm74, %v1387
  %1390 = vst.msk [vmem:[%s18 + $0x8] sm:$0xff] %vm74, %v1388
  %v1391 = vld [vmem:[%s16] sm:$0xff]
  %v1392 = vld [vmem:[%s16 + $0x8] sm:$0xff]
  %v1393 = vld [vmem:[%s16 + $0x10] sm:$0xff]
  %v1394 = vld [vmem:[%s16 + $0x18] sm:$0xff]
  %v1395 = vld [vmem:[%s17] sm:$0x1]
  %v1397 = vlaneseq
  %v1398 = vshrl.u32 %v1397, 7
  %v1399 = vsub.s32 0, %v1398
  %v1400 = vrot.slane %v1395, %v1399
  %v1403 = vsel %vm74, %v1387, 0
  %v1406 = vsel %vm74, %v1388, 0
  %1408 = vmatprep.subr.mxu0 0.0
  %1409 = vmatpush1.msra.mxu0 0.0
  %1410 = vmatprep.subr.mxu0 0.0
  %1411 = vmatpush1.msra.mxu0 0.0
  %1412 = vmatprep.subr.mxu0 0.0
  %1413 = vmatpush1.msra.mxu0 0.0
  %1414 = vmatprep.subr.mxu0 0.0
  %1415 = vmatpush1.msra.mxu0 0.0
  %1416 = vmatprep.subr.mxu0 0.0
  %1417 = vmatpush1.msra.mxu0 0.0
  %1418 = vmatprep.subr.mxu0 0.0
  %1419 = vmatpush1.msra.mxu0 0.0
  %1420 = vmatprep.subr.mxu0 0.0
  %1421 = vmatpush1.msra.mxu0 0.0
  %1422 = vmatprep.subr.mxu0 0.0
  %1423 = vmatpush1.msra.mxu0 0.0
  %1424 = vmatprep.subr.mxu0 0.0
  %1425 = vmatpush1.msra.mxu0 0.0
  %1426 = vmatprep.subr.mxu0 0.0
  %1427 = vmatpush1.msra.mxu0 0.0
  %1428 = vmatprep.subr.mxu0 0.0
  %1429 = vmatpush1.msra.mxu0 0.0
  %1430 = vmatprep.subr.mxu0 0.0
  %1431 = vmatpush1.msra.mxu0 0.0
  %1432 = vmatprep.subr.mxu0 0.0
  %1433 = vmatpush1.msra.mxu0 %v1394
  %1434 = vmatprep.subr.mxu0 0.0
  %1435 = vmatpush1.msra.mxu0 %v1393
  %1436 = vmatprep.subr.mxu0 0.0
  %1437 = vmatpush1.msra.mxu0 %v1392
  %1438 = vmatprep.subr.mxu0 0.0
  %1439 = vmatpush1.msra.mxu0 %v1391
  %1440 = vmatprep.subr.mxu0 0.0
  %1441 = vmatpush2.msra.mxu0 0.0
  %1442 = vmatprep.subr.mxu0 0.0
  %1443 = vmatpush2.msra.mxu0 0.0
  %1444 = vmatprep.subr.mxu0 0.0
  %1445 = vmatpush2.msra.mxu0 0.0
  %1446 = vmatprep.subr.mxu0 0.0
  %1447 = vmatpush2.msra.mxu0 0.0
  %1448 = vmatprep.subr.mxu0 0.0
  %1449 = vmatpush2.msra.mxu0 0.0
  %1450 = vmatprep.subr.mxu0 0.0
  %1451 = vmatpush2.msra.mxu0 0.0
  %1452 = vmatprep.subr.mxu0 0.0
  %1453 = vmatpush2.msra.mxu0 0.0
  %1454 = vmatprep.subr.mxu0 0.0
  %1455 = vmatpush2.msra.mxu0 0.0
  %1456 = vmatprep.subr.mxu0 0.0
  %1457 = vmatpush2.msra.mxu0 0.0
  %1458 = vmatprep.subr.mxu0 0.0
  %1459 = vmatpush2.msra.mxu0 0.0
  %1460 = vmatprep.subr.mxu0 0.0
  %1461 = vmatpush2.msra.mxu0 0.0
  %1462 = vmatprep.subr.mxu0 0.0
  %1463 = vmatpush2.msra.mxu0 0.0
  %1464 = vmatprep.subr.mxu0 0.0
  %1465 = vmatpush2.msra.mxu0 0.0
  %1466 = vmatprep.subr.mxu0 0.0
  %1467 = vmatpush2.msra.mxu0 0.0
  %1468 = vmatprep.subr.mxu0 0.0
  %1469 = vmatpush2.msra.mxu0 0.0
  %1470 = vmatprep.subr.mxu0 0.0
  %1471 = vmatpush2.msra.mxu0 0.0
  %1472 = vmatprep.mubr.f32.mxu0 0.0
  %1473 = vmatmul.mubr.f32.gmra.mxu0 %v1403
  %v1474 = vpop.f32.mrf.mxu0
  %v1475 = vadd.f32 %v1400, %v1474
  %v1476 = vpop.f32.mrf.mxu0
  %1477 = vmatprep.mubr.f32.mxu0 0.0
  %1478 = vmatmul.mubr.f32.gmra.mxu0 %v1406
  %v1479 = vpop.f32.mrf.mxu0
  %v1480 = vadd.f32 %v1400, %v1479
  %v1481 = vpop.f32.mrf.mxu0
  %1482 = vdwg.mxu0
  %1483 = vst.msk [vmem:[%s19] sm:$0xff] %vm74, %v1475
  %1484 = vst.msk [vmem:[%s19 + $0x8] sm:$0xff] %vm74, %v1480
  // Predicated region
  $region74: #{attention_forward.3} parent=0 // pred_check
    _
  $region75: #{attention_forward.3} parent=0 // pred_check_branch
    %1486 = sbr.rel (0) target = $region77
  $region76: #{attention_forward.3} parent=0 // pred_region
    _
  $region77: #{attention_forward.3} parent=0 // pred_fallthru
    _
  // Predicated region
  $region78: #{attention_forward.3} parent=0 // pred_check
    _
  $region79: #{attention_forward.3} parent=0 // pred_check_branch
    %1488 = sbr.rel (0) target = $region81
  $region80: #{attention_forward.3} parent=0 // pred_region
    _
  $region81: #{attention_forward.3} parent=0 // pred_fallthru
    _
  // Predicated region
  $region82: #{attention_forward.3} parent=0 // pred_check
    _
  $region83: #{attention_forward.3} parent=0 // pred_check_branch
    %1490 = sbr.rel (0) target = $region85
  $region84: #{attention_forward.3} parent=0 // pred_region
    _
  $region85: #{attention_forward.3} parent=0 // pred_fallthru
    _
  // Predicated region
  $region86: #{attention_forward.3} parent=0 // pred_check
    _
  $region87: #{attention_forward.3} parent=0 // pred_check_branch
    %1492 = sbr.rel (0) target = $region89
  $region88: #{attention_forward.3} parent=0 // pred_region
    _
  $region89: #{attention_forward.3} parent=0 // pred_fallthru
    _

// kernel: attention_forward.5
$region0: #{attention_forward.5}
  #allocation0 [shape = 'u32[]', space=smem, size = 0x4, offset = 0x4, fixed_abs, tag = 'smem constant byte address 0x4 - core index']
  #allocation1 [shape = 'u32[144,128]{1,0:T(1,128)}', space=vmem, size = 0x12000, scoped, tag = 'internal scratch']
  #allocation2 [shape = 'f32[2,32]{1,0:T(2,128)}', space=vmem, size = 0x400, scoped, tag = 'scratch operand']
  #allocation3 [shape = 'f32[2,32]{1,0:T(2,128)}', space=vmem, size = 0x400, scoped, tag = 'scratch operand']
  #allocation4 [shape = 'f32[2,32]{1,0:T(2,128)}', space=vmem, size = 0x400, scoped, tag = 'scratch operand']
  #allocation5 [shape = 'f32[2,32]{1,0:T(2,128)}', space=vmem, size = 0x400, scoped, tag = 'scratch operand']
  #allocation6 [shape = 'f32[2,32]{1,0:T(2,128)}', space=vmem, size = 0x400, scoped, tag = 'scratch operand']
  #allocation7 [shape = 'f32[2,32]{1,0:T(2,128)}', space=vmem, size = 0x400, scoped, tag = 'scratch operand']
  %s0 = inlined_call_operand.vmem [shape: f32[5,2,32], index: 0, kind: input, shape index: {}]
  %s1 = inlined_call_operand.vmem [shape: f32[2,32], index: 1, kind: input, shape index: {}]
  %s2 = inlined_call_operand.vmem [shape: f32[2,32], index: 2, kind: input, shape index: {}]
  %s3 = inlined_call_operand.vmem [shape: f32[2,8,32], index: 3, kind: input, shape index: {}]
  %s4 = inlined_call_operand.vmem [shape: f32[2,2,8,32], index: 4, kind: input, shape index: {}]
  %s5 = inlined_call_operand.vmem [shape: f32[2,8,32], index: 5, kind: input, shape index: {}]
  %s6 = inlined_call_operand.vmem [shape: f32[2,2,8,32], index: 6, kind: input, shape index: {}]
  %s7 = inlined_call_operand.vmem [shape: f32[32,128], index: 7, kind: input, shape index: {}]
  %s8 = inlined_call_operand.vmem [shape: f32[32,128], index: 8, kind: input, shape index: {}]
  %s9 = inlined_call_operand.vmem [shape: f32[1,128], index: 9, kind: input, shape index: {}]
  %s10 = inlined_call_operand.vmem [shape: f32[32,128], index: 10, kind: input, shape index: {}]
  %s11 = inlined_call_operand.vmem [shape: f32[32,128], index: 11, kind: input, shape index: {}]
  %s12 = inlined_call_operand.vmem [shape: f32[32,128], index: 12, kind: input, shape index: {}]
  %s13 = inlined_call_operand.vmem [shape: f32[1,128], index: 13, kind: input, shape index: {}]
  %s14 = inlined_call_operand.vmem [shape: f32[32,16], index: 14, kind: input, shape index: {}]
  %s15 = inlined_call_operand.vmem [shape: f32[32,16], index: 15, kind: input, shape index: {}]
  %s16 = inlined_call_operand.vmem [shape: f32[1,16], index: 16, kind: input, shape index: {}]
  %s17 = inlined_call_operand.hbm [shape: f32[5,2,16], index: 17, kind: output, shape index: {}]
  %s18 = sld [smem:[#allocation0]]
  $region105: #{attention_forward.5} parent=0
    _
  %s20 = ssub.s32 1, %s18
  %s21 = scalar_select 0, %s20, %s18
  $region1: #{attention_forward.5} parent=0
    #allocation8 [shape = 'u8[2048]{0}', space=vmem, size = 0x800, scoped, tag = 'output window, operand 0']
    #allocation9 [shape = 's32[2]{0}', space=sflag, size = 0x8, scoped, tag = 'scoped memory for attention_forward.5']
    %22 = vsyncpa [#allocation9], 0
    %s23 = scalar_lea.sflag [#allocation9], 1
    %24 = vsyncpa %s23, 0
    loop: start=0, step=1, limit=7
    $region2: #{attention_forward.5} parent=1 // loop_pre_header
      _
    $region3: #{attention_forward.5} parent=1 // loop_header
      %s26 = sphi 0, %s30
      %p27 = scmp.ge.s32.totalorder %s26, 7
      %s36 = sphi 0, %s38
      %s39 = sphi 0, %s36
      %s40 = sphi 0, %s39
      %s56 = sphi 0, %s40
      %s60 = sphi 0, %s60
      %s62 = sphi 0, %s60
      %s63 = sphi 0, %s62
      %s77 = sphi 0, %s63
      %s81 = sphi 0, %s81
      %s83 = sphi 0, %s81
      %s84 = sphi 0, %s83
      %s98 = sphi 0, %s84
      %s102 = sphi 0, %s102
      %s104 = sphi 0, %s102
      %s105 = sphi 0, %s104
      %s119 = sphi 0, %s105
      %s123 = sphi 0, %s123
      %s125 = sphi 0, %s123
      %s126 = sphi 0, %s125
      %s140 = sphi 0, %s126
      %s144 = sphi 0, %s144
      %s146 = sphi 0, %s144
      %s147 = sphi 0, %s146
      %s161 = sphi 0, %s147
      %s165 = sphi 0, %s165
      %s167 = sphi 0, %s165
      %s168 = sphi 0, %s167
      %s182 = sphi 0, %s168
      %s186 = sphi 0, %s186
      %s188 = sphi 0, %s186
      %s189 = sphi 0, %s188
      %s203 = sphi 0, %s189
      %s207 = sphi 0, %s207
      %s209 = sphi 0, %s207
      %s210 = sphi 0, %s209
      %s224 = sphi 0, %s210
      %s228 = sphi 0, %s228
      %s230 = sphi 0, %s228
      %s231 = sphi 0, %s230
      %s245 = sphi 0, %s231
      %s249 = sphi 0, %s249
      %s251 = sphi 0, %s249
      %s252 = sphi 0, %s251
      %s266 = sphi 0, %s252
      %s270 = sphi 0, %s270
      %s272 = sphi 0, %s270
      %s273 = sphi 0, %s272
      %s287 = sphi 0, %s273
      %s291 = sphi 0, %s291
      %s293 = sphi 0, %s291
      %s294 = sphi 0, %s293
      %s308 = sphi 0, %s294
      %s312 = sphi 0, %s312
      %s314 = sphi 0, %s312
      %s315 = sphi 0, %s314
      %s329 = sphi 0, %s315
      %s333 = sphi 0, %s333
      %s335 = sphi 0, %s333
      %s336 = sphi 0, %s335
      %s350 = sphi 0, %s336
      %s354 = sphi 0, %s354
      %s356 = sphi 0, %s354
      %s357 = sphi 0, %s356
      %s371 = sphi 0, %s357
      %s375 = sphi 0, %s375
      %s377 = sphi 0, %s375
      %s378 = sphi 0, %s377
      %s392 = sphi 0, %s378
      %s398 = sphi 0, %s400
      %s401 = sphi 0, %s398
      %s402 = sphi 0, %s401
      %s418 = sphi 0, %s402
    $region4: #{attention_forward.5} parent=1 // loop_header_branch
      %29 = sbr.rel (%p27) target = $region8
    $region5: #{attention_forward.5} parent=1 // loop_body
      %s31 = ssub.s32 %s26, 1
      %s32 = ssub.s32 %s26, 2
      %s33 = sadd.s32 %s26, 1
      %s34 = ssub.s32 %s26, %s33
      %p35 = scmp.eq.s32.totalorder %s34, 0
      %s37 = sadd.s32 %s36, 1
      %s38 = scalar_select %p35, %s36, %s37
      %p41 = pneg %p35
      %p42 = scmp.eq.s32.totalorder %s26, 4
      %p43 = por %p41, %p42
      %p44 = scmp.ne.s32.totalorder %s36, %s39
      %p45 = scmp.eq.s32.totalorder %s26, 0
      %p46 = por %p44, %p45
      %p47 = scmp.ne.s32.totalorder %s36, %s39
      %p48 = scmp.eq.s32.totalorder %s31, 4
      %p49 = por %p47, %p48
      %p50 = scmp.ne.s32.totalorder %s39, %s40
      %p51 = scmp.eq.s32.totalorder %s31, 0
      %p52 = por %p50, %p51
      %p53 = scmp.ne.s32.totalorder %s39, %s40
      %p54 = scmp.eq.s32.totalorder %s32, 4
      %p55 = por %p53, %p54
      %p57 = scmp.ne.s32.totalorder %s40, %s56
      %p58 = scmp.eq.s32.totalorder %s32, 0
      %p59 = por %p57, %p58
      %s61 = sadd.s32 %s60, 1
      %p64 = scmp.eq.s32.totalorder %s26, 4
      %p65 = scmp.ne.s32.totalorder %s60, %s62
      %p66 = scmp.eq.s32.totalorder %s26, 0
      %p67 = por %p65, %p66
      %p68 = scmp.ne.s32.totalorder %s60, %s62
      %p69 = scmp.eq.s32.totalorder %s31, 4
      %p70 = por %p68, %p69
      %p71 = scmp.ne.s32.totalorder %s62, %s63
      %p72 = scmp.eq.s32.totalorder %s31, 0
      %p73 = por %p71, %p72
      %p74 = scmp.ne.s32.totalorder %s62, %s63
      %p75 = scmp.eq.s32.totalorder %s32, 4
      %p76 = por %p74, %p75
      %p78 = scmp.ne.s32.totalorder %s63, %s77
      %p79 = scmp.eq.s32.totalorder %s32, 0
      %p80 = por %p78, %p79
      %s82 = sadd.s32 %s81, 1
      %p85 = scmp.eq.s32.totalorder %s26, 4
      %p86 = scmp.ne.s32.totalorder %s81, %s83
      %p87 = scmp.eq.s32.totalorder %s26, 0
      %p88 = por %p86, %p87
      %p89 = scmp.ne.s32.totalorder %s81, %s83
      %p90 = scmp.eq.s32.totalorder %s31, 4
      %p91 = por %p89, %p90
      %p92 = scmp.ne.s32.totalorder %s83, %s84
      %p93 = scmp.eq.s32.totalorder %s31, 0
      %p94 = por %p92, %p93
      %p95 = scmp.ne.s32.totalorder %s83, %s84
      %p96 = scmp.eq.s32.totalorder %s32, 4
      %p97 = por %p95, %p96
      %p99 = scmp.ne.s32.totalorder %s84, %s98
      %p100 = scmp.eq.s32.totalorder %s32, 0
      %p101 = por %p99, %p100
      %s103 = sadd.s32 %s102, 1
      %p106 = scmp.eq.s32.totalorder %s26, 4
      %p107 = scmp.ne.s32.totalorder %s102, %s104
      %p108 = scmp.eq.s32.totalorder %s26, 0
      %p109 = por %p107, %p108
      %p110 = scmp.ne.s32.totalorder %s102, %s104
      %p111 = scmp.eq.s32.totalorder %s31, 4
      %p112 = por %p110, %p111
      %p113 = scmp.ne.s32.totalorder %s104, %s105
      %p114 = scmp.eq.s32.totalorder %s31, 0
      %p115 = por %p113, %p114
      %p116 = scmp.ne.s32.totalorder %s104, %s105
      %p117 = scmp.eq.s32.totalorder %s32, 4
      %p118 = por %p116, %p117
      %p120 = scmp.ne.s32.totalorder %s105, %s119
      %p121 = scmp.eq.s32.totalorder %s32, 0
      %p122 = por %p120, %p121
      %s124 = sadd.s32 %s123, 1
      %p127 = scmp.eq.s32.totalorder %s26, 4
      %p128 = scmp.ne.s32.totalorder %s123, %s125
      %p129 = scmp.eq.s32.totalorder %s26, 0
      %p130 = por %p128, %p129
      %p131 = scmp.ne.s32.totalorder %s123, %s125
      %p132 = scmp.eq.s32.totalorder %s31, 4
      %p133 = por %p131, %p132
      %p134 = scmp.ne.s32.totalorder %s125, %s126
      %p135 = scmp.eq.s32.totalorder %s31, 0
      %p136 = por %p134, %p135
      %p137 = scmp.ne.s32.totalorder %s125, %s126
      %p138 = scmp.eq.s32.totalorder %s32, 4
      %p139 = por %p137, %p138
      %p141 = scmp.ne.s32.totalorder %s126, %s140
      %p142 = scmp.eq.s32.totalorder %s32, 0
      %p143 = por %p141, %p142
      %s145 = sadd.s32 %s144, 1
      %p148 = scmp.eq.s32.totalorder %s26, 4
      %p149 = scmp.ne.s32.totalorder %s144, %s146
      %p150 = scmp.eq.s32.totalorder %s26, 0
      %p151 = por %p149, %p150
      %p152 = scmp.ne.s32.totalorder %s144, %s146
      %p153 = scmp.eq.s32.totalorder %s31, 4
      %p154 = por %p152, %p153
      %p155 = scmp.ne.s32.totalorder %s146, %s147
      %p156 = scmp.eq.s32.totalorder %s31, 0
      %p157 = por %p155, %p156
      %p158 = scmp.ne.s32.totalorder %s146, %s147
      %p159 = scmp.eq.s32.totalorder %s32, 4
      %p160 = por %p158, %p159
      %p162 = scmp.ne.s32.totalorder %s147, %s161
      %p163 = scmp.eq.s32.totalorder %s32, 0
      %p164 = por %p162, %p163
      %s166 = sadd.s32 %s165, 1
      %p169 = scmp.eq.s32.totalorder %s26, 4
      %p170 = scmp.ne.s32.totalorder %s165, %s167
      %p171 = scmp.eq.s32.totalorder %s26, 0
      %p172 = por %p170, %p171
      %p173 = scmp.ne.s32.totalorder %s165, %s167
      %p174 = scmp.eq.s32.totalorder %s31, 4
      %p175 = por %p173, %p174
      %p176 = scmp.ne.s32.totalorder %s167, %s168
      %p177 = scmp.eq.s32.totalorder %s31, 0
      %p178 = por %p176, %p177
      %p179 = scmp.ne.s32.totalorder %s167, %s168
      %p180 = scmp.eq.s32.totalorder %s32, 4
      %p181 = por %p179, %p180
      %p183 = scmp.ne.s32.totalorder %s168, %s182
      %p184 = scmp.eq.s32.totalorder %s32, 0
      %p185 = por %p183, %p184
      %s187 = sadd.s32 %s186, 1
      %p190 = scmp.eq.s32.totalorder %s26, 4
      %p191 = scmp.ne.s32.totalorder %s186, %s188
      %p192 = scmp.eq.s32.totalorder %s26, 0
      %p193 = por %p191, %p192
      %p194 = scmp.ne.s32.totalorder %s186, %s188
      %p195 = scmp.eq.s32.totalorder %s31, 4
      %p196 = por %p194, %p195
      %p197 = scmp.ne.s32.totalorder %s188, %s189
      %p198 = scmp.eq.s32.totalorder %s31, 0
      %p199 = por %p197, %p198
      %p200 = scmp.ne.s32.totalorder %s188, %s189
      %p201 = scmp.eq.s32.totalorder %s32, 4
      %p202 = por %p200, %p201
      %p204 = scmp.ne.s32.totalorder %s189, %s203
      %p205 = scmp.eq.s32.totalorder %s32, 0
      %p206 = por %p204, %p205
      %s208 = sadd.s32 %s207, 1
      %p211 = scmp.eq.s32.totalorder %s26, 4
      %p212 = scmp.ne.s32.totalorder %s207, %s209
      %p213 = scmp.eq.s32.totalorder %s26, 0
      %p214 = por %p212, %p213
      %p215 = scmp.ne.s32.totalorder %s207, %s209
      %p216 = scmp.eq.s32.totalorder %s31, 4
      %p217 = por %p215, %p216
      %p218 = scmp.ne.s32.totalorder %s209, %s210
      %p219 = scmp.eq.s32.totalorder %s31, 0
      %p220 = por %p218, %p219
      %p221 = scmp.ne.s32.totalorder %s209, %s210
      %p222 = scmp.eq.s32.totalorder %s32, 4
      %p223 = por %p221, %p222
      %p225 = scmp.ne.s32.totalorder %s210, %s224
      %p226 = scmp.eq.s32.totalorder %s32, 0
      %p227 = por %p225, %p226
      %s229 = sadd.s32 %s228, 1
      %p232 = scmp.eq.s32.totalorder %s26, 4
      %p233 = scmp.ne.s32.totalorder %s228, %s230
      %p234 = scmp.eq.s32.totalorder %s26, 0
      %p235 = por %p233, %p234
      %p236 = scmp.ne.s32.totalorder %s228, %s230
      %p237 = scmp.eq.s32.totalorder %s31, 4
      %p238 = por %p236, %p237
      %p239 = scmp.ne.s32.totalorder %s230, %s231
      %p240 = scmp.eq.s32.totalorder %s31, 0
      %p241 = por %p239, %p240
      %p242 = scmp.ne.s32.totalorder %s230, %s231
      %p243 = scmp.eq.s32.totalorder %s32, 4
      %p244 = por %p242, %p243
      %p246 = scmp.ne.s32.totalorder %s231, %s245
      %p247 = scmp.eq.s32.totalorder %s32, 0
      %p248 = por %p246, %p247
      %s250 = sadd.s32 %s249, 1
      %p253 = scmp.eq.s32.totalorder %s26, 4
      %p254 = scmp.ne.s32.totalorder %s249, %s251
      %p255 = scmp.eq.s32.totalorder %s26, 0
      %p256 = por %p254, %p255
      %p257 = scmp.ne.s32.totalorder %s249, %s251
      %p258 = scmp.eq.s32.totalorder %s31, 4
      %p259 = por %p257, %p258
      %p260 = scmp.ne.s32.totalorder %s251, %s252
      %p261 = scmp.eq.s32.totalorder %s31, 0
      %p262 = por %p260, %p261
      %p263 = scmp.ne.s32.totalorder %s251, %s252
      %p264 = scmp.eq.s32.totalorder %s32, 4
      %p265 = por %p263, %p264
      %p267 = scmp.ne.s32.totalorder %s252, %s266
      %p268 = scmp.eq.s32.totalorder %s32, 0
      %p269 = por %p267, %p268
      %s271 = sadd.s32 %s270, 1
      %p274 = scmp.eq.s32.totalorder %s26, 4
      %p275 = scmp.ne.s32.totalorder %s270, %s272
      %p276 = scmp.eq.s32.totalorder %s26, 0
      %p277 = por %p275, %p276
      %p278 = scmp.ne.s32.totalorder %s270, %s272
      %p279 = scmp.eq.s32.totalorder %s31, 4
      %p280 = por %p278, %p279
      %p281 = scmp.ne.s32.totalorder %s272, %s273
      %p282 = scmp.eq.s32.totalorder %s31, 0
      %p283 = por %p281, %p282
      %p284 = scmp.ne.s32.totalorder %s272, %s273
      %p285 = scmp.eq.s32.totalorder %s32, 4
      %p286 = por %p284, %p285
      %p288 = scmp.ne.s32.totalorder %s273, %s287
      %p289 = scmp.eq.s32.totalorder %s32, 0
      %p290 = por %p288, %p289
      %s292 = sadd.s32 %s291, 1
      %p295 = scmp.eq.s32.totalorder %s26, 4
      %p296 = scmp.ne.s32.totalorder %s291, %s293
      %p297 = scmp.eq.s32.totalorder %s26, 0
      %p298 = por %p296, %p297
      %p299 = scmp.ne.s32.totalorder %s291, %s293
      %p300 = scmp.eq.s32.totalorder %s31, 4
      %p301 = por %p299, %p300
      %p302 = scmp.ne.s32.totalorder %s293, %s294
      %p303 = scmp.eq.s32.totalorder %s31, 0
      %p304 = por %p302, %p303
      %p305 = scmp.ne.s32.totalorder %s293, %s294
      %p306 = scmp.eq.s32.totalorder %s32, 4
      %p307 = por %p305, %p306
      %p309 = scmp.ne.s32.totalorder %s294, %s308
      %p310 = scmp.eq.s32.totalorder %s32, 0
      %p311 = por %p309, %p310
      %s313 = sadd.s32 %s312, 1
      %p316 = scmp.eq.s32.totalorder %s26, 4
      %p317 = scmp.ne.s32.totalorder %s312, %s314
      %p318 = scmp.eq.s32.totalorder %s26, 0
      %p319 = por %p317, %p318
      %p320 = scmp.ne.s32.totalorder %s312, %s314
      %p321 = scmp.eq.s32.totalorder %s31, 4
      %p322 = por %p320, %p321
      %p323 = scmp.ne.s32.totalorder %s314, %s315
      %p324 = scmp.eq.s32.totalorder %s31, 0
      %p325 = por %p323, %p324
      %p326 = scmp.ne.s32.totalorder %s314, %s315
      %p327 = scmp.eq.s32.totalorder %s32, 4
      %p328 = por %p326, %p327
      %p330 = scmp.ne.s32.totalorder %s315, %s329
      %p331 = scmp.eq.s32.totalorder %s32, 0
      %p332 = por %p330, %p331
      %s334 = sadd.s32 %s333, 1
      %p337 = scmp.eq.s32.totalorder %s26, 4
      %p338 = scmp.ne.s32.totalorder %s333, %s335
      %p339 = scmp.eq.s32.totalorder %s26, 0
      %p340 = por %p338, %p339
      %p341 = scmp.ne.s32.totalorder %s333, %s335
      %p342 = scmp.eq.s32.totalorder %s31, 4
      %p343 = por %p341, %p342
      %p344 = scmp.ne.s32.totalorder %s335, %s336
      %p345 = scmp.eq.s32.totalorder %s31, 0
      %p346 = por %p344, %p345
      %p347 = scmp.ne.s32.totalorder %s335, %s336
      %p348 = scmp.eq.s32.totalorder %s32, 4
      %p349 = por %p347, %p348
      %p351 = scmp.ne.s32.totalorder %s336, %s350
      %p352 = scmp.eq.s32.totalorder %s32, 0
      %p353 = por %p351, %p352
      %s355 = sadd.s32 %s354, 1
      %p358 = scmp.eq.s32.totalorder %s26, 4
      %p359 = scmp.ne.s32.totalorder %s354, %s356
      %p360 = scmp.eq.s32.totalorder %s26, 0
      %p361 = por %p359, %p360
      %p362 = scmp.ne.s32.totalorder %s354, %s356
      %p363 = scmp.eq.s32.totalorder %s31, 4
      %p364 = por %p362, %p363
      %p365 = scmp.ne.s32.totalorder %s356, %s357
      %p366 = scmp.eq.s32.totalorder %s31, 0
      %p367 = por %p365, %p366
      %p368 = scmp.ne.s32.totalorder %s356, %s357
      %p369 = scmp.eq.s32.totalorder %s32, 4
      %p370 = por %p368, %p369
      %p372 = scmp.ne.s32.totalorder %s357, %s371
      %p373 = scmp.eq.s32.totalorder %s32, 0
      %p374 = por %p372, %p373
      %s376 = sadd.s32 %s375, 1
      %p379 = scmp.eq.s32.totalorder %s26, 4
      %p380 = scmp.ne.s32.totalorder %s375, %s377
      %p381 = scmp.eq.s32.totalorder %s26, 0
      %p382 = por %p380, %p381
      %p383 = scmp.ne.s32.totalorder %s375, %s377
      %p384 = scmp.eq.s32.totalorder %s31, 4
      %p385 = por %p383, %p384
      %p386 = scmp.ne.s32.totalorder %s377, %s378
      %p387 = scmp.eq.s32.totalorder %s31, 0
      %p388 = por %p386, %p387
      %p389 = scmp.ne.s32.totalorder %s377, %s378
      %p390 = scmp.eq.s32.totalorder %s32, 4
      %p391 = por %p389, %p390
      %p393 = scmp.ne.s32.totalorder %s378, %s392
      %p394 = scmp.eq.s32.totalorder %s32, 0
      %p395 = por %p393, %p394
      %s396 = ssub.s32 %s26, %s33
      %p397 = scmp.eq.s32.totalorder %s396, 0
      %s399 = sadd.s32 %s398, 1
      %s400 = scalar_select %p397, %s398, %s399
      %p403 = pneg %p397
      %p404 = scmp.eq.s32.totalorder %s26, 4
      %p405 = por %p403, %p404
      %p406 = scmp.ne.s32.totalorder %s398, %s401
      %p407 = scmp.eq.s32.totalorder %s26, 0
      %p408 = por %p406, %p407
      %p409 = scmp.ne.s32.totalorder %s398, %s401
      %p410 = scmp.eq.s32.totalorder %s31, 4
      %p411 = por %p409, %p410
      %p412 = scmp.ne.s32.totalorder %s401, %s402
      %p413 = scmp.eq.s32.totalorder %s31, 0
      %p414 = por %p412, %p413
      %p415 = scmp.ne.s32.totalorder %s401, %s402
      %p416 = scmp.eq.s32.totalorder %s32, 4
      %p417 = por %p415, %p416
      %p419 = scmp.ne.s32.totalorder %s402, %s418
      %p420 = scmp.eq.s32.totalorder %s32, 0
      %p421 = por %p419, %p420
      %p422 = scmp.le.s32.totalorder 1, %s26
      %p423 = scmp.lt.s32.totalorder %s26, 6
      %p424 = pnand %p422, %p423
      %p425 = pneg %p424
      // Predicated region
      $region9: #{attention_forward.5} parent=5 // pred_check
        _
      $region10: #{attention_forward.5} parent=5 // pred_check_branch
        %427 = sbr.rel (%p424) target = $region12
      $region11: #{attention_forward.5} parent=5 // pred_region
        %s428 = ssub.s32 %s26, 1
        // Predicated region
        $region13: #{attention_forward.5} parent=11 // pred_check
          %p429 = pneg %p73
        $region14: #{attention_forward.5} parent=11 // pred_check_branch
          %431 = sbr.rel (%p429) target = $region16
        $region15: #{attention_forward.5} parent=11 // pred_region
          _
        $region16: #{attention_forward.5} parent=11 // pred_fallthru
          _
        // Predicated region
        $region17: #{attention_forward.5} parent=11 // pred_check
          %p432 = pneg %p94
        $region18: #{attention_forward.5} parent=11 // pred_check_branch
          %434 = sbr.rel (%p432) target = $region20
        $region19: #{attention_forward.5} parent=11 // pred_region
          _
        $region20: #{attention_forward.5} parent=11 // pred_fallthru
          _
        // Predicated region
        $region21: #{attention_forward.5} parent=11 // pred_check
          %p435 = pneg %p115
        $region22: #{attention_forward.5} parent=11 // pred_check_branch
          %437 = sbr.rel (%p435) target = $region24
        $region23: #{attention_forward.5} parent=11 // pred_region
          _
        $region24: #{attention_forward.5} parent=11 // pred_fallthru
          _
        // Predicated region
        $region25: #{attention_forward.5} parent=11 // pred_check
          %p438 = pneg %p136
        $region26: #{attention_forward.5} parent=11 // pred_check_branch
          %440 = sbr.rel (%p438) target = $region28
        $region27: #{attention_forward.5} parent=11 // pred_region
          _
        $region28: #{attention_forward.5} parent=11 // pred_fallthru
          _
        // Predicated region
        $region29: #{attention_forward.5} parent=11 // pred_check
          %p441 = pneg %p157
        $region30: #{attention_forward.5} parent=11 // pred_check_branch
          %443 = sbr.rel (%p441) target = $region32
        $region31: #{attention_forward.5} parent=11 // pred_region
          _
        $region32: #{attention_forward.5} parent=11 // pred_fallthru
          _
        // Predicated region
        $region33: #{attention_forward.5} parent=11 // pred_check
          %p444 = pneg %p178
        $region34: #{attention_forward.5} parent=11 // pred_check_branch
          %446 = sbr.rel (%p444) target = $region36
        $region35: #{attention_forward.5} parent=11 // pred_region
          _
        $region36: #{attention_forward.5} parent=11 // pred_fallthru
          _
        // Predicated region
        $region37: #{attention_forward.5} parent=11 // pred_check
          %p447 = pneg %p199
        $region38: #{attention_forward.5} parent=11 // pred_check_branch
          %449 = sbr.rel (%p447) target = $region40
        $region39: #{attention_forward.5} parent=11 // pred_region
          _
        $region40: #{attention_forward.5} parent=11 // pred_fallthru
          _
        // Predicated region
        $region41: #{attention_forward.5} parent=11 // pred_check
          %p450 = pneg %p220
        $region42: #{attention_forward.5} parent=11 // pred_check_branch
          %452 = sbr.rel (%p450) target = $region44
        $region43: #{attention_forward.5} parent=11 // pred_region
          _
        $region44: #{attention_forward.5} parent=11 // pred_fallthru
          _
        // Predicated region
        $region45: #{attention_forward.5} parent=11 // pred_check
          %p453 = pneg %p241
        $region46: #{attention_forward.5} parent=11 // pred_check_branch
          %455 = sbr.rel (%p453) target = $region48
        $region47: #{attention_forward.5} parent=11 // pred_region
          _
        $region48: #{attention_forward.5} parent=11 // pred_fallthru
          _
        // Predicated region
        $region49: #{attention_forward.5} parent=11 // pred_check
          %p456 = pneg %p262
        $region50: #{attention_forward.5} parent=11 // pred_check_branch
          %458 = sbr.rel (%p456) target = $region52
        $region51: #{attention_forward.5} parent=11 // pred_region
          _
        $region52: #{attention_forward.5} parent=11 // pred_fallthru
          _
        // Predicated region
        $region53: #{attention_forward.5} parent=11 // pred_check
          %p459 = pneg %p283
        $region54: #{attention_forward.5} parent=11 // pred_check_branch
          %461 = sbr.rel (%p459) target = $region56
        $region55: #{attention_forward.5} parent=11 // pred_region
          _
        $region56: #{attention_forward.5} parent=11 // pred_fallthru
          _
        // Predicated region
        $region57: #{attention_forward.5} parent=11 // pred_check
          %p462 = pneg %p304
        $region58: #{attention_forward.5} parent=11 // pred_check_branch
          %464 = sbr.rel (%p462) target = $region60
        $region59: #{attention_forward.5} parent=11 // pred_region
          _
        $region60: #{attention_forward.5} parent=11 // pred_fallthru
          _
        // Predicated region
        $region61: #{attention_forward.5} parent=11 // pred_check
          %p465 = pneg %p325
        $region62: #{attention_forward.5} parent=11 // pred_check_branch
          %467 = sbr.rel (%p465) target = $region64
        $region63: #{attention_forward.5} parent=11 // pred_region
          _
        $region64: #{attention_forward.5} parent=11 // pred_fallthru
          _
        // Predicated region
        $region65: #{attention_forward.5} parent=11 // pred_check
          %p468 = pneg %p346
        $region66: #{attention_forward.5} parent=11 // pred_check_branch
          %470 = sbr.rel (%p468) target = $region68
        $region67: #{attention_forward.5} parent=11 // pred_region
          _
        $region68: #{attention_forward.5} parent=11 // pred_fallthru
          _
        // Predicated region
        $region69: #{attention_forward.5} parent=11 // pred_check
          %p471 = pneg %p367
        $region70: #{attention_forward.5} parent=11 // pred_check_branch
          %473 = sbr.rel (%p471) target = $region72
        $region71: #{attention_forward.5} parent=11 // pred_region
          _
        $region72: #{attention_forward.5} parent=11 // pred_fallthru
          _
        // Predicated region
        $region73: #{attention_forward.5} parent=11 // pred_check
          %p474 = pneg %p388
        $region74: #{attention_forward.5} parent=11 // pred_check_branch
          %476 = sbr.rel (%p474) target = $region76
        $region75: #{attention_forward.5} parent=11 // pred_region
          _
        $region76: #{attention_forward.5} parent=11 // pred_fallthru
          _
      $region12: #{attention_forward.5} parent=5 // pred_fallthru
        _
      %p477 = scmp.lt.s32.totalorder %s26, 5
      // Predicated region
      $region77: #{attention_forward.5} parent=5 // pred_check
        %p478 = pneg %p477
      $region78: #{attention_forward.5} parent=5 // pred_check_branch
        %480 = sbr.rel (%p478) target = $region80
      $region79: #{attention_forward.5} parent=5 // pred_region
        // Predicated region
        $region81: #{attention_forward.5} parent=79 // pred_check
          %p481 = pneg %p46
        $region82: #{attention_forward.5} parent=79 // pred_check_branch
          %483 = sbr.rel (%p481) target = $region84
        $region83: #{attention_forward.5} parent=79 // pred_region
          %p484 = scmp.lt.s32.totalorder %s26, 4
          %s485 = scalar_select %p484, %s26, 4
          %s486 = smul.addr %s485, 2
          %s487 = scalar_lea.vmem %s0, %s486
        $region84: #{attention_forward.5} parent=79 // pred_fallthru
          _
      $region80: #{attention_forward.5} parent=5 // pred_fallthru
        _
      %p488 = scmp.le.s32.totalorder 1, %s26
      %p489 = scmp.lt.s32.totalorder %s26, 6
      %p490 = pnand %p488, %p489
      %p491 = pneg %p490
      // Predicated region
      $region85: #{attention_forward.5} parent=5 // pred_check
        _
      $region86: #{attention_forward.5} parent=5 // pred_check_branch
        %493 = sbr.rel (%p490) target = $region88
      $region87: #{attention_forward.5} parent=5 // pred_region
        %s494 = ssub.s32 %s26, 1
        %p495 = scmp.lt.s32.totalorder %s31, 4
        %s496 = scalar_select %p495, %s31, 4
        %s497 = smul.addr %s496, 2
        %s498 = scalar_lea.vmem %s0, %s497
        %p499 = pneg %p52
        %p500 = pneg %p49
        %p501 = pneg %p73
        %p502 = pneg %p70
        %p503 = pneg %p94
        %p504 = pneg %p91
        %p505 = pneg %p115
        %p506 = pneg %p112
        %p507 = pneg %p136
        %p508 = pneg %p133
        %p509 = pneg %p157
        %p510 = pneg %p154
        %p511 = pneg %p178
        %p512 = pneg %p175
        %p513 = pneg %p199
        %p514 = pneg %p196
        %p515 = pneg %p220
        %p516 = pneg %p217
        %p517 = pneg %p241
        %p518 = pneg %p238
        %p519 = pneg %p262
        %p520 = pneg %p259
        %p521 = pneg %p283
        %p522 = pneg %p280
        %p523 = pneg %p304
        %p524 = pneg %p301
        %p525 = pneg %p325
        %p526 = pneg %p322
        %p527 = pneg %p346
        %p528 = pneg %p343
        %p529 = pneg %p367
        %p530 = pneg %p364
        %p531 = pneg %p388
        %p532 = pneg %p385
        %p533 = pneg %p414
        %p534 = pneg %p411
        %s535 = sand.u32 %s401, 1
        %s536 = scalar_lea.sflag [#allocation9], %s535
        %s537 = sand.u32 %s401, 1
        %s538 = smul.addr %s537, 2
        %s539 = scalar_lea.vmem [#allocation8], %s538
        %p540 = scmp.lt.s32.totalorder %s31, 4
        %s541 = scalar_select %p540, %s31, 4
        %s542 = smul.addr %s541, 2
        %s543 = scalar_lea.vmem %s0, %s542
        %p544 = scmp.eq.s32.totalorder %s31, 0
        // Predicated region
        $region89: #{attention_forward.5} parent=87 // pred_check
          %p545 = pneg %p544
        $region90: #{attention_forward.5} parent=87 // pred_check_branch
          %547 = sbr.rel (%p545) target = $region92
        $region91: #{attention_forward.5} parent=87 // pred_region
          %v548 = vld [vmem:[%s1] sm:$0x3]
          %vm549 = vcmask 254976
          %550 = vst.msk [vmem:[#allocation2] sm:$0x3] %vm549, %v548
          %v551 = vld [vmem:[%s2] sm:$0x3]
          %552 = vst.msk [vmem:[#allocation3] sm:$0x3] %vm549, %v551
          %v553 = vld [vmem:[%s1] sm:$0x3]
          %554 = vst.msk [vmem:[#allocation4] sm:$0x3] %vm549, %v553
          %v555 = vld [vmem:[%s2] sm:$0x3]
          %556 = vst.msk [vmem:[#allocation5] sm:$0x3] %vm549, %v555
        $region92: #{attention_forward.5} parent=87 // pred_fallthru
          _
        %v557 = vld [vmem:[%s543] sm:$0x3]
        %v558 = vld [vmem:[%s7] sm:$0xff]
        %v559 = vld [vmem:[%s7 + $0x8] sm:$0xff]
        %v560 = vld [vmem:[%s7 + $0x10] sm:$0xff]
        %v561 = vld [vmem:[%s7 + $0x18] sm:$0xff]
        %v562 = vld [vmem:[#allocation2] sm:$0x3]
        %v563 = vld [vmem:[%s8] sm:$0xff]
        %v564 = vld [vmem:[%s8 + $0x8] sm:$0xff]
        %v565 = vld [vmem:[%s8 + $0x10] sm:$0xff]
        %v566 = vld [vmem:[%s8 + $0x18] sm:$0xff]
        %vm567 = vcmask 261120
        %v569 = vsel %vm567, %v562, 0
        %571 = vmatprep.subr.mxu0 0.0
        %572 = vmatpush1.msra.mxu0 0.0
        %573 = vmatprep.subr.mxu0 0.0
        %574 = vmatpush1.msra.mxu0 0.0
        %575 = vmatprep.subr.mxu0 0.0
        %576 = vmatpush1.msra.mxu0 0.0
        %577 = vmatprep.subr.mxu0 0.0
        %578 = vmatpush1.msra.mxu0 0.0
        %579 = vmatprep.subr.mxu0 0.0
        %580 = vmatpush1.msra.mxu0 0.0
        %581 = vmatprep.subr.mxu0 0.0
        %582 = vmatpush1.msra.mxu0 0.0
        %583 = vmatprep.subr.mxu0 0.0
        %584 = vmatpush1.msra.mxu0 0.0
        %585 = vmatprep.subr.mxu0 0.0
        %586 = vmatpush1.msra.mxu0 0.0
        %587 = vmatprep.subr.mxu0 0.0
        %588 = vmatpush1.msra.mxu0 0.0
        %589 = vmatprep.subr.mxu0 0.0
        %590 = vmatpush1.msra.mxu0 0.0
        %591 = vmatprep.subr.mxu0 0.0
        %592 = vmatpush1.msra.mxu0 0.0
        %593 = vmatprep.subr.mxu0 0.0
        %594 = vmatpush1.msra.mxu0 0.0
        %595 = vmatprep.subr.mxu0 0.0
        %596 = vmatpush1.msra.mxu0 %v566
        %597 = vmatprep.subr.mxu0 0.0
        %598 = vmatpush1.msra.mxu0 %v565
        %599 = vmatprep.subr.mxu0 0.0
        %600 = vmatpush1.msra.mxu0 %v564
        %601 = vmatprep.subr.mxu0 0.0
        %602 = vmatpush1.msra.mxu0 %v563
        %603 = vmatprep.subr.mxu0 0.0
        %604 = vmatpush2.msra.mxu0 0.0
        %605 = vmatprep.subr.mxu0 0.0
        %606 = vmatpush2.msra.mxu0 0.0
        %607 = vmatprep.subr.mxu0 0.0
        %608 = vmatpush2.msra.mxu0 0.0
        %609 = vmatprep.subr.mxu0 0.0
        %610 = vmatpush2.msra.mxu0 0.0
        %611 = vmatprep.subr.mxu0 0.0
        %612 = vmatpush2.msra.mxu0 0.0
        %613 = vmatprep.subr.mxu0 0.0
        %614 = vmatpush2.msra.mxu0 0.0
        %615 = vmatprep.subr.mxu0 0.0
        %616 = vmatpush2.msra.mxu0 0.0
        %617 = vmatprep.subr.mxu0 0.0
        %618 = vmatpush2.msra.mxu0 0.0
        %619 = vmatprep.subr.mxu0 0.0
        %620 = vmatpush2.msra.mxu0 0.0
        %621 = vmatprep.subr.mxu0 0.0
        %622 = vmatpush2.msra.mxu0 0.0
        %623 = vmatprep.subr.mxu0 0.0
        %624 = vmatpush2.msra.mxu0 0.0
        %625 = vmatprep.subr.mxu0 0.0
        %626 = vmatpush2.msra.mxu0 0.0
        %627 = vmatprep.subr.mxu0 0.0
        %628 = vmatpush2.msra.mxu0 0.0
        %629 = vmatprep.subr.mxu0 0.0
        %630 = vmatpush2.msra.mxu0 0.0
        %631 = vmatprep.subr.mxu0 0.0
        %632 = vmatpush2.msra.mxu0 0.0
        %633 = vmatprep.subr.mxu0 0.0
        %634 = vmatpush2.msra.mxu0 0.0
        %635 = vmatprep.mubr.f32.mxu0 0.0
        %636 = vmatmul.mubr.f32.gmra.mxu0 %v569
        %v637 = vpop.f32.mrf.mxu0
        %v638 = vadd.f32 0.0, %v637
        %v639 = vpop.f32.mrf.mxu0
        %640 = vdwg.mxu0
        %v642 = vsel %vm567, %v557, 0
        %644 = vmatprep.subr.mxu0 0.0
        %645 = vmatpush1.msra.mxu0 0.0
        %646 = vmatprep.subr.mxu0 0.0
        %647 = vmatpush1.msra.mxu0 0.0
        %648 = vmatprep.subr.mxu0 0.0
        %649 = vmatpush1.msra.mxu0 0.0
        %650 = vmatprep.subr.mxu0 0.0
        %651 = vmatpush1.msra.mxu0 0.0
        %652 = vmatprep.subr.mxu0 0.0
        %653 = vmatpush1.msra.mxu0 0.0
        %654 = vmatprep.subr.mxu0 0.0
        %655 = vmatpush1.msra.mxu0 0.0
        %656 = vmatprep.subr.mxu0 0.0
        %657 = vmatpush1.msra.mxu0 0.0
        %658 = vmatprep.subr.mxu0 0.0
        %659 = vmatpush1.msra.mxu0 0.0
        %660 = vmatprep.subr.mxu0 0.0
        %661 = vmatpush1.msra.mxu0 0.0
        %662 = vmatprep.subr.mxu0 0.0
        %663 = vmatpush1.msra.mxu0 0.0
        %664 = vmatprep.subr.mxu0 0.0
        %665 = vmatpush1.msra.mxu0 0.0
        %666 = vmatprep.subr.mxu0 0.0
        %667 = vmatpush1.msra.mxu0 0.0
        %668 = vmatprep.subr.mxu0 0.0
        %669 = vmatpush1.msra.mxu0 %v561
        %670 = vmatprep.subr.mxu0 0.0
        %671 = vmatpush1.msra.mxu0 %v560
        %672 = vmatprep.subr.mxu0 0.0
        %673 = vmatpush1.msra.mxu0 %v559
        %674 = vmatprep.subr.mxu0 0.0
        %675 = vmatpush1.msra.mxu0 %v558
        %676 = vmatprep.subr.mxu0 0.0
        %677 = vmatpush2.msra.mxu0 0.0
        %678 = vmatprep.subr.mxu0 0.0
        %679 = vmatpush2.msra.mxu0 0.0
        %680 = vmatprep.subr.mxu0 0.0
        %681 = vmatpush2.msra.mxu0 0.0
        %682 = vmatprep.subr.mxu0 0.0
        %683 = vmatpush2.msra.mxu0 0.0
        %684 = vmatprep.subr.mxu0 0.0
        %685 = vmatpush2.msra.mxu0 0.0
        %686 = vmatprep.subr.mxu0 0.0
        %687 = vmatpush2.msra.mxu0 0.0
        %688 = vmatprep.subr.mxu0 0.0
        %689 = vmatpush2.msra.mxu0 0.0
        %690 = vmatprep.subr.mxu0 0.0
        %691 = vmatpush2.msra.mxu0 0.0
        %692 = vmatprep.subr.mxu0 0.0
        %693 = vmatpush2.msra.mxu0 0.0
        %694 = vmatprep.subr.mxu0 0.0
        %695 = vmatpush2.msra.mxu0 0.0
        %696 = vmatprep.subr.mxu0 0.0
        %697 = vmatpush2.msra.mxu0 0.0
        %698 = vmatprep.subr.mxu0 0.0
        %699 = vmatpush2.msra.mxu0 0.0
        %700 = vmatprep.subr.mxu0 0.0
        %701 = vmatpush2.msra.mxu0 0.0
        %702 = vmatprep.subr.mxu0 0.0
        %703 = vmatpush2.msra.mxu0 0.0
        %704 = vmatprep.subr.mxu0 0.0
        %705 = vmatpush2.msra.mxu0 0.0
        %706 = vmatprep.subr.mxu0 0.0
        %707 = vmatpush2.msra.mxu0 0.0
        %708 = vmatprep.mubr.f32.mxu0 0.0
        %709 = vmatmul.mubr.f32.gmra.mxu0 %v642
        %v710 = vpop.f32.mrf.mxu0
        %v711 = vadd.f32 %v638, %v710
        %v712 = vpop.f32.mrf.mxu0
        %713 = vdwg.mxu0
        %v714 = vld [vmem:[%s9] sm:$0x1]
        %v716 = vlaneseq
        %v717 = vshrl.u32 %v716, 7
        %v718 = vsub.s32 0, %v717
        %v719 = vrot.slane %v714, %v718
        %v721 = vadd.f32 %v711, %v719
        %v722 = vld [vmem:[#allocation3] sm:$0x3]
        %v723 = vxor.u32 %v721, 2147483648
        %v724 = vmul.f32 %v723, 1.442695
        %v725 = vpow.pop %v724
        %v726 = vadd.f32 %v725, 1.0
        %v727 = vrcp.pop %v726
        %v728 = vmul.f32 1.0, %v727
        %v729 = vtanh.pop %v721
        %731 = vrot.lane.b32.xlu0 %v722, 32
        %v732 = vpop.permute.xlu0 %731
        %v734 = vmul.f32 %v728, %v732
        %736 = vrot.lane.b32.xlu0 %v729, 64
        %v737 = vpop.permute.xlu0 %736
        %v739 = vmul.f32 %v728, %v737
        %741 = vrot.lane.b32.xlu0 %v739, 32
        %v742 = vpop.permute.xlu0 %741
        %v744 = vadd.f32 %v734, %v742
        %v745 = vtanh.pop %v744
        %747 = vrot.lane.b32.xlu0 %v745, 64
        %v748 = vpop.permute.xlu0 %747
        %v750 = vmul.f32 %v728, %v748
        %752 = vrot.lane.b32.xlu0 %v750, 32
        %v753 = vpop.permute.xlu0 %752
        %vm755 = vcmask 254976
        %756 = vst.msk [vmem:[#allocation2] sm:$0x3] %vm755, %v753
        %758 = vrot.lane.b32.xlu0 %v744, 96
        %v759 = vpop.permute.xlu0 %758
        %761 = vst.msk [vmem:[#allocation3] sm:$0x3] %vm755, %v759
        %v762 = vld [vmem:[%s3] sm:$0xff]
        %v763 = vsel %vm567, %v753, 0
        %v766 = vsel %vm567, %v762, 0
        %768 = vmatprep.subr.mxu0 0.0
        %769 = vmatpush1.xpose.msra.mxu0 0.0
        %770 = vmatprep.subr.mxu0 0.0
        %771 = vmatpush1.xpose.msra.mxu0 0.0
        %772 = vmatprep.subr.mxu0 0.0
        %773 = vmatpush1.xpose.msra.mxu0 0.0
        %774 = vmatprep.subr.mxu0 0.0
        %775 = vmatpush1.xpose.msra.mxu0 0.0
        %776 = vmatprep.subr.mxu0 0.0
        %777 = vmatpush1.xpose.msra.mxu0 0.0
        %778 = vmatprep.subr.mxu0 0.0
        %779 = vmatpush1.xpose.msra.mxu0 0.0
        %780 = vmatprep.subr.mxu0 0.0
        %781 = vmatpush1.xpose.msra.mxu0 0.0
        %782 = vmatprep.subr.mxu0 0.0
        %783 = vmatpush1.xpose.msra.mxu0 0.0
        %784 = vmatprep.subr.mxu0 0.0
        %785 = vmatpush1.xpose.msra.mxu0 0.0
        %786 = vmatprep.subr.mxu0 0.0
        %787 = vmatpush1.xpose.msra.mxu0 0.0
        %788 = vmatprep.subr.mxu0 0.0
        %789 = vmatpush1.xpose.msra.mxu0 0.0
        %790 = vmatprep.subr.mxu0 0.0
        %791 = vmatpush1.xpose.msra.mxu0 0.0
        %792 = vmatprep.subr.mxu0 0.0
        %793 = vmatpush1.xpose.msra.mxu0 0.0
        %794 = vmatprep.subr.mxu0 0.0
        %795 = vmatpush1.xpose.msra.mxu0 0.0
        %796 = vmatprep.subr.mxu0 0.0
        %797 = vmatpush1.xpose.msra.mxu0 0.0
        %798 = vmatprep.subr.mxu0 0.0
        %799 = vmatpush1.xpose.msra.mxu0 %v766
        %800 = vmatprep.subr.mxu0 0.0
        %801 = vmatpush2.xpose.msra.mxu0 0.0
        %802 = vmatprep.subr.mxu0 0.0
        %803 = vmatpush2.xpose.msra.mxu0 0.0
        %804 = vmatprep.subr.mxu0 0.0
        %805 = vmatpush2.xpose.msra.mxu0 0.0
        %806 = vmatprep.subr.mxu0 0.0
        %807 = vmatpush2.xpose.msra.mxu0 0.0
        %808 = vmatprep.subr.mxu0 0.0
        %809 = vmatpush2.xpose.msra.mxu0 0.0
        %810 = vmatprep.subr.mxu0 0.0
        %811 = vmatpush2.xpose.msra.mxu0 0.0
        %812 = vmatprep.subr.mxu0 0.0
        %813 = vmatpush2.xpose.msra.mxu0 0.0
        %814 = vmatprep.subr.mxu0 0.0
        %815 = vmatpush2.xpose.msra.mxu0 0.0
        %816 = vmatprep.subr.mxu0 0.0
        %817 = vmatpush2.xpose.msra.mxu0 0.0
        %818 = vmatprep.subr.mxu0 0.0
        %819 = vmatpush2.xpose.msra.mxu0 0.0
        %820 = vmatprep.subr.mxu0 0.0
        %821 = vmatpush2.xpose.msra.mxu0 0.0
        %822 = vmatprep.subr.mxu0 0.0
        %823 = vmatpush2.xpose.msra.mxu0 0.0
        %824 = vmatprep.subr.mxu0 0.0
        %825 = vmatpush2.xpose.msra.mxu0 0.0
        %826 = vmatprep.subr.mxu0 0.0
        %827 = vmatpush2.xpose.msra.mxu0 0.0
        %828 = vmatprep.subr.mxu0 0.0
        %829 = vmatpush2.xpose.msra.mxu0 0.0
        %830 = vmatprep.subr.mxu0 0.0
        %831 = vmatpush2.xpose.msra.mxu0 0.0
        %832 = vmatprep.mubr.f32.mxu0 0.0
        %833 = vmatmul.mubr.f32.gmra.mxu0 %v763
        %v834 = vpop.f32.mrf.mxu0
        %v835 = vadd.f32 0.0, %v834
        %v836 = vpop.f32.mrf.mxu0
        %837 = vdwg.mxu0
        %vm838 = vcmask 57344
        %v839 = vsel %vm838, %v835, -inf
        %840 = vmax.xlane.f32.xlu0 %v839
        %v841 = vpop.xlane.xlu0 %840
        %v842 = vsub.f32 %v835, %v841
        %v843 = vmul.f32 %v842, 1.442695
        %v844 = vpow.pop %v843
        %v845 = vsel %vm838, %v844, 0.0
        %846 = vadd.xlane.f32.xlu0 %v845
        %v847 = vpop.xlane.xlu0 %846
        %v848 = vrcp.pop %v847
        %v849 = vmul.f32 %v844, %v848
        %v850 = vld [vmem:[%s4] sm:$0xff]
        %s851 = scalar_lea.vmem %s4, 8
        %v852 = vld [vmem:[%s851] sm:$0xff]
        %s853 = scalar_lea.vmem %s3, 8
        %v854 = vld [vmem:[%s853] sm:$0xff]
        %v855 = vrot.slane %v750, 1
        %856 = vrot.lane.b32.xlu0 %v855, 32
        %v857 = vpop.permute.xlu0 %856
        %v858 = vsel %vm567, %v857, 0
        %v861 = vsel %vm567, %v854, 0
        %863 = vmatprep.subr.mxu0 0.0
        %864 = vmatpush1.xpose.msra.mxu0 0.0
        %865 = vmatprep.subr.mxu0 0.0
        %866 = vmatpush1.xpose.msra.mxu0 0.0
        %867 = vmatprep.subr.mxu0 0.0
        %868 = vmatpush1.xpose.msra.mxu0 0.0
        %869 = vmatprep.subr.mxu0 0.0
        %870 = vmatpush1.xpose.msra.mxu0 0.0
        %871 = vmatprep.subr.mxu0 0.0
        %872 = vmatpush1.xpose.msra.mxu0 0.0
        %873 = vmatprep.subr.mxu0 0.0
        %874 = vmatpush1.xpose.msra.mxu0 0.0
        %875 = vmatprep.subr.mxu0 0.0
        %876 = vmatpush1.xpose.msra.mxu0 0.0
        %877 = vmatprep.subr.mxu0 0.0
        %878 = vmatpush1.xpose.msra.mxu0 0.0
        %879 = vmatprep.subr.mxu0 0.0
        %880 = vmatpush1.xpose.msra.mxu0 0.0
        %881 = vmatprep.subr.mxu0 0.0
        %882 = vmatpush1.xpose.msra.mxu0 0.0
        %883 = vmatprep.subr.mxu0 0.0
        %884 = vmatpush1.xpose.msra.mxu0 0.0
        %885 = vmatprep.subr.mxu0 0.0
        %886 = vmatpush1.xpose.msra.mxu0 0.0
        %887 = vmatprep.subr.mxu0 0.0
        %888 = vmatpush1.xpose.msra.mxu0 0.0
        %889 = vmatprep.subr.mxu0 0.0
        %890 = vmatpush1.xpose.msra.mxu0 0.0
        %891 = vmatprep.subr.mxu0 0.0
        %892 = vmatpush1.xpose.msra.mxu0 0.0
        %893 = vmatprep.subr.mxu0 0.0
        %894 = vmatpush1.xpose.msra.mxu0 %v861
        %895 = vmatprep.subr.mxu0 0.0
        %896 = vmatpush2.xpose.msra.mxu0 0.0
        %897 = vmatprep.subr.mxu0 0.0
        %898 = vmatpush2.xpose.msra.mxu0 0.0
        %899 = vmatprep.subr.mxu0 0.0
        %900 = vmatpush2.xpose.msra.mxu0 0.0
        %901 = vmatprep.subr.mxu0 0.0
        %902 = vmatpush2.xpose.msra.mxu0 0.0
        %903 = vmatprep.subr.mxu0 0.0
        %904 = vmatpush2.xpose.msra.mxu0 0.0
        %905 = vmatprep.subr.mxu0 0.0
        %906 = vmatpush2.xpose.msra.mxu0 0.0
        %907 = vmatprep.subr.mxu0 0.0
        %908 = vmatpush2.xpose.msra.mxu0 0.0
        %909 = vmatprep.subr.mxu0 0.0
        %910 = vmatpush2.xpose.msra.mxu0 0.0
        %911 = vmatprep.subr.mxu0 0.0
        %912 = vmatpush2.xpose.msra.mxu0 0.0
        %913 = vmatprep.subr.mxu0 0.0
        %914 = vmatpush2.xpose.msra.mxu0 0.0
        %915 = vmatprep.subr.mxu0 0.0
        %916 = vmatpush2.xpose.msra.mxu0 0.0
        %917 = vmatprep.subr.mxu0 0.0
        %918 = vmatpush2.xpose.msra.mxu0 0.0
        %919 = vmatprep.subr.mxu0 0.0
        %920 = vmatpush2.xpose.msra.mxu0 0.0
        %921 = vmatprep.subr.mxu0 0.0
        %922 = vmatpush2.xpose.msra.mxu0 0.0
        %923 = vmatprep.subr.mxu0 0.0
        %924 = vmatpush2.xpose.msra.mxu0 0.0
        %925 = vmatprep.subr.mxu0 0.0
        %926 = vmatpush2.xpose.msra.mxu0 0.0
        %927 = vmatprep.mubr.f32.mxu0 0.0
        %928 = vmatmul.mubr.f32.gmra.mxu0 %v858
        %v929 = vpop.f32.mrf.mxu0
        %v930 = vadd.f32 0.0, %v929
        %v931 = vpop.f32.mrf.mxu0
        %932 = vdwg.mxu0
        %v933 = vsel %vm838, %v930, -inf
        %934 = vmax.xlane.f32.xlu0 %v933
        %v935 = vpop.xlane.xlu0 %934
        %v936 = vsub.f32 %v930, %v935
        %v937 = vmul.f32 %v936, 1.442695
        %v938 = vpow.pop %v937
        %v939 = vsel %vm838, %v938, 0.0
        %940 = vadd.xlane.f32.xlu0 %v939
        %v941 = vpop.xlane.xlu0 %940
        %v942 = vrcp.pop %v941
        %v943 = vmul.f32 %v938, %v942
        %s944 = scalar_lea.vmem %s4, 16
        %v945 = vld [vmem:[%s944] sm:$0xff]
        %vm946 = vcmask 64512
        %v948 = vsel %vm946, %v943, 0
        %950 = vmatprep.subr.mxu0 0.0
        %951 = vmatpush1.msra.mxu0 0.0
        %952 = vmatprep.subr.mxu0 0.0
        %953 = vmatpush1.msra.mxu0 0.0
        %954 = vmatprep.subr.mxu0 0.0
        %955 = vmatpush1.msra.mxu0 0.0
        %956 = vmatprep.subr.mxu0 0.0
        %957 = vmatpush1.msra.mxu0 0.0
        %958 = vmatprep.subr.mxu0 0.0
        %959 = vmatpush1.msra.mxu0 0.0
        %960 = vmatprep.subr.mxu0 0.0
        %961 = vmatpush1.msra.mxu0 0.0
        %962 = vmatprep.subr.mxu0 0.0
        %963 = vmatpush1.msra.mxu0 0.0
        %964 = vmatprep.subr.mxu0 0.0
        %965 = vmatpush1.msra.mxu0 0.0
        %966 = vmatprep.subr.mxu0 0.0
        %967 = vmatpush1.msra.mxu0 0.0
        %968 = vmatprep.subr.mxu0 0.0
        %969 = vmatpush1.msra.mxu0 0.0
        %970 = vmatprep.subr.mxu0 0.0
        %971 = vmatpush1.msra.mxu0 0.0
        %972 = vmatprep.subr.mxu0 0.0
        %973 = vmatpush1.msra.mxu0 0.0
        %974 = vmatprep.subr.mxu0 0.0
        %975 = vmatpush1.msra.mxu0 0.0
        %976 = vmatprep.subr.mxu0 0.0
        %977 = vmatpush1.msra.mxu0 0.0
        %978 = vmatprep.subr.mxu0 0.0
        %979 = vmatpush1.msra.mxu0 0.0
        %980 = vmatprep.subr.mxu0 0.0
        %981 = vmatpush1.msra.mxu0 %v945
        %982 = vmatprep.subr.mxu0 0.0
        %983 = vmatpush2.msra.mxu0 0.0
        %984 = vmatprep.subr.mxu0 0.0
        %985 = vmatpush2.msra.mxu0 0.0
        %986 = vmatprep.subr.mxu0 0.0
        %987 = vmatpush2.msra.mxu0 0.0
        %988 = vmatprep.subr.mxu0 0.0
        %989 = vmatpush2.msra.mxu0 0.0
        %990 = vmatprep.subr.mxu0 0.0
        %991 = vmatpush2.msra.mxu0 0.0
        %992 = vmatprep.subr.mxu0 0.0
        %993 = vmatpush2.msra.mxu0 0.0
        %994 = vmatprep.subr.mxu0 0.0
        %995 = vmatpush2.msra.mxu0 0.0
        %996 = vmatprep.subr.mxu0 0.0
        %997 = vmatpush2.msra.mxu0 0.0
        %998 = vmatprep.subr.mxu0 0.0
        %999 = vmatpush2.msra.mxu0 0.0
        %1000 = vmatprep.subr.mxu0 0.0
        %1001 = vmatpush2.msra.mxu0 0.0
        %1002 = vmatprep.subr.mxu0 0.0
        %1003 = vmatpush2.msra.mxu0 0.0
        %1004 = vmatprep.subr.mxu0 0.0
        %1005 = vmatpush2.msra.mxu0 0.0
        %1006 = vmatprep.subr.mxu0 0.0
        %1007 = vmatpush2.msra.mxu0 0.0
        %1008 = vmatprep.subr.mxu0 0.0
        %1009 = vmatpush2.msra.mxu0 0.0
        %1010 = vmatprep.subr.mxu0 0.0
        %1011 = vmatpush2.msra.mxu0 0.0
        %1012 = vmatprep.subr.mxu0 0.0
        %1013 = vmatpush2.msra.mxu0 0.0
        %1014 = vmatprep.mubr.f32.mxu0 0.0
        %1015 = vmatmul.mubr.f32.gmra.mxu0 %v948
        %v1016 = vpop.f32.mrf.mxu0
        %v1017 = vadd.f32 0.0, %v1016
        %v1018 = vpop.f32.mrf.mxu0
        %1019 = vdwg.mxu0
        %v1021 = vsel %vm946, %v849, 0
        %1023 = vmatprep.subr.mxu0 0.0
        %1024 = vmatpush1.msra.mxu0 0.0
        %1025 = vmatprep.subr.mxu0 0.0
        %1026 = vmatpush1.msra.mxu0 0.0
        %1027 = vmatprep.subr.mxu0 0.0
        %1028 = vmatpush1.msra.mxu0 0.0
        %1029 = vmatprep.subr.mxu0 0.0
        %1030 = vmatpush1.msra.mxu0 0.0
        %1031 = vmatprep.subr.mxu0 0.0
        %1032 = vmatpush1.msra.mxu0 0.0
        %1033 = vmatprep.subr.mxu0 0.0
        %1034 = vmatpush1.msra.mxu0 0.0
        %1035 = vmatprep.subr.mxu0 0.0
        %1036 = vmatpush1.msra.mxu0 0.0
        %1037 = vmatprep.subr.mxu0 0.0
        %1038 = vmatpush1.msra.mxu0 0.0
        %1039 = vmatprep.subr.mxu0 0.0
        %1040 = vmatpush1.msra.mxu0 0.0
        %1041 = vmatprep.subr.mxu0 0.0
        %1042 = vmatpush1.msra.mxu0 0.0
        %1043 = vmatprep.subr.mxu0 0.0
        %1044 = vmatpush1.msra.mxu0 0.0
        %1045 = vmatprep.subr.mxu0 0.0
        %1046 = vmatpush1.msra.mxu0 0.0
        %1047 = vmatprep.subr.mxu0 0.0
        %1048 = vmatpush1.msra.mxu0 0.0
        %1049 = vmatprep.subr.mxu0 0.0
        %1050 = vmatpush1.msra.mxu0 0.0
        %1051 = vmatprep.subr.mxu0 0.0
        %1052 = vmatpush1.msra.mxu0 0.0
        %1053 = vmatprep.subr.mxu0 0.0
        %1054 = vmatpush1.msra.mxu0 %v850
        %1055 = vmatprep.subr.mxu0 0.0
        %1056 = vmatpush2.msra.mxu0 0.0
        %1057 = vmatprep.subr.mxu0 0.0
        %1058 = vmatpush2.msra.mxu0 0.0
        %1059 = vmatprep.subr.mxu0 0.0
        %1060 = vmatpush2.msra.mxu0 0.0
        %1061 = vmatprep.subr.mxu0 0.0
        %1062 = vmatpush2.msra.mxu0 0.0
        %1063 = vmatprep.subr.mxu0 0.0
        %1064 = vmatpush2.msra.mxu0 0.0
        %1065 = vmatprep.subr.mxu0 0.0
        %1066 = vmatpush2.msra.mxu0 0.0
        %1067 = vmatprep.subr.mxu0 0.0
        %1068 = vmatpush2.msra.mxu0 0.0
        %1069 = vmatprep.subr.mxu0 0.0
        %1070 = vmatpush2.msra.mxu0 0.0
        %1071 = vmatprep.subr.mxu0 0.0
        %1072 = vmatpush2.msra.mxu0 0.0
        %1073 = vmatprep.subr.mxu0 0.0
        %1074 = vmatpush2.msra.mxu0 0.0
        %1075 = vmatprep.subr.mxu0 0.0
        %1076 = vmatpush2.msra.mxu0 0.0
        %1077 = vmatprep.subr.mxu0 0.0
        %1078 = vmatpush2.msra.mxu0 0.0
        %1079 = vmatprep.subr.mxu0 0.0
        %1080 = vmatpush2.msra.mxu0 0.0
        %1081 = vmatprep.subr.mxu0 0.0
        %1082 = vmatpush2.msra.mxu0 0.0
        %1083 = vmatprep.subr.mxu0 0.0
        %1084 = vmatpush2.msra.mxu0 0.0
        %1085 = vmatprep.subr.mxu0 0.0
        %1086 = vmatpush2.msra.mxu0 0.0
        %1087 = vmatprep.mubr.f32.mxu0 0.0
        %1088 = vmatmul.mubr.f32.gmra.mxu0 %v1021
        %v1089 = vpop.f32.mrf.mxu0
        %v1090 = vadd.f32 %v1017, %v1089
        %v1091 = vpop.f32.mrf.mxu0
        %1092 = vdwg.mxu0
        %s1093 = scalar_lea.vmem %s4, 24
        %v1094 = vld [vmem:[%s1093] sm:$0xff]
        %1095 = vmatprep.subr.mxu0 0.0
        %1096 = vmatpush1.msra.mxu0 0.0
        %1097 = vmatprep.subr.mxu0 0.0
        %1098 = vmatpush1.msra.mxu0 0.0
        %1099 = vmatprep.subr.mxu0 0.0
        %1100 = vmatpush1.msra.mxu0 0.0
        %1101 = vmatprep.subr.mxu0 0.0
        %1102 = vmatpush1.msra.mxu0 0.0
        %1103 = vmatprep.subr.mxu0 0.0
        %1104 = vmatpush1.msra.mxu0 0.0
        %1105 = vmatprep.subr.mxu0 0.0
        %1106 = vmatpush1.msra.mxu0 0.0
        %1107 = vmatprep.subr.mxu0 0.0
        %1108 = vmatpush1.msra.mxu0 0.0
        %1109 = vmatprep.subr.mxu0 0.0
        %1110 = vmatpush1.msra.mxu0 0.0
        %1111 = vmatprep.subr.mxu0 0.0
        %1112 = vmatpush1.msra.mxu0 0.0
        %1113 = vmatprep.subr.mxu0 0.0
        %1114 = vmatpush1.msra.mxu0 0.0
        %1115 = vmatprep.subr.mxu0 0.0
        %1116 = vmatpush1.msra.mxu0 0.0
        %1117 = vmatprep.subr.mxu0 0.0
        %1118 = vmatpush1.msra.mxu0 0.0
        %1119 = vmatprep.subr.mxu0 0.0
        %1120 = vmatpush1.msra.mxu0 0.0
        %1121 = vmatprep.subr.mxu0 0.0
        %1122 = vmatpush1.msra.mxu0 0.0
        %1123 = vmatprep.subr.mxu0 0.0
        %1124 = vmatpush1.msra.mxu0 0.0
        %1125 = vmatprep.subr.mxu0 0.0
        %1126 = vmatpush1.msra.mxu0 %v1094
        %1127 = vmatprep.subr.mxu0 0.0
        %1128 = vmatpush2.msra.mxu0 0.0
        %1129 = vmatprep.subr.mxu0 0.0
        %1130 = vmatpush2.msra.mxu0 0.0
        %1131 = vmatprep.subr.mxu0 0.0
        %1132 = vmatpush2.msra.mxu0 0.0
        %1133 = vmatprep.subr.mxu0 0.0
        %1134 = vmatpush2.msra.mxu0 0.0
        %1135 = vmatprep.subr.mxu0 0.0
        %1136 = vmatpush2.msra.mxu0 0.0
        %1137 = vmatprep.subr.mxu0 0.0
        %1138 = vmatpush2.msra.mxu0 0.0
        %1139 = vmatprep.subr.mxu0 0.0
        %1140 = vmatpush2.msra.mxu0 0.0
        %1141 = vmatprep.subr.mxu0 0.0
        %1142 = vmatpush2.msra.mxu0 0.0
        %1143 = vmatprep.subr.mxu0 0.0
        %1144 = vmatpush2.msra.mxu0 0.0
        %1145 = vmatprep.subr.mxu0 0.0
        %1146 = vmatpush2.msra.mxu0 0.0
        %1147 = vmatprep.subr.mxu0 0.0
        %1148 = vmatpush2.msra.mxu0 0.0
        %1149 = vmatprep.subr.mxu0 0.0
        %1150 = vmatpush2.msra.mxu0 0.0
        %1151 = vmatprep.subr.mxu0 0.0
        %1152 = vmatpush2.msra.mxu0 0.0
        %1153 = vmatprep.subr.mxu0 0.0
        %1154 = vmatpush2.msra.mxu0 0.0
        %1155 = vmatprep.subr.mxu0 0.0
        %1156 = vmatpush2.msra.mxu0 0.0
        %1157 = vmatprep.subr.mxu0 0.0
        %1158 = vmatpush2.msra.mxu0 0.0
        %1159 = vmatprep.mubr.f32.mxu0 0.0
        %1160 = vmatmul.mubr.f32.gmra.mxu0 %v948
        %v1161 = vpop.f32.mrf.mxu0
        %v1162 = vadd.f32 0.0, %v1161
        %v1163 = vpop.f32.mrf.mxu0
        %1164 = vdwg.mxu0
        %1165 = vmatprep.subr.mxu0 0.0
        %1166 = vmatpush1.msra.mxu0 0.0
        %1167 = vmatprep.subr.mxu0 0.0
        %1168 = vmatpush1.msra.mxu0 0.0
        %1169 = vmatprep.subr.mxu0 0.0
        %1170 = vmatpush1.msra.mxu0 0.0
        %1171 = vmatprep.subr.mxu0 0.0
        %1172 = vmatpush1.msra.mxu0 0.0
        %1173 = vmatprep.subr.mxu0 0.0
        %1174 = vmatpush1.msra.mxu0 0.0
        %1175 = vmatprep.subr.mxu0 0.0
        %1176 = vmatpush1.msra.mxu0 0.0
        %1177 = vmatprep.subr.mxu0 0.0
        %1178 = vmatpush1.msra.mxu0 0.0
        %1179 = vmatprep.subr.mxu0 0.0
        %1180 = vmatpush1.msra.mxu0 0.0
        %1181 = vmatprep.subr.mxu0 0.0
        %1182 = vmatpush1.msra.mxu0 0.0
        %1183 = vmatprep.subr.mxu0 0.0
        %1184 = vmatpush1.msra.mxu0 0.0
        %1185 = vmatprep.subr.mxu0 0.0
        %1186 = vmatpush1.msra.mxu0 0.0
        %1187 = vmatprep.subr.mxu0 0.0
        %1188 = vmatpush1.msra.mxu0 0.0
        %1189 = vmatprep.subr.mxu0 0.0
        %1190 = vmatpush1.msra.mxu0 0.0
        %1191 = vmatprep.subr.mxu0 0.0
        %1192 = vmatpush1.msra.mxu0 0.0
        %1193 = vmatprep.subr.mxu0 0.0
        %1194 = vmatpush1.msra.mxu0 0.0
        %1195 = vmatprep.subr.mxu0 0.0
        %1196 = vmatpush1.msra.mxu0 %v852
        %1197 = vmatprep.subr.mxu0 0.0
        %1198 = vmatpush2.msra.mxu0 0.0
        %1199 = vmatprep.subr.mxu0 0.0
        %1200 = vmatpush2.msra.mxu0 0.0
        %1201 = vmatprep.subr.mxu0 0.0
        %1202 = vmatpush2.msra.mxu0 0.0
        %1203 = vmatprep.subr.mxu0 0.0
        %1204 = vmatpush2.msra.mxu0 0.0
        %1205 = vmatprep.subr.mxu0 0.0
        %1206 = vmatpush2.msra.mxu0 0.0
        %1207 = vmatprep.subr.mxu0 0.0
        %1208 = vmatpush2.msra.mxu0 0.0
        %1209 = vmatprep.subr.mxu0 0.0
        %1210 = vmatpush2.msra.mxu0 0.0
        %1211 = vmatprep.subr.mxu0 0.0
        %1212 = vmatpush2.msra.mxu0 0.0
        %1213 = vmatprep.subr.mxu0 0.0
        %1214 = vmatpush2.msra.mxu0 0.0
        %1215 = vmatprep.subr.mxu0 0.0
        %1216 = vmatpush2.msra.mxu0 0.0
        %1217 = vmatprep.subr.mxu0 0.0
        %1218 = vmatpush2.msra.mxu0 0.0
        %1219 = vmatprep.subr.mxu0 0.0
        %1220 = vmatpush2.msra.mxu0 0.0
        %1221 = vmatprep.subr.mxu0 0.0
        %1222 = vmatpush2.msra.mxu0 0.0
        %1223 = vmatprep.subr.mxu0 0.0
        %1224 = vmatpush2.msra.mxu0 0.0
        %1225 = vmatprep.subr.mxu0 0.0
        %1226 = vmatpush2.msra.mxu0 0.0
        %1227 = vmatprep.subr.mxu0 0.0
        %1228 = vmatpush2.msra.mxu0 0.0
        %1229 = vmatprep.mubr.f32.mxu0 0.0
        %1230 = vmatmul.mubr.f32.gmra.mxu0 %v1021
        %v1231 = vpop.f32.mrf.mxu0
        %v1232 = vadd.f32 %v1162, %v1231
        %v1233 = vpop.f32.mrf.mxu0
        %1234 = vdwg.mxu0
        %vm1235 = vcmask 253952
        %1236 = vst.msk [vmem:[#allocation6] sm:$0x1] %vm1235, %v1090
        %1237 = vst.msk [vmem:[#allocation6 + $0x1] sm:$0x1] %vm1235, %v1232
        %v1238 = vld [vmem:[#allocation6] sm:$0x3]
        %v1239 = vld [vmem:[%s10] sm:$0xff]
        %v1240 = vld [vmem:[%s10 + $0x8] sm:$0xff]
        %v1241 = vld [vmem:[%s10 + $0x10] sm:$0xff]
        %v1242 = vld [vmem:[%s10 + $0x18] sm:$0xff]
        %v1243 = vld [vmem:[%s11] sm:$0xff]
        %v1244 = vld [vmem:[%s11 + $0x8] sm:$0xff]
        %v1245 = vld [vmem:[%s11 + $0x10] sm:$0xff]
        %v1246 = vld [vmem:[%s11 + $0x18] sm:$0xff]
        %v1248 = vsel %vm567, %v1238, 0
        %1250 = vmatprep.subr.mxu0 0.0
        %1251 = vmatpush1.msra.mxu0 0.0
        %1252 = vmatprep.subr.mxu0 0.0
        %1253 = vmatpush1.msra.mxu0 0.0
        %1254 = vmatprep.subr.mxu0 0.0
        %1255 = vmatpush1.msra.mxu0 0.0
        %1256 = vmatprep.subr.mxu0 0.0
        %1257 = vmatpush1.msra.mxu0 0.0
        %1258 = vmatprep.subr.mxu0 0.0
        %1259 = vmatpush1.msra.mxu0 0.0
        %1260 = vmatprep.subr.mxu0 0.0
        %1261 = vmatpush1.msra.mxu0 0.0
        %1262 = vmatprep.subr.mxu0 0.0
        %1263 = vmatpush1.msra.mxu0 0.0
        %1264 = vmatprep.subr.mxu0 0.0
        %1265 = vmatpush1.msra.mxu0 0.0
        %1266 = vmatprep.subr.mxu0 0.0
        %1267 = vmatpush1.msra.mxu0 0.0
        %1268 = vmatprep.subr.mxu0 0.0
        %1269 = vmatpush1.msra.mxu0 0.0
        %1270 = vmatprep.subr.mxu0 0.0
        %1271 = vmatpush1.msra.mxu0 0.0
        %1272 = vmatprep.subr.mxu0 0.0
        %1273 = vmatpush1.msra.mxu0 0.0
        %1274 = vmatprep.subr.mxu0 0.0
        %1275 = vmatpush1.msra.mxu0 %v1246
        %1276 = vmatprep.subr.mxu0 0.0
        %1277 = vmatpush1.msra.mxu0 %v1245
        %1278 = vmatprep.subr.mxu0 0.0
        %1279 = vmatpush1.msra.mxu0 %v1244
        %1280 = vmatprep.subr.mxu0 0.0
        %1281 = vmatpush1.msra.mxu0 %v1243
        %1282 = vmatprep.subr.mxu0 0.0
        %1283 = vmatpush2.msra.mxu0 0.0
        %1284 = vmatprep.subr.mxu0 0.0
        %1285 = vmatpush2.msra.mxu0 0.0
        %1286 = vmatprep.subr.mxu0 0.0
        %1287 = vmatpush2.msra.mxu0 0.0
        %1288 = vmatprep.subr.mxu0 0.0
        %1289 = vmatpush2.msra.mxu0 0.0
        %1290 = vmatprep.subr.mxu0 0.0
        %1291 = vmatpush2.msra.mxu0 0.0
        %1292 = vmatprep.subr.mxu0 0.0
        %1293 = vmatpush2.msra.mxu0 0.0
        %1294 = vmatprep.subr.mxu0 0.0
        %1295 = vmatpush2.msra.mxu0 0.0
        %1296 = vmatprep.subr.mxu0 0.0
        %1297 = vmatpush2.msra.mxu0 0.0
        %1298 = vmatprep.subr.mxu0 0.0
        %1299 = vmatpush2.msra.mxu0 0.0
        %1300 = vmatprep.subr.mxu0 0.0
        %1301 = vmatpush2.msra.mxu0 0.0
        %1302 = vmatprep.subr.mxu0 0.0
        %1303 = vmatpush2.msra.mxu0 0.0
        %1304 = vmatprep.subr.mxu0 0.0
        %1305 = vmatpush2.msra.mxu0 0.0
        %1306 = vmatprep.subr.mxu0 0.0
        %1307 = vmatpush2.msra.mxu0 0.0
        %1308 = vmatprep.subr.mxu0 0.0
        %1309 = vmatpush2.msra.mxu0 0.0
        %1310 = vmatprep.subr.mxu0 0.0
        %1311 = vmatpush2.msra.mxu0 0.0
        %1312 = vmatprep.subr.mxu0 0.0
        %1313 = vmatpush2.msra.mxu0 0.0
        %1314 = vmatprep.mubr.f32.mxu0 0.0
        %1315 = vmatmul.mubr.f32.gmra.mxu0 %v1248
        %v1316 = vpop.f32.mrf.mxu0
        %v1317 = vadd.f32 0.0, %v1316
        %v1318 = vpop.f32.mrf.mxu0
        %1319 = vdwg.mxu0
        %1320 = vmatprep.subr.mxu0 0.0
        %1321 = vmatpush1.msra.mxu0 0.0
        %1322 = vmatprep.subr.mxu0 0.0
        %1323 = vmatpush1.msra.mxu0 0.0
        %1324 = vmatprep.subr.mxu0 0.0
        %1325 = vmatpush1.msra.mxu0 0.0
        %1326 = vmatprep.subr.mxu0 0.0
        %1327 = vmatpush1.msra.mxu0 0.0
        %1328 = vmatprep.subr.mxu0 0.0
        %1329 = vmatpush1.msra.mxu0 0.0
        %1330 = vmatprep.subr.mxu0 0.0
        %1331 = vmatpush1.msra.mxu0 0.0
        %1332 = vmatprep.subr.mxu0 0.0
        %1333 = vmatpush1.msra.mxu0 0.0
        %1334 = vmatprep.subr.mxu0 0.0
        %1335 = vmatpush1.msra.mxu0 0.0
        %1336 = vmatprep.subr.mxu0 0.0
        %1337 = vmatpush1.msra.mxu0 0.0
        %1338 = vmatprep.subr.mxu0 0.0
        %1339 = vmatpush1.msra.mxu0 0.0
        %1340 = vmatprep.subr.mxu0 0.0
        %1341 = vmatpush1.msra.mxu0 0.0
        %1342 = vmatprep.subr.mxu0 0.0
        %1343 = vmatpush1.msra.mxu0 0.0
        %1344 = vmatprep.subr.mxu0 0.0
        %1345 = vmatpush1.msra.mxu0 %v1242
        %1346 = vmatprep.subr.mxu0 0.0
        %1347 = vmatpush1.msra.mxu0 %v1241
        %1348 = vmatprep.subr.mxu0 0.0
        %1349 = vmatpush1.msra.mxu0 %v1240
        %1350 = vmatprep.subr.mxu0 0.0
        %1351 = vmatpush1.msra.mxu0 %v1239
        %1352 = vmatprep.subr.mxu0 0.0
        %1353 = vmatpush2.msra.mxu0 0.0
        %1354 = vmatprep.subr.mxu0 0.0
        %1355 = vmatpush2.msra.mxu0 0.0
        %1356 = vmatprep.subr.mxu0 0.0
        %1357 = vmatpush2.msra.mxu0 0.0
        %1358 = vmatprep.subr.mxu0 0.0
        %1359 = vmatpush2.msra.mxu0 0.0
        %1360 = vmatprep.subr.mxu0 0.0
        %1361 = vmatpush2.msra.mxu0 0.0
        %1362 = vmatprep.subr.mxu0 0.0
        %1363 = vmatpush2.msra.mxu0 0.0
        %1364 = vmatprep.subr.mxu0 0.0
        %1365 = vmatpush2.msra.mxu0 0.0
        %1366 = vmatprep.subr.mxu0 0.0
        %1367 = vmatpush2.msra.mxu0 0.0
        %1368 = vmatprep.subr.mxu0 0.0
        %1369 = vmatpush2.msra.mxu0 0.0
        %1370 = vmatprep.subr.mxu0 0.0
        %1371 = vmatpush2.msra.mxu0 0.0
        %1372 = vmatprep.subr.mxu0 0.0
        %1373 = vmatpush2.msra.mxu0 0.0
        %1374 = vmatprep.subr.mxu0 0.0
        %1375 = vmatpush2.msra.mxu0 0.0
        %1376 = vmatprep.subr.mxu0 0.0
        %1377 = vmatpush2.msra.mxu0 0.0
        %1378 = vmatprep.subr.mxu0 0.0
        %1379 = vmatpush2.msra.mxu0 0.0
        %1380 = vmatprep.subr.mxu0 0.0
        %1381 = vmatpush2.msra.mxu0 0.0
        %1382 = vmatprep.subr.mxu0 0.0
        %1383 = vmatpush2.msra.mxu0 0.0
        %1384 = vmatprep.mubr.f32.mxu0 0.0
        %1385 = vmatmul.mubr.f32.gmra.mxu0 %v763
        %v1386 = vpop.f32.mrf.mxu0
        %v1387 = vadd.f32 %v1317, %v1386
        %v1388 = vpop.f32.mrf.mxu0
        %1389 = vdwg.mxu0
        %v1390 = vld [vmem:[#allocation4] sm:$0x3]
        %v1391 = vld [vmem:[%s12] sm:$0xff]
        %v1392 = vld [vmem:[%s12 + $0x8] sm:$0xff]
        %v1393 = vld [vmem:[%s12 + $0x10] sm:$0xff]
        %v1394 = vld [vmem:[%s12 + $0x18] sm:$0xff]
        %v1396 = vsel %vm567, %v1390, 0
        %1398 = vmatprep.subr.mxu0 0.0
        %1399 = vmatpush1.msra.mxu0 0.0
        %1400 = vmatprep.subr.mxu0 0.0
        %1401 = vmatpush1.msra.mxu0 0.0
        %1402 = vmatprep.subr.mxu0 0.0
        %1403 = vmatpush1.msra.mxu0 0.0
        %1404 = vmatprep.subr.mxu0 0.0
        %1405 = vmatpush1.msra.mxu0 0.0
        %1406 = vmatprep.subr.mxu0 0.0
        %1407 = vmatpush1.msra.mxu0 0.0
        %1408 = vmatprep.subr.mxu0 0.0
        %1409 = vmatpush1.msra.mxu0 0.0
        %1410 = vmatprep.subr.mxu0 0.0
        %1411 = vmatpush1.msra.mxu0 0.0
        %1412 = vmatprep.subr.mxu0 0.0
        %1413 = vmatpush1.msra.mxu0 0.0
        %1414 = vmatprep.subr.mxu0 0.0
        %1415 = vmatpush1.msra.mxu0 0.0
        %1416 = vmatprep.subr.mxu0 0.0
        %1417 = vmatpush1.msra.mxu0 0.0
        %1418 = vmatprep.subr.mxu0 0.0
        %1419 = vmatpush1.msra.mxu0 0.0
        %1420 = vmatprep.subr.mxu0 0.0
        %1421 = vmatpush1.msra.mxu0 0.0
        %1422 = vmatprep.subr.mxu0 0.0
        %1423 = vmatpush1.msra.mxu0 %v1394
        %1424 = vmatprep.subr.mxu0 0.0
        %1425 = vmatpush1.msra.mxu0 %v1393
        %1426 = vmatprep.subr.mxu0 0.0
        %1427 = vmatpush1.msra.mxu0 %v1392
        %1428 = vmatprep.subr.mxu0 0.0
        %1429 = vmatpush1.msra.mxu0 %v1391
        %1430 = vmatprep.subr.mxu0 0.0
        %1431 = vmatpush2.msra.mxu0 0.0
        %1432 = vmatprep.subr.mxu0 0.0
        %1433 = vmatpush2.msra.mxu0 0.0
        %1434 = vmatprep.subr.mxu0 0.0
        %1435 = vmatpush2.msra.mxu0 0.0
        %1436 = vmatprep.subr.mxu0 0.0
        %1437 = vmatpush2.msra.mxu0 0.0
        %1438 = vmatprep.subr.mxu0 0.0
        %1439 = vmatpush2.msra.mxu0 0.0
        %1440 = vmatprep.subr.mxu0 0.0
        %1441 = vmatpush2.msra.mxu0 0.0
        %1442 = vmatprep.subr.mxu0 0.0
        %1443 = vmatpush2.msra.mxu0 0.0
        %1444 = vmatprep.subr.mxu0 0.0
        %1445 = vmatpush2.msra.mxu0 0.0
        %1446 = vmatprep.subr.mxu0 0.0
        %1447 = vmatpush2.msra.mxu0 0.0
        %1448 = vmatprep.subr.mxu0 0.0
        %1449 = vmatpush2.msra.mxu0 0.0
        %1450 = vmatprep.subr.mxu0 0.0
        %1451 = vmatpush2.msra.mxu0 0.0
        %1452 = vmatprep.subr.mxu0 0.0
        %1453 = vmatpush2.msra.mxu0 0.0
        %1454 = vmatprep.subr.mxu0 0.0
        %1455 = vmatpush2.msra.mxu0 0.0
        %1456 = vmatprep.subr.mxu0 0.0
        %1457 = vmatpush2.msra.mxu0 0.0
        %1458 = vmatprep.subr.mxu0 0.0
        %1459 = vmatpush2.msra.mxu0 0.0
        %1460 = vmatprep.subr.mxu0 0.0
        %1461 = vmatpush2.msra.mxu0 0.0
        %1462 = vmatprep.mubr.f32.mxu0 0.0
        %1463 = vmatmul.mubr.f32.gmra.mxu0 %v1396
        %v1464 = vpop.f32.mrf.mxu0
        %v1465 = vadd.f32 0.0, %v1464
        %v1466 = vpop.f32.mrf.mxu0
        %1467 = vdwg.mxu0
        %v1468 = vadd.f32 %v1387, %v1465
        %v1469 = vld [vmem:[%s13] sm:$0x1]
        %v1471 = vlaneseq
        %v1472 = vshrl.u32 %v1471, 7
        %v1473 = vsub.s32 0, %v1472
        %v1474 = vrot.slane %v1469, %v1473
        %v1476 = vadd.f32 %v1468, %v1474
        %v1477 = vld [vmem:[#allocation5] sm:$0x3]
        %v1478 = vxor.u32 %v1476, 2147483648
        %v1479 = vmul.f32 %v1478, 1.442695
        %v1480 = vpow.pop %v1479
        %v1481 = vadd.f32 %v1480, 1.0
        %v1482 = vrcp.pop %v1481
        %v1483 = vmul.f32 1.0, %v1482
        %v1484 = vtanh.pop %v1476
        %1486 = vrot.lane.b32.xlu0 %v1477, 32
        %v1487 = vpop.permute.xlu0 %1486
        %v1489 = vmul.f32 %v1483, %v1487
        %1491 = vrot.lane.b32.xlu0 %v1484, 64
        %v1492 = vpop.permute.xlu0 %1491
        %v1494 = vmul.f32 %v1483, %v1492
        %1496 = vrot.lane.b32.xlu0 %v1494, 32
        %v1497 = vpop.permute.xlu0 %1496
        %v1499 = vadd.f32 %v1489, %v1497
        %v1500 = vtanh.pop %v1499
        %1502 = vrot.lane.b32.xlu0 %v1500, 64
        %v1503 = vpop.permute.xlu0 %1502
        %v1505 = vmul.f32 %v1483, %v1503
        %1507 = vrot.lane.b32.xlu0 %v1505, 32
        %v1508 = vpop.permute.xlu0 %1507
        %1510 = vst.msk [vmem:[#allocation4] sm:$0x3] %vm755, %v1508
        %1512 = vrot.lane.b32.xlu0 %v1499, 96
        %v1513 = vpop.permute.xlu0 %1512
        %1515 = vst.msk [vmem:[#allocation5] sm:$0x3] %vm755, %v1513
        %v1516 = vld [vmem:[%s5] sm:$0xff]
        %v1517 = vsel %vm567, %v1508, 0
        %v1520 = vsel %vm567, %v1516, 0
        %1522 = vmatprep.subr.mxu0 0.0
        %1523 = vmatpush1.xpose.msra.mxu0 0.0
        %1524 = vmatprep.subr.mxu0 0.0
        %1525 = vmatpush1.xpose.msra.mxu0 0.0
        %1526 = vmatprep.subr.mxu0 0.0
        %1527 = vmatpush1.xpose.msra.mxu0 0.0
        %1528 = vmatprep.subr.mxu0 0.0
        %1529 = vmatpush1.xpose.msra.mxu0 0.0
        %1530 = vmatprep.subr.mxu0 0.0
        %1531 = vmatpush1.xpose.msra.mxu0 0.0
        %1532 = vmatprep.subr.mxu0 0.0
        %1533 = vmatpush1.xpose.msra.mxu0 0.0
        %1534 = vmatprep.subr.mxu0 0.0
        %1535 = vmatpush1.xpose.msra.mxu0 0.0
        %1536 = vmatprep.subr.mxu0 0.0
        %1537 = vmatpush1.xpose.msra.mxu0 0.0
        %1538 = vmatprep.subr.mxu0 0.0
        %1539 = vmatpush1.xpose.msra.mxu0 0.0
        %1540 = vmatprep.subr.mxu0 0.0
        %1541 = vmatpush1.xpose.msra.mxu0 0.0
        %1542 = vmatprep.subr.mxu0 0.0
        %1543 = vmatpush1.xpose.msra.mxu0 0.0
        %1544 = vmatprep.subr.mxu0 0.0
        %1545 = vmatpush1.xpose.msra.mxu0 0.0
        %1546 = vmatprep.subr.mxu0 0.0
        %1547 = vmatpush1.xpose.msra.mxu0 0.0
        %1548 = vmatprep.subr.mxu0 0.0
        %1549 = vmatpush1.xpose.msra.mxu0 0.0
        %1550 = vmatprep.subr.mxu0 0.0
        %1551 = vmatpush1.xpose.msra.mxu0 0.0
        %1552 = vmatprep.subr.mxu0 0.0
        %1553 = vmatpush1.xpose.msra.mxu0 %v1520
        %1554 = vmatprep.subr.mxu0 0.0
        %1555 = vmatpush2.xpose.msra.mxu0 0.0
        %1556 = vmatprep.subr.mxu0 0.0
        %1557 = vmatpush2.xpose.msra.mxu0 0.0
        %1558 = vmatprep.subr.mxu0 0.0
        %1559 = vmatpush2.xpose.msra.mxu0 0.0
        %1560 = vmatprep.subr.mxu0 0.0
        %1561 = vmatpush2.xpose.msra.mxu0 0.0
        %1562 = vmatprep.subr.mxu0 0.0
        %1563 = vmatpush2.xpose.msra.mxu0 0.0
        %1564 = vmatprep.subr.mxu0 0.0
        %1565 = vmatpush2.xpose.msra.mxu0 0.0
        %1566 = vmatprep.subr.mxu0 0.0
        %1567 = vmatpush2.xpose.msra.mxu0 0.0
        %1568 = vmatprep.subr.mxu0 0.0
        %1569 = vmatpush2.xpose.msra.mxu0 0.0
        %1570 = vmatprep.subr.mxu0 0.0
        %1571 = vmatpush2.xpose.msra.mxu0 0.0
        %1572 = vmatprep.subr.mxu0 0.0
        %1573 = vmatpush2.xpose.msra.mxu0 0.0
        %1574 = vmatprep.subr.mxu0 0.0
        %1575 = vmatpush2.xpose.msra.mxu0 0.0
        %1576 = vmatprep.subr.mxu0 0.0
        %1577 = vmatpush2.xpose.msra.mxu0 0.0
        %1578 = vmatprep.subr.mxu0 0.0
        %1579 = vmatpush2.xpose.msra.mxu0 0.0
        %1580 = vmatprep.subr.mxu0 0.0
        %1581 = vmatpush2.xpose.msra.mxu0 0.0
        %1582 = vmatprep.subr.mxu0 0.0
        %1583 = vmatpush2.xpose.msra.mxu0 0.0
        %1584 = vmatprep.subr.mxu0 0.0
        %1585 = vmatpush2.xpose.msra.mxu0 0.0
        %1586 = vmatprep.mubr.f32.mxu0 0.0
        %1587 = vmatmul.mubr.f32.gmra.mxu0 %v1517
        %v1588 = vpop.f32.mrf.mxu0
        %v1589 = vadd.f32 0.0, %v1588
        %v1590 = vpop.f32.mrf.mxu0
        %1591 = vdwg.mxu0
        %v1592 = vsel %vm838, %v1589, -inf
        %1593 = vmax.xlane.f32.xlu0 %v1592
        %v1594 = vpop.xlane.xlu0 %1593
        %v1595 = vsub.f32 %v1589, %v1594
        %v1596 = vmul.f32 %v1595, 1.442695
        %v1597 = vpow.pop %v1596
        %v1598 = vsel %vm838, %v1597, 0.0
        %1599 = vadd.xlane.f32.xlu0 %v1598
        %v1600 = vpop.xlane.xlu0 %1599
        %v1601 = vrcp.pop %v1600
        %v1602 = vmul.f32 %v1597, %v1601
        %v1603 = vld [vmem:[%s6] sm:$0xff]
        %s1604 = scalar_lea.vmem %s6, 8
        %v1605 = vld [vmem:[%s1604] sm:$0xff]
        %s1606 = scalar_lea.vmem %s5, 8
        %v1607 = vld [vmem:[%s1606] sm:$0xff]
        %v1608 = vrot.slane %v1505, 1
        %1609 = vrot.lane.b32.xlu0 %v1608, 32
        %v1610 = vpop.permute.xlu0 %1609
        %v1611 = vsel %vm567, %v1610, 0
        %v1614 = vsel %vm567, %v1607, 0
        %1616 = vmatprep.subr.mxu0 0.0
        %1617 = vmatpush1.xpose.msra.mxu0 0.0
        %1618 = vmatprep.subr.mxu0 0.0
        %1619 = vmatpush1.xpose.msra.mxu0 0.0
        %1620 = vmatprep.subr.mxu0 0.0
        %1621 = vmatpush1.xpose.msra.mxu0 0.0
        %1622 = vmatprep.subr.mxu0 0.0
        %1623 = vmatpush1.xpose.msra.mxu0 0.0
        %1624 = vmatprep.subr.mxu0 0.0
        %1625 = vmatpush1.xpose.msra.mxu0 0.0
        %1626 = vmatprep.subr.mxu0 0.0
        %1627 = vmatpush1.xpose.msra.mxu0 0.0
        %1628 = vmatprep.subr.mxu0 0.0
        %1629 = vmatpush1.xpose.msra.mxu0 0.0
        %1630 = vmatprep.subr.mxu0 0.0
        %1631 = vmatpush1.xpose.msra.mxu0 0.0
        %1632 = vmatprep.subr.mxu0 0.0
        %1633 = vmatpush1.xpose.msra.mxu0 0.0
        %1634 = vmatprep.subr.mxu0 0.0
        %1635 = vmatpush1.xpose.msra.mxu0 0.0
        %1636 = vmatprep.subr.mxu0 0.0
        %1637 = vmatpush1.xpose.msra.mxu0 0.0
        %1638 = vmatprep.subr.mxu0 0.0
        %1639 = vmatpush1.xpose.msra.mxu0 0.0
        %1640 = vmatprep.subr.mxu0 0.0
        %1641 = vmatpush1.xpose.msra.mxu0 0.0
        %1642 = vmatprep.subr.mxu0 0.0
        %1643 = vmatpush1.xpose.msra.mxu0 0.0
        %1644 = vmatprep.subr.mxu0 0.0
        %1645 = vmatpush1.xpose.msra.mxu0 0.0
        %1646 = vmatprep.subr.mxu0 0.0
        %1647 = vmatpush1.xpose.msra.mxu0 %v1614
        %1648 = vmatprep.subr.mxu0 0.0
        %1649 = vmatpush2.xpose.msra.mxu0 0.0
        %1650 = vmatprep.subr.mxu0 0.0
        %1651 = vmatpush2.xpose.msra.mxu0 0.0
        %1652 = vmatprep.subr.mxu0 0.0
        %1653 = vmatpush2.xpose.msra.mxu0 0.0
        %1654 = vmatprep.subr.mxu0 0.0
        %1655 = vmatpush2.xpose.msra.mxu0 0.0
        %1656 = vmatprep.subr.mxu0 0.0
        %1657 = vmatpush2.xpose.msra.mxu0 0.0
        %1658 = vmatprep.subr.mxu0 0.0
        %1659 = vmatpush2.xpose.msra.mxu0 0.0
        %1660 = vmatprep.subr.mxu0 0.0
        %1661 = vmatpush2.xpose.msra.mxu0 0.0
        %1662 = vmatprep.subr.mxu0 0.0
        %1663 = vmatpush2.xpose.msra.mxu0 0.0
        %1664 = vmatprep.subr.mxu0 0.0
        %1665 = vmatpush2.xpose.msra.mxu0 0.0
        %1666 = vmatprep.subr.mxu0 0.0
        %1667 = vmatpush2.xpose.msra.mxu0 0.0
        %1668 = vmatprep.subr.mxu0 0.0
        %1669 = vmatpush2.xpose.msra.mxu0 0.0
        %1670 = vmatprep.subr.mxu0 0.0
        %1671 = vmatpush2.xpose.msra.mxu0 0.0
        %1672 = vmatprep.subr.mxu0 0.0
        %1673 = vmatpush2.xpose.msra.mxu0 0.0
        %1674 = vmatprep.subr.mxu0 0.0
        %1675 = vmatpush2.xpose.msra.mxu0 0.0
        %1676 = vmatprep.subr.mxu0 0.0
        %1677 = vmatpush2.xpose.msra.mxu0 0.0
        %1678 = vmatprep.subr.mxu0 0.0
        %1679 = vmatpush2.xpose.msra.mxu0 0.0
        %1680 = vmatprep.mubr.f32.mxu0 0.0
        %1681 = vmatmul.mubr.f32.gmra.mxu0 %v1611
        %v1682 = vpop.f32.mrf.mxu0
        %v1683 = vadd.f32 0.0, %v1682
        %v1684 = vpop.f32.mrf.mxu0
        %1685 = vdwg.mxu0
        %v1686 = vsel %vm838, %v1683, -inf
        %1687 = vmax.xlane.f32.xlu0 %v1686
        %v1688 = vpop.xlane.xlu0 %1687
        %v1689 = vsub.f32 %v1683, %v1688
        %v1690 = vmul.f32 %v1689, 1.442695
        %v1691 = vpow.pop %v1690
        %v1692 = vsel %vm838, %v1691, 0.0
        %1693 = vadd.xlane.f32.xlu0 %v1692
        %v1694 = vpop.xlane.xlu0 %1693
        %v1695 = vrcp.pop %v1694
        %v1696 = vmul.f32 %v1691, %v1695
        %s1697 = scalar_lea.vmem %s6, 16
        %v1698 = vld [vmem:[%s1697] sm:$0xff]
        %v1700 = vsel %vm946, %v1696, 0
        %1702 = vmatprep.subr.mxu0 0.0
        %1703 = vmatpush1.msra.mxu0 0.0
        %1704 = vmatprep.subr.mxu0 0.0
        %1705 = vmatpush1.msra.mxu0 0.0
        %1706 = vmatprep.subr.mxu0 0.0
        %1707 = vmatpush1.msra.mxu0 0.0
        %1708 = vmatprep.subr.mxu0 0.0
        %1709 = vmatpush1.msra.mxu0 0.0
        %1710 = vmatprep.subr.mxu0 0.0
        %1711 = vmatpush1.msra.mxu0 0.0
        %1712 = vmatprep.subr.mxu0 0.0
        %1713 = vmatpush1.msra.mxu0 0.0
        %1714 = vmatprep.subr.mxu0 0.0
        %1715 = vmatpush1.msra.mxu0 0.0
        %1716 = vmatprep.subr.mxu0 0.0
        %1717 = vmatpush1.msra.mxu0 0.0
        %1718 = vmatprep.subr.mxu0 0.0
        %1719 = vmatpush1.msra.mxu0 0.0
        %1720 = vmatprep.subr.mxu0 0.0
        %1721 = vmatpush1.msra.mxu0 0.0
        %1722 = vmatprep.subr.mxu0 0.0
        %1723 = vmatpush1.msra.mxu0 0.0
        %1724 = vmatprep.subr.mxu0 0.0
        %1725 = vmatpush1.msra.mxu0 0.0
        %1726 = vmatprep.subr.mxu0 0.0
        %1727 = vmatpush1.msra.mxu0 0.0
        %1728 = vmatprep.subr.mxu0 0.0
        %1729 = vmatpush1.msra.mxu0 0.0
        %1730 = vmatprep.subr.mxu0 0.0
        %1731 = vmatpush1.msra.mxu0 0.0
        %1732 = vmatprep.subr.mxu0 0.0
        %1733 = vmatpush1.msra.mxu0 %v1698
        %1734 = vmatprep.subr.mxu0 0.0
        %1735 = vmatpush2.msra.mxu0 0.0
        %1736 = vmatprep.subr.mxu0 0.0
        %1737 = vmatpush2.msra.mxu0 0.0
        %1738 = vmatprep.subr.mxu0 0.0
        %1739 = vmatpush2.msra.mxu0 0.0
        %1740 = vmatprep.subr.mxu0 0.0
        %1741 = vmatpush2.msra.mxu0 0.0
        %1742 = vmatprep.subr.mxu0 0.0
        %1743 = vmatpush2.msra.mxu0 0.0
        %1744 = vmatprep.subr.mxu0 0.0
        %1745 = vmatpush2.msra.mxu0 0.0
        %1746 = vmatprep.subr.mxu0 0.0
        %1747 = vmatpush2.msra.mxu0 0.0
        %1748 = vmatprep.subr.mxu0 0.0
        %1749 = vmatpush2.msra.mxu0 0.0
        %1750 = vmatprep.subr.mxu0 0.0
        %1751 = vmatpush2.msra.mxu0 0.0
        %1752 = vmatprep.subr.mxu0 0.0
        %1753 = vmatpush2.msra.mxu0 0.0
        %1754 = vmatprep.subr.mxu0 0.0
        %1755 = vmatpush2.msra.mxu0 0.0
        %1756 = vmatprep.subr.mxu0 0.0
        %1757 = vmatpush2.msra.mxu0 0.0
        %1758 = vmatprep.subr.mxu0 0.0
        %1759 = vmatpush2.msra.mxu0 0.0
        %1760 = vmatprep.subr.mxu0 0.0
        %1761 = vmatpush2.msra.mxu0 0.0
        %1762 = vmatprep.subr.mxu0 0.0
        %1763 = vmatpush2.msra.mxu0 0.0
        %1764 = vmatprep.subr.mxu0 0.0
        %1765 = vmatpush2.msra.mxu0 0.0
        %1766 = vmatprep.mubr.f32.mxu0 0.0
        %1767 = vmatmul.mubr.f32.gmra.mxu0 %v1700
        %v1768 = vpop.f32.mrf.mxu0
        %v1769 = vadd.f32 0.0, %v1768
        %v1770 = vpop.f32.mrf.mxu0
        %1771 = vdwg.mxu0
        %v1773 = vsel %vm946, %v1602, 0
        %1775 = vmatprep.subr.mxu0 0.0
        %1776 = vmatpush1.msra.mxu0 0.0
        %1777 = vmatprep.subr.mxu0 0.0
        %1778 = vmatpush1.msra.mxu0 0.0
        %1779 = vmatprep.subr.mxu0 0.0
        %1780 = vmatpush1.msra.mxu0 0.0
        %1781 = vmatprep.subr.mxu0 0.0
        %1782 = vmatpush1.msra.mxu0 0.0
        %1783 = vmatprep.subr.mxu0 0.0
        %1784 = vmatpush1.msra.mxu0 0.0
        %1785 = vmatprep.subr.mxu0 0.0
        %1786 = vmatpush1.msra.mxu0 0.0
        %1787 = vmatprep.subr.mxu0 0.0
        %1788 = vmatpush1.msra.mxu0 0.0
        %1789 = vmatprep.subr.mxu0 0.0
        %1790 = vmatpush1.msra.mxu0 0.0
        %1791 = vmatprep.subr.mxu0 0.0
        %1792 = vmatpush1.msra.mxu0 0.0
        %1793 = vmatprep.subr.mxu0 0.0
        %1794 = vmatpush1.msra.mxu0 0.0
        %1795 = vmatprep.subr.mxu0 0.0
        %1796 = vmatpush1.msra.mxu0 0.0
        %1797 = vmatprep.subr.mxu0 0.0
        %1798 = vmatpush1.msra.mxu0 0.0
        %1799 = vmatprep.subr.mxu0 0.0
        %1800 = vmatpush1.msra.mxu0 0.0
        %1801 = vmatprep.subr.mxu0 0.0
        %1802 = vmatpush1.msra.mxu0 0.0
        %1803 = vmatprep.subr.mxu0 0.0
        %1804 = vmatpush1.msra.mxu0 0.0
        %1805 = vmatprep.subr.mxu0 0.0
        %1806 = vmatpush1.msra.mxu0 %v1603
        %1807 = vmatprep.subr.mxu0 0.0
        %1808 = vmatpush2.msra.mxu0 0.0
        %1809 = vmatprep.subr.mxu0 0.0
        %1810 = vmatpush2.msra.mxu0 0.0
        %1811 = vmatprep.subr.mxu0 0.0
        %1812 = vmatpush2.msra.mxu0 0.0
        %1813 = vmatprep.subr.mxu0 0.0
        %1814 = vmatpush2.msra.mxu0 0.0
        %1815 = vmatprep.subr.mxu0 0.0
        %1816 = vmatpush2.msra.mxu0 0.0
        %1817 = vmatprep.subr.mxu0 0.0
        %1818 = vmatpush2.msra.mxu0 0.0
        %1819 = vmatprep.subr.mxu0 0.0
        %1820 = vmatpush2.msra.mxu0 0.0
        %1821 = vmatprep.subr.mxu0 0.0
        %1822 = vmatpush2.msra.mxu0 0.0
        %1823 = vmatprep.subr.mxu0 0.0
        %1824 = vmatpush2.msra.mxu0 0.0
        %1825 = vmatprep.subr.mxu0 0.0
        %1826 = vmatpush2.msra.mxu0 0.0
        %1827 = vmatprep.subr.mxu0 0.0
        %1828 = vmatpush2.msra.mxu0 0.0
        %1829 = vmatprep.subr.mxu0 0.0
        %1830 = vmatpush2.msra.mxu0 0.0
        %1831 = vmatprep.subr.mxu0 0.0
        %1832 = vmatpush2.msra.mxu0 0.0
        %1833 = vmatprep.subr.mxu0 0.0
        %1834 = vmatpush2.msra.mxu0 0.0
        %1835 = vmatprep.subr.mxu0 0.0
        %1836 = vmatpush2.msra.mxu0 0.0
        %1837 = vmatprep.subr.mxu0 0.0
        %1838 = vmatpush2.msra.mxu0 0.0
        %1839 = vmatprep.mubr.f32.mxu0 0.0
        %1840 = vmatmul.mubr.f32.gmra.mxu0 %v1773
        %v1841 = vpop.f32.mrf.mxu0
        %v1842 = vadd.f32 %v1769, %v1841
        %v1843 = vpop.f32.mrf.mxu0
        %1844 = vdwg.mxu0
        %s1845 = scalar_lea.vmem %s6, 24
        %v1846 = vld [vmem:[%s1845] sm:$0xff]
        %1847 = vmatprep.subr.mxu0 0.0
        %1848 = vmatpush1.msra.mxu0 0.0
        %1849 = vmatprep.subr.mxu0 0.0
        %1850 = vmatpush1.msra.mxu0 0.0
        %1851 = vmatprep.subr.mxu0 0.0
        %1852 = vmatpush1.msra.mxu0 0.0
        %1853 = vmatprep.subr.mxu0 0.0
        %1854 = vmatpush1.msra.mxu0 0.0
        %1855 = vmatprep.subr.mxu0 0.0
        %1856 = vmatpush1.msra.mxu0 0.0
        %1857 = vmatprep.subr.mxu0 0.0
        %1858 = vmatpush1.msra.mxu0 0.0
        %1859 = vmatprep.subr.mxu0 0.0
        %1860 = vmatpush1.msra.mxu0 0.0
        %1861 = vmatprep.subr.mxu0 0.0
        %1862 = vmatpush1.msra.mxu0 0.0
        %1863 = vmatprep.subr.mxu0 0.0
        %1864 = vmatpush1.msra.mxu0 0.0
        %1865 = vmatprep.subr.mxu0 0.0
        %1866 = vmatpush1.msra.mxu0 0.0
        %1867 = vmatprep.subr.mxu0 0.0
        %1868 = vmatpush1.msra.mxu0 0.0
        %1869 = vmatprep.subr.mxu0 0.0
        %1870 = vmatpush1.msra.mxu0 0.0
        %1871 = vmatprep.subr.mxu0 0.0
        %1872 = vmatpush1.msra.mxu0 0.0
        %1873 = vmatprep.subr.mxu0 0.0
        %1874 = vmatpush1.msra.mxu0 0.0
        %1875 = vmatprep.subr.mxu0 0.0
        %1876 = vmatpush1.msra.mxu0 0.0
        %1877 = vmatprep.subr.mxu0 0.0
        %1878 = vmatpush1.msra.mxu0 %v1846
        %1879 = vmatprep.subr.mxu0 0.0
        %1880 = vmatpush2.msra.mxu0 0.0
        %1881 = vmatprep.subr.mxu0 0.0
        %1882 = vmatpush2.msra.mxu0 0.0
        %1883 = vmatprep.subr.mxu0 0.0
        %1884 = vmatpush2.msra.mxu0 0.0
        %1885 = vmatprep.subr.mxu0 0.0
        %1886 = vmatpush2.msra.mxu0 0.0
        %1887 = vmatprep.subr.mxu0 0.0
        %1888 = vmatpush2.msra.mxu0 0.0
        %1889 = vmatprep.subr.mxu0 0.0
        %1890 = vmatpush2.msra.mxu0 0.0
        %1891 = vmatprep.subr.mxu0 0.0
        %1892 = vmatpush2.msra.mxu0 0.0
        %1893 = vmatprep.subr.mxu0 0.0
        %1894 = vmatpush2.msra.mxu0 0.0
        %1895 = vmatprep.subr.mxu0 0.0
        %1896 = vmatpush2.msra.mxu0 0.0
        %1897 = vmatprep.subr.mxu0 0.0
        %1898 = vmatpush2.msra.mxu0 0.0
        %1899 = vmatprep.subr.mxu0 0.0
        %1900 = vmatpush2.msra.mxu0 0.0
        %1901 = vmatprep.subr.mxu0 0.0
        %1902 = vmatpush2.msra.mxu0 0.0
        %1903 = vmatprep.subr.mxu0 0.0
        %1904 = vmatpush2.msra.mxu0 0.0
        %1905 = vmatprep.subr.mxu0 0.0
        %1906 = vmatpush2.msra.mxu0 0.0
        %1907 = vmatprep.subr.mxu0 0.0
        %1908 = vmatpush2.msra.mxu0 0.0
        %1909 = vmatprep.subr.mxu0 0.0
        %1910 = vmatpush2.msra.mxu0 0.0
        %1911 = vmatprep.mubr.f32.mxu0 0.0
        %1912 = vmatmul.mubr.f32.gmra.mxu0 %v1700
        %v1913 = vpop.f32.mrf.mxu0
        %v1914 = vadd.f32 0.0, %v1913
        %v1915 = vpop.f32.mrf.mxu0
        %1916 = vdwg.mxu0
        %1917 = vmatprep.subr.mxu0 0.0
        %1918 = vmatpush1.msra.mxu0 0.0
        %1919 = vmatprep.subr.mxu0 0.0
        %1920 = vmatpush1.msra.mxu0 0.0
        %1921 = vmatprep.subr.mxu0 0.0
        %1922 = vmatpush1.msra.mxu0 0.0
        %1923 = vmatprep.subr.mxu0 0.0
        %1924 = vmatpush1.msra.mxu0 0.0
        %1925 = vmatprep.subr.mxu0 0.0
        %1926 = vmatpush1.msra.mxu0 0.0
        %1927 = vmatprep.subr.mxu0 0.0
        %1928 = vmatpush1.msra.mxu0 0.0
        %1929 = vmatprep.subr.mxu0 0.0
        %1930 = vmatpush1.msra.mxu0 0.0
        %1931 = vmatprep.subr.mxu0 0.0
        %1932 = vmatpush1.msra.mxu0 0.0
        %1933 = vmatprep.subr.mxu0 0.0
        %1934 = vmatpush1.msra.mxu0 0.0
        %1935 = vmatprep.subr.mxu0 0.0
        %1936 = vmatpush1.msra.mxu0 0.0
        %1937 = vmatprep.subr.mxu0 0.0
        %1938 = vmatpush1.msra.mxu0 0.0
        %1939 = vmatprep.subr.mxu0 0.0
        %1940 = vmatpush1.msra.mxu0 0.0
        %1941 = vmatprep.subr.mxu0 0.0
        %1942 = vmatpush1.msra.mxu0 0.0
        %1943 = vmatprep.subr.mxu0 0.0
        %1944 = vmatpush1.msra.mxu0 0.0
        %1945 = vmatprep.subr.mxu0 0.0
        %1946 = vmatpush1.msra.mxu0 0.0
        %1947 = vmatprep.subr.mxu0 0.0
        %1948 = vmatpush1.msra.mxu0 %v1605
        %1949 = vmatprep.subr.mxu0 0.0
        %1950 = vmatpush2.msra.mxu0 0.0
        %1951 = vmatprep.subr.mxu0 0.0
        %1952 = vmatpush2.msra.mxu0 0.0
        %1953 = vmatprep.subr.mxu0 0.0
        %1954 = vmatpush2.msra.mxu0 0.0
        %1955 = vmatprep.subr.mxu0 0.0
        %1956 = vmatpush2.msra.mxu0 0.0
        %1957 = vmatprep.subr.mxu0 0.0
        %1958 = vmatpush2.msra.mxu0 0.0
        %1959 = vmatprep.subr.mxu0 0.0
        %1960 = vmatpush2.msra.mxu0 0.0
        %1961 = vmatprep.subr.mxu0 0.0
        %1962 = vmatpush2.msra.mxu0 0.0
        %1963 = vmatprep.subr.mxu0 0.0
        %1964 = vmatpush2.msra.mxu0 0.0
        %1965 = vmatprep.subr.mxu0 0.0
        %1966 = vmatpush2.msra.mxu0 0.0
        %1967 = vmatprep.subr.mxu0 0.0
        %1968 = vmatpush2.msra.mxu0 0.0
        %1969 = vmatprep.subr.mxu0 0.0
        %1970 = vmatpush2.msra.mxu0 0.0
        %1971 = vmatprep.subr.mxu0 0.0
        %1972 = vmatpush2.msra.mxu0 0.0
        %1973 = vmatprep.subr.mxu0 0.0
        %1974 = vmatpush2.msra.mxu0 0.0
        %1975 = vmatprep.subr.mxu0 0.0
        %1976 = vmatpush2.msra.mxu0 0.0
        %1977 = vmatprep.subr.mxu0 0.0
        %1978 = vmatpush2.msra.mxu0 0.0
        %1979 = vmatprep.subr.mxu0 0.0
        %1980 = vmatpush2.msra.mxu0 0.0
        %1981 = vmatprep.mubr.f32.mxu0 0.0
        %1982 = vmatmul.mubr.f32.gmra.mxu0 %v1773
        %v1983 = vpop.f32.mrf.mxu0
        %v1984 = vadd.f32 %v1914, %v1983
        %v1985 = vpop.f32.mrf.mxu0
        %1986 = vdwg.mxu0
        %1987 = vst.msk [vmem:[#allocation7] sm:$0x1] %vm1235, %v1842
        %1988 = vst.msk [vmem:[#allocation7 + $0x1] sm:$0x1] %vm1235, %v1984
        %v1989 = vld [vmem:[#allocation7] sm:$0x3]
        %v1990 = vld [vmem:[%s14] sm:$0xff]
        %v1991 = vld [vmem:[%s14 + $0x8] sm:$0xff]
        %v1992 = vld [vmem:[%s14 + $0x10] sm:$0xff]
        %v1993 = vld [vmem:[%s14 + $0x18] sm:$0xff]
        %v1994 = vld [vmem:[%s15] sm:$0xff]
        %v1995 = vld [vmem:[%s15 + $0x8] sm:$0xff]
        %v1996 = vld [vmem:[%s15 + $0x10] sm:$0xff]
        %v1997 = vld [vmem:[%s15 + $0x18] sm:$0xff]
        %v1999 = vsel %vm567, %v1989, 0
        %2001 = vmatprep.subr.mxu0 0.0
        %2002 = vmatpush1.msra.mxu0 0.0
        %2003 = vmatprep.subr.mxu0 0.0
        %2004 = vmatpush1.msra.mxu0 0.0
        %2005 = vmatprep.subr.mxu0 0.0
        %2006 = vmatpush1.msra.mxu0 0.0
        %2007 = vmatprep.subr.mxu0 0.0
        %2008 = vmatpush1.msra.mxu0 0.0
        %2009 = vmatprep.subr.mxu0 0.0
        %2010 = vmatpush1.msra.mxu0 0.0
        %2011 = vmatprep.subr.mxu0 0.0
        %2012 = vmatpush1.msra.mxu0 0.0
        %2013 = vmatprep.subr.mxu0 0.0
        %2014 = vmatpush1.msra.mxu0 0.0
        %2015 = vmatprep.subr.mxu0 0.0
        %2016 = vmatpush1.msra.mxu0 0.0
        %2017 = vmatprep.subr.mxu0 0.0
        %2018 = vmatpush1.msra.mxu0 0.0
        %2019 = vmatprep.subr.mxu0 0.0
        %2020 = vmatpush1.msra.mxu0 0.0
        %2021 = vmatprep.subr.mxu0 0.0
        %2022 = vmatpush1.msra.mxu0 0.0
        %2023 = vmatprep.subr.mxu0 0.0
        %2024 = vmatpush1.msra.mxu0 0.0
        %2025 = vmatprep.subr.mxu0 0.0
        %2026 = vmatpush1.msra.mxu0 %v1997
        %2027 = vmatprep.subr.mxu0 0.0
        %2028 = vmatpush1.msra.mxu0 %v1996
        %2029 = vmatprep.subr.mxu0 0.0
        %2030 = vmatpush1.msra.mxu0 %v1995
        %2031 = vmatprep.subr.mxu0 0.0
        %2032 = vmatpush1.msra.mxu0 %v1994
        %2033 = vmatprep.subr.mxu0 0.0
        %2034 = vmatpush2.msra.mxu0 0.0
        %2035 = vmatprep.subr.mxu0 0.0
        %2036 = vmatpush2.msra.mxu0 0.0
        %2037 = vmatprep.subr.mxu0 0.0
        %2038 = vmatpush2.msra.mxu0 0.0
        %2039 = vmatprep.subr.mxu0 0.0
        %2040 = vmatpush2.msra.mxu0 0.0
        %2041 = vmatprep.subr.mxu0 0.0
        %2042 = vmatpush2.msra.mxu0 0.0
        %2043 = vmatprep.subr.mxu0 0.0
        %2044 = vmatpush2.msra.mxu0 0.0
        %2045 = vmatprep.subr.mxu0 0.0
        %2046 = vmatpush2.msra.mxu0 0.0
        %2047 = vmatprep.subr.mxu0 0.0
        %2048 = vmatpush2.msra.mxu0 0.0
        %2049 = vmatprep.subr.mxu0 0.0
        %2050 = vmatpush2.msra.mxu0 0.0
        %2051 = vmatprep.subr.mxu0 0.0
        %2052 = vmatpush2.msra.mxu0 0.0
        %2053 = vmatprep.subr.mxu0 0.0
        %2054 = vmatpush2.msra.mxu0 0.0
        %2055 = vmatprep.subr.mxu0 0.0
        %2056 = vmatpush2.msra.mxu0 0.0
        %2057 = vmatprep.subr.mxu0 0.0
        %2058 = vmatpush2.msra.mxu0 0.0
        %2059 = vmatprep.subr.mxu0 0.0
        %2060 = vmatpush2.msra.mxu0 0.0
        %2061 = vmatprep.subr.mxu0 0.0
        %2062 = vmatpush2.msra.mxu0 0.0
        %2063 = vmatprep.subr.mxu0 0.0
        %2064 = vmatpush2.msra.mxu0 0.0
        %2065 = vmatprep.mubr.f32.mxu0 0.0
        %2066 = vmatmul.mubr.f32.gmra.mxu0 %v1999
        %v2067 = vpop.f32.mrf.mxu0
        %v2068 = vadd.f32 0.0, %v2067
        %v2069 = vpop.f32.mrf.mxu0
        %2070 = vdwg.mxu0
        %2071 = vmatprep.subr.mxu0 0.0
        %2072 = vmatpush1.msra.mxu0 0.0
        %2073 = vmatprep.subr.mxu0 0.0
        %2074 = vmatpush1.msra.mxu0 0.0
        %2075 = vmatprep.subr.mxu0 0.0
        %2076 = vmatpush1.msra.mxu0 0.0
        %2077 = vmatprep.subr.mxu0 0.0
        %2078 = vmatpush1.msra.mxu0 0.0
        %2079 = vmatprep.subr.mxu0 0.0
        %2080 = vmatpush1.msra.mxu0 0.0
        %2081 = vmatprep.subr.mxu0 0.0
        %2082 = vmatpush1.msra.mxu0 0.0
        %2083 = vmatprep.subr.mxu0 0.0
        %2084 = vmatpush1.msra.mxu0 0.0
        %2085 = vmatprep.subr.mxu0 0.0
        %2086 = vmatpush1.msra.mxu0 0.0
        %2087 = vmatprep.subr.mxu0 0.0
        %2088 = vmatpush1.msra.mxu0 0.0
        %2089 = vmatprep.subr.mxu0 0.0
        %2090 = vmatpush1.msra.mxu0 0.0
        %2091 = vmatprep.subr.mxu0 0.0
        %2092 = vmatpush1.msra.mxu0 0.0
        %2093 = vmatprep.subr.mxu0 0.0
        %2094 = vmatpush1.msra.mxu0 0.0
        %2095 = vmatprep.subr.mxu0 0.0
        %2096 = vmatpush1.msra.mxu0 %v1993
        %2097 = vmatprep.subr.mxu0 0.0
        %2098 = vmatpush1.msra.mxu0 %v1992
        %2099 = vmatprep.subr.mxu0 0.0
        %2100 = vmatpush1.msra.mxu0 %v1991
        %2101 = vmatprep.subr.mxu0 0.0
        %2102 = vmatpush1.msra.mxu0 %v1990
        %2103 = vmatprep.subr.mxu0 0.0
        %2104 = vmatpush2.msra.mxu0 0.0
        %2105 = vmatprep.subr.mxu0 0.0
        %2106 = vmatpush2.msra.mxu0 0.0
        %2107 = vmatprep.subr.mxu0 0.0
        %2108 = vmatpush2.msra.mxu0 0.0
        %2109 = vmatprep.subr.mxu0 0.0
        %2110 = vmatpush2.msra.mxu0 0.0
        %2111 = vmatprep.subr.mxu0 0.0
        %2112 = vmatpush2.msra.mxu0 0.0
        %2113 = vmatprep.subr.mxu0 0.0
        %2114 = vmatpush2.msra.mxu0 0.0
        %2115 = vmatprep.subr.mxu0 0.0
        %2116 = vmatpush2.msra.mxu0 0.0
        %2117 = vmatprep.subr.mxu0 0.0
        %2118 = vmatpush2.msra.mxu0 0.0
        %2119 = vmatprep.subr.mxu0 0.0
        %2120 = vmatpush2.msra.mxu0 0.0
        %2121 = vmatprep.subr.mxu0 0.0
        %2122 = vmatpush2.msra.mxu0 0.0
        %2123 = vmatprep.subr.mxu0 0.0
        %2124 = vmatpush2.msra.mxu0 0.0
        %2125 = vmatprep.subr.mxu0 0.0
        %2126 = vmatpush2.msra.mxu0 0.0
        %2127 = vmatprep.subr.mxu0 0.0
        %2128 = vmatpush2.msra.mxu0 0.0
        %2129 = vmatprep.subr.mxu0 0.0
        %2130 = vmatpush2.msra.mxu0 0.0
        %2131 = vmatprep.subr.mxu0 0.0
        %2132 = vmatpush2.msra.mxu0 0.0
        %2133 = vmatprep.subr.mxu0 0.0
        %2134 = vmatpush2.msra.mxu0 0.0
        %2135 = vmatprep.mubr.f32.mxu0 0.0
        %2136 = vmatmul.mubr.f32.gmra.mxu0 %v1517
        %v2137 = vpop.f32.mrf.mxu0
        %v2138 = vadd.f32 %v2068, %v2137
        %v2139 = vpop.f32.mrf.mxu0
        %2140 = vdwg.mxu0
        %v2141 = vld [vmem:[%s16] sm:$0x1]
        %v2143 = vlaneseq
        %v2144 = vshrl.u32 %v2143, 7
        %v2145 = vsub.s32 0, %v2144
        %v2146 = vrot.slane %v2141, %v2145
        %v2148 = vadd.f32 %v2138, %v2146
        %vm2149 = vcmask 123904
        %v2150 = vsel %vm2149, %v2148, -inf
        %2151 = vmax.xlane.f32.xlu0 %v2150
        %v2152 = vpop.xlane.xlu0 %2151
        %v2153 = vsub.f32 %v2148, %v2152
        %v2154 = vmul.f32 %v2153, 1.442695
        %v2155 = vpow.pop %v2154
        %v2156 = vsel %vm2149, %v2155, 0.0
        %2157 = vadd.xlane.f32.xlu0 %v2156
        %v2158 = vpop.xlane.xlu0 %2157
        %v2159 = vlog2.pop %v2158
        %v2160 = vmul.f32 %v2159, 0.6931472
        %v2161 = vsub.f32 %v2153, %v2160
        %2162 = vst.msk [vmem:[%s539] sm:$0x3] %vm2149, %v2161
        %s2163 = sand.u32 %s401, 1
        %s2164 = scalar_lea.sflag [#allocation9], %s2163
        %s2165 = sand.u32 %s401, 1
        %s2166 = smul.addr %s2165, 2
        %s2167 = scalar_lea.vmem [#allocation8], %s2166
        // Predicated region
        $region93: #{attention_forward.5} parent=87 // pred_check
          %p2168 = pneg %p411
        $region94: #{attention_forward.5} parent=87 // pred_check_branch
          %2170 = sbr.rel (%p2168) target = $region96
        $region95: #{attention_forward.5} parent=87 // pred_region
          %s2172 = ssub.s32 32, 32
          %2173 = vsyncadd %s2164, %s2172
          %s2174 = smul.addr %s31, 32
          %s2175 = scalar_lea.hbm %s17, %s2174
          %s2177 = sshll.u32 %s2167, 4
          %s2178 = int_to_ptr.vmem [resolvable:$true] %s2177
          %2180 = dma.vmem_to_hbm [thread:$0]  %s2178, 32, %s2175, %s2164
        $region96: #{attention_forward.5} parent=87 // pred_fallthru
          _
      $region88: #{attention_forward.5} parent=5 // pred_fallthru
        _
      %p2181 = scmp.le.s32.totalorder 2, %s26
      // Predicated region
      $region97: #{attention_forward.5} parent=5 // pred_check
        %p2182 = pneg %p2181
      $region98: #{attention_forward.5} parent=5 // pred_check_branch
        %2184 = sbr.rel (%p2182) target = $region100
      $region99: #{attention_forward.5} parent=5 // pred_region
        %s2185 = ssub.s32 %s26, 2
        // Predicated region
        $region101: #{attention_forward.5} parent=99 // pred_check
          %p2186 = pneg %p417
        $region102: #{attention_forward.5} parent=99 // pred_check_branch
          %2188 = sbr.rel (%p2186) target = $region104
        $region103: #{attention_forward.5} parent=99 // pred_region
          %s2189 = sand.u32 %s402, 1
          %s2190 = scalar_lea.sflag [#allocation9], %s2189
          %s2191 = sand.u32 %s402, 1
          %s2192 = smul.addr %s2191, 2
          %s2193 = scalar_lea.vmem [#allocation8], %s2192
          %2194 = dma.done %s2190, 32
        $region104: #{attention_forward.5} parent=99 // pred_fallthru
          _
      $region100: #{attention_forward.5} parent=5 // pred_fallthru
        _
    $region6: #{attention_forward.5} parent=1 // loop_footer
      %s30 = sadd.s32 1, %s26
    $region7: #{attention_forward.5} parent=1 // loop_footer_branch
      %25 = sbr.rel target = $region3
    $region8: #{attention_forward.5} parent=1 // loop_exit
      _
    %2195 = vsyncpa [#allocation9], 1
    %s2196 = scalar_lea.sflag [#allocation9], 1
    %2197 = vsyncpa %s2196, 1

</llo_original>
